<compile_context>
chip_gen: v6e
topology: v6e:2x2x1
jax: 0.10.0
libtpu: 0.0.40
codegen_flags: <defaults>
</compile_context>

<pallas_src>
import functools

import jax
import jax.numpy as jnp
from jax.experimental import pallas as pl
from jax.experimental.pallas import tpu as pltpu


# ----------------------------- window helpers (glue, plain JAX) -----------------------------
# TODO(synk): fuse window partition/reverse into the pallas_call (multi-D grid over the padded
# (B,D,H,W,C) array) to avoid the two extra full-activation HBM transposes.

def window_partition_jax(x, window_size):
    # x is already padded to multiples of window_size
    B, D, H, W, C = x.shape
    wD, wH, wW = window_size
    x = x.reshape(B, D // wD, wD, H // wH, wH, W // wW, wW, C)
    x = jnp.transpose(x, (0, 1, 3, 5, 2, 4, 6, 7))
    return x.reshape(-1, wD, wH, wW, C)


def window_reverse_jax(windows, window_size, B, D, H, W):
    wD, wH, wW = window_size
    x = windows.reshape(B, D // wD, H // wH, W // wW, wD, wH, wW, -1)
    x = jnp.transpose(x, (0, 1, 4, 2, 5, 3, 6, 7))
    return x.reshape(B, D, H, W, -1)


# ----------------------------- Pallas kernel: qkv + attention -----------------------------

def _window_attn_kernel(x_ref, wqkv_ref, bqkv_ref, mask_ref, ones_ref, o_ref,
                        *, num_heads, tokens, mxu_dtype):
    # x_ref:    (WB*N, C)    flattened tokens of a block of WB windows
    # wqkv_ref: (C, 3C)      qkv weight (q-part pre-scaled by head_dim**-0.5 in wrapper)
    # bqkv_ref: (1, 3C)      qkv bias   (q-part pre-scaled)
    # mask_ref: (H*N, C)     0/1: lane j=h*N+m keeps only head h's channel slice
    # ones_ref: (H*N, H*N)   block-diagonal ones: per-head group sums via one matmul
    # o_ref:    (WB*N, C)
    N = tokens
    C = x_ref.shape[-1]
    T = x_ref.shape[0]
    WB = T // N
    HN = num_heads * N

    def mx(a):
        # Optionally feed the MXU bf16 operands (f32 accumulation stays).
        return a if mxu_dtype is None else a.astype(mxu_dtype)

    x = x_ref[...]                       # native dtype straight to the MXU (no f32 upcast)
    w = wqkv_ref[...]
    b = bqkv_ref[...].astype(jnp.float32)

    # Single large-M qkv projection, f32 accumulate.
    qkv = jnp.dot(mx(x), mx(w), preferred_element_type=jnp.float32) + b    # (T, 3C)

    # q/k/v as three C-wide lane slices (no per-head slicing anywhere below).
    q = qkv[:, :C].reshape(WB, N, C)
    k = qkv[:, C:2 * C].reshape(WB, N, C)
    v = qkv[:, 2 * C:].reshape(WB, N, C)

    # Head-batched, lane-dense attention.
    #   kb[w, h*N + m, c] = k[w, m, c] if c belongs to head h else 0
    # so that q @ kb^T contracts only over head h's hd channels for score lane h*N+m.
    head_mask = mask_ref[...][None]                                        # (1, HN, C)
    kb = jnp.concatenate([k] * num_heads, axis=1) * head_mask              # (WB, HN, C)
    vb = jnp.concatenate([v] * num_heads, axis=1) * head_mask              # (WB, HN, C)

    # Scores: (WB, N, HN) — softmax lanes are num_heads*N wide (128 for the reference
    # config), so the exp/max/normalize below run on full vregs.  Attention scale is
    # already folded into W_q / b_q.
    s = jnp.einsum('wnc,wjc->wnj', mx(q), mx(kb),
                   preferred_element_type=jnp.float32)

    # Row-global max is a constant shift within every head group -> per-head softmax
    # unchanged, numerically stable.
    s = s - jnp.max(s, axis=-1, keepdims=True)
    p = jnp.exp(s)

    # Per-head denominators broadcast to every lane via one block-diagonal-ones matmul
    # (keeps the lane-dense layout; MXU has plenty of slack at this size).
    denom = jnp.dot(p.reshape(T, HN), ones_ref[...],
                    preferred_element_type=jnp.float32).reshape(WB, N, HN)
    p = p * pl.reciprocal(denom, approx=False)                             # exact (1e-4 tol)

    # out[w, n, c] = sum_m p[w, n, head(c)*N + m] * v[w, m, c]   (vb is zero off-head)
    out = jnp.einsum('wnj,wjc->wnc', mx(p), mx(vb),
                     preferred_element_type=jnp.float32)                   # (WB, N, C)

    # single full-block 2-D store
    o_ref[...] = out.reshape(T, C).astype(o_ref.dtype)


def _choose_window_block(nw, N, C, num_heads, itemsize):
    """Grid-first block sizing: pick steps, then a balanced WB (padding < one step)."""
    HN = num_heads * N
    f32 = 4
    io = 2 * 2 * N * C * itemsize                 # double-buffered input + output blocks
    qkv = f32 * N * 3 * C + 3 * f32 * N * C       # qkv intermediate + q/k/v views
    kvdup = 2 * f32 * HN * C                      # head-tiled / masked K and V
    scores = 3 * f32 * N * HN                     # scores / probs / normalized probs
    outb = f32 * N * C
    per_win = io + qkv + kvdup + scores + outb
    fixed = 2 * f32 * (HN * C + HN * HN + C * 3 * C + 3 * C)   # resident weight/bias/mask blocks
    # Conservative budget: fits under the 32 MiB scoped VMEM limit with compiler headroom
    # on all of v5e/v6e/v7x (v7x only has 64 MiB physical VMEM).
    budget = 12 * 1024 * 1024 - fixed
    wb_max = int(max(1, min(256, budget // per_win)))

    steps = max(1, pl.cdiv(nw, wb_max))
    if nw >= 16:
        # keep >= 4 grid steps when there is enough work: v7x shards the parallel axis
        # across 2 TensorCores and each core still gets >= 2 steps to pipeline DMA/compute.
        steps = max(steps, min(4, pl.cdiv(nw, 8)))
    steps = min(steps, nw)
    wb = int(pl.cdiv(nw, steps))
    return max(1, wb)


# ----------------------------- wrapper -----------------------------

def window_attention_3d(x, wqkv, bqkv, window_size, num_heads, mxu_dtype=None):
    B, oD, oH, oW, C = x.shape
    wD, wH, wW = window_size
    pad_d = (-oD) % wD
    pad_h = (-oH) % wH
    pad_w = (-oW) % wW
    if pad_d or pad_h or pad_w:
        x = jnp.pad(x, ((0, 0), (0, pad_d), (0, pad_h), (0, pad_w), (0, 0)))
    D, H, W = oD + pad_d, oH + pad_h, oW + pad_w

    windows = window_partition_jax(x, window_size)        # (nw, wD, wH, wW, C)
    nw = windows.shape[0]
    N = wD * wH * wW
    windows2d = windows.reshape(nw * N, C)                # contiguous token rows

    hd = C // num_heads
    HN = num_heads * N
    scale = float(hd ** -0.5)
    # Fold the attention scale into the q projection (exact up to f32 rounding).
    wqkv_s = jnp.concatenate([wqkv[:, :C] * scale, wqkv[:, C:]], axis=1)
    bqkv_s = jnp.concatenate([bqkv[:C] * scale, bqkv[C:]]).reshape(1, 3 * C)

    # Compile-time constant head mask and block-diagonal ones (built outside the kernel
    # to avoid in-kernel iota/integer-divide lowering; DMA'd once, resident thereafter).
    j_head = jnp.arange(HN, dtype=jnp.int32) // N
    c_head = jnp.arange(C, dtype=jnp.int32) // hd
    head_mask = (j_head[:, None] == c_head[None, :]).astype(jnp.float32)    # (HN, C)
    block_ones = (j_head[:, None] == j_head[None, :]).astype(jnp.float32)   # (HN, HN)

    itemsize = jnp.dtype(x.dtype).itemsize
    WB = _choose_window_block(nw, N, C, num_heads, itemsize)
    grid = int(pl.cdiv(nw, WB))
    nw_pad = grid * WB
    if nw_pad != nw:
        # padded (zero) windows are computed and discarded; softmax of constant rows is safe
        windows2d = jnp.pad(windows2d, ((0, (nw_pad - nw) * N), (0, 0)))

    kernel = functools.partial(_window_attn_kernel, num_heads=num_heads, tokens=N,
                               mxu_dtype=mxu_dtype)

    flops = nw_pad * (2 * N * C * 3 * C          # qkv projection
                      + 2 * N * HN * C           # scores (lane-dense, full-C contraction)
                      + 2 * N * HN * HN          # per-head denominators
                      + 2 * N * HN * C)          # probs @ V
    transcendentals = nw_pad * N * HN
    bytes_accessed = (2 * nw_pad * N * C) * itemsize + 4 * (3 * C * C + 3 * C + HN * C + HN * HN)

    out2d = pl.pallas_call(
        kernel,
        out_shape=jax.ShapeDtypeStruct((nw_pad * N, C), x.dtype),
        grid_spec=pltpu.PrefetchScalarGridSpec(
            num_scalar_prefetch=0,
            grid=(grid,),
            in_specs=[
                pl.BlockSpec((WB * N, C), lambda i: (i, 0)),
                pl.BlockSpec((C, 3 * C), lambda i: (0, 0)),
                pl.BlockSpec((1, 3 * C), lambda i: (0, 0)),
                pl.BlockSpec((HN, C), lambda i: (0, 0)),
                pl.BlockSpec((HN, HN), lambda i: (0, 0)),
            ],
            out_specs=pl.BlockSpec((WB * N, C), lambda i: (i, 0)),
        ),
        compiler_params=pltpu.CompilerParams(
            dimension_semantics=("parallel",),
            vmem_limit_bytes=32 * 1024 * 1024,
        ),
        cost_estimate=pl.CostEstimate(
            flops=int(flops),
            transcendentals=int(transcendentals),
            bytes_accessed=int(bytes_accessed),
        ),
    )(windows2d, wqkv_s, bqkv_s, head_mask, block_ones)

    out = out2d[: nw * N].reshape(nw, wD, wH, wW, C)
    out = window_reverse_jax(out, window_size, B, D, H, W)
    return out[:, :oD, :oH, :oW, :]


# ----------------------------- pure-JAX reference (for correctness check) -----------------------------

def window_attention_3d_ref(x, wqkv, bqkv, window_size, num_heads):
    B, oD, oH, oW, C = x.shape
    wD, wH, wW = window_size
    pad_d, pad_h, pad_w = (-oD) % wD, (-oH) % wH, (-oW) % wW
    if pad_d or pad_h or pad_w:
        x = jnp.pad(x, ((0, 0), (0, pad_d), (0, pad_h), (0, pad_w), (0, 0)))
    D, H, W = oD + pad_d, oH + pad_h, oW + pad_w
    windows = window_partition_jax(x, window_size)
    nw = windows.shape[0]
    N = wD * wH * wW
    hd = C // num_heads
    win = windows.reshape(nw, N, C)
    qkv = win @ wqkv + bqkv                                   # (nw, N, 3C)
    qkv = qkv.reshape(nw, N, 3, num_heads, hd)
    qkv = jnp.transpose(qkv, (2, 0, 3, 1, 4))                 # (3, nw, heads, N, hd)
    q, k, v = qkv[0], qkv[1], qkv[2]
    attn = jnp.einsum('whnd,whmd->whnm', q, k) * (hd ** -0.5)
    attn = jax.nn.softmax(attn, axis=-1)
    out = jnp.einsum('whnm,whmd->whnd', attn, v)              # (nw, heads, N, hd)
    out = jnp.transpose(out, (0, 2, 1, 3)).reshape(nw, N, C)
    out = out.reshape(nw, wD, wH, wW, C)
    out = window_reverse_jax(out, window_size, B, D, H, W)
    return out[:, :oD, :oH, :oW, :]


# ----------------------------- main -----------------------------

if __name__ == "__main__":
    dim = 32
    num_heads = 4
    window_size = (2, 4, 4)

    key = jax.random.PRNGKey(0)
    kx, kw, kb = jax.random.split(key, 3)

    # small shapes that exercise the padding path: (B, D, H, W, C)
    x = jax.random.normal(kx, (2, 3, 7, 7, dim), dtype=jnp.float32)

    # deterministic parameter init (nn.Linear(dim, 3*dim, bias=True) equivalent, stored as (C, 3C))
    wqkv = 0.02 * jax.random.normal(kw, (dim, 3 * dim), dtype=jnp.float32)
    bqkv = 0.01 * jax.random.normal(kb, (3 * dim,), dtype=jnp.float32)

    # TODO(synk): self.proj / dropouts / DropKey are never applied in the reference forward
    # (eval, attn_drop=proj_drop=0, use_DropKey=False), so they are intentionally omitted.
    # Set mxu_dtype=jnp.bfloat16 on v6e/v7x when output tolerance allows (review item 3);
    # kept off here to preserve the 1e-4 f32 check.
    out = window_attention_3d(x, wqkv, bqkv, window_size, num_heads, mxu_dtype=None)
    out = jax.block_until_ready(out)

    ref = window_attention_3d_ref(x, wqkv, bqkv, window_size, num_heads)
    assert out.shape == x.shape, (out.shape, x.shape)
    assert jnp.allclose(out, ref, atol=1e-4, rtol=1e-4), float(jnp.max(jnp.abs(out - ref)))

    print("KERNEL_OK")
</pallas_src>

<mosaic_0001>
module attributes {stable_mosaic.version = 11 : i64} {
  func.func @_window_attn_kernel(%arg0: i32, %arg1: memref<256x32xf32, #tpu.memory_space<vmem>>, %arg2: memref<32x96xf32, #tpu.memory_space<vmem>>, %arg3: memref<1x96xf32, #tpu.memory_space<vmem>>, %arg4: memref<128x32xf32, #tpu.memory_space<vmem>>, %arg5: memref<128x128xf32, #tpu.memory_space<vmem>>, %arg6: memref<256x32xf32, #tpu.memory_space<vmem>>) attributes {dimension_semantics = [#tpu.dimension_semantics<parallel>], iteration_bounds = array<i64: 2>, scalar_prefetch = 0 : i64, scratch_operands = 0 : i64, tpu.core_type = #tpu.core_type<tc>, window_params = [{transform_indices = @transform_0, window_bounds = array<i64: 256, 32>}, {pipeline_mode = #tpu.pipeline_mode<synchronous>, transform_indices = @transform_1, window_bounds = array<i64: 32, 96>}, {pipeline_mode = #tpu.pipeline_mode<synchronous>, transform_indices = @transform_2, window_bounds = array<i64: 1, 96>}, {pipeline_mode = #tpu.pipeline_mode<synchronous>, transform_indices = @transform_3, window_bounds = array<i64: 128, 32>}, {pipeline_mode = #tpu.pipeline_mode<synchronous>, transform_indices = @transform_4, window_bounds = array<i64: 128, 128>}, {transform_indices = @transform_5, window_bounds = array<i64: 256, 32>}]} {
    %c0 = arith.constant 0 : index
    %c0_0 = arith.constant 0 : index
    %0 = vector.load %arg1[%c0, %c0_0] : memref<256x32xf32, #tpu.memory_space<vmem>>, vector<256x32xf32>
    %c0_1 = arith.constant 0 : index
    %c0_2 = arith.constant 0 : index
    %1 = vector.load %arg2[%c0_1, %c0_2] : memref<32x96xf32, #tpu.memory_space<vmem>>, vector<32x96xf32>
    %c0_3 = arith.constant 0 : index
    %c0_4 = arith.constant 0 : index
    %2 = vector.load %arg3[%c0_3, %c0_4] : memref<1x96xf32, #tpu.memory_space<vmem>>, vector<1x96xf32>
    %cst = arith.constant dense<0.000000e+00> : vector<256x96xf32>
    %3 = tpu.matmul %0, %1, %cst {dimension_numbers = #tpu.dot_dimension_numbers<[1], [0], [0], [1], [0, 0, 1, 1], [], []>} : vector<256x32xf32>, vector<32x96xf32>, vector<256x96xf32> -> vector<256x96xf32>
    %4 = vector.broadcast %2 : vector<1x96xf32> to vector<256x96xf32>
    %5 = arith.addf %3, %4 : vector<256x96xf32>
    %6 = vector.extract_strided_slice %5 {offsets = [0, 0], sizes = [256, 32], strides = [1, 1]} : vector<256x96xf32> to vector<256x32xf32>
    %7 = vector.shape_cast %6 : vector<256x32xf32> to vector<8x32x32xf32>
    %8 = vector.extract_strided_slice %5 {offsets = [0, 32], sizes = [256, 32], strides = [1, 1]} : vector<256x96xf32> to vector<256x32xf32>
    %9 = vector.shape_cast %8 : vector<256x32xf32> to vector<8x32x32xf32>
    %10 = vector.extract_strided_slice %5 {offsets = [0, 64], sizes = [256, 32], strides = [1, 1]} : vector<256x96xf32> to vector<256x32xf32>
    %11 = vector.shape_cast %10 : vector<256x32xf32> to vector<8x32x32xf32>
    %c0_5 = arith.constant 0 : index
    %c0_6 = arith.constant 0 : index
    %12 = vector.load %arg4[%c0_5, %c0_6] : memref<128x32xf32, #tpu.memory_space<vmem>>, vector<128x32xf32>
    %13 = vector.shape_cast %12 : vector<128x32xf32> to vector<1x128x32xf32>
    %14 = tpu.concatenate %9, %9, %9, %9 in 1 : vector<8x32x32xf32>, vector<8x32x32xf32>, vector<8x32x32xf32>, vector<8x32x32xf32> -> vector<8x128x32xf32>
    %15 = vector.broadcast %13 : vector<1x128x32xf32> to vector<8x128x32xf32>
    %16 = arith.mulf %14, %15 : vector<8x128x32xf32>
    %17 = tpu.concatenate %11, %11, %11, %11 in 1 : vector<8x32x32xf32>, vector<8x32x32xf32>, vector<8x32x32xf32>, vector<8x32x32xf32> -> vector<8x128x32xf32>
    %18 = vector.broadcast %13 : vector<1x128x32xf32> to vector<8x128x32xf32>
    %19 = arith.mulf %17, %18 : vector<8x128x32xf32>
    "tpu.trace_start"() <{level = 10 : i32, message = "wnc,wjc->wnj"}> : () -> ()
    %cst_7 = arith.constant dense<0.000000e+00> : vector<8x32x128xf32>
    %20 = tpu.matmul %7, %16, %cst_7 {dimension_numbers = #tpu.dot_dimension_numbers<[2], [2], [1], [1], [0, 0, 0, 1, 1, 1], [0], [0]>} : vector<8x32x32xf32>, vector<8x128x32xf32>, vector<8x32x128xf32> -> vector<8x32x128xf32>
    "tpu.trace_stop"() : () -> ()
    %cst_8 = arith.constant dense<0xFF800000> : vector<8x32xf32>
    %21 = vector.multi_reduction <maximumf>, %20, %cst_8 [2] : vector<8x32x128xf32> to vector<8x32xf32>
    %22 = vector.shape_cast %21 : vector<8x32xf32> to vector<8x32x1xf32>
    %23 = vector.broadcast %22 : vector<8x32x1xf32> to vector<8x32x128xf32>
    %24 = arith.subf %20, %23 : vector<8x32x128xf32>
    %25 = math.exp %24 : vector<8x32x128xf32>
    %26 = vector.shape_cast %25 : vector<8x32x128xf32> to vector<256x128xf32>
    %c0_9 = arith.constant 0 : index
    %c0_10 = arith.constant 0 : index
    %27 = vector.load %arg5[%c0_9, %c0_10] : memref<128x128xf32, #tpu.memory_space<vmem>>, vector<128x128xf32>
    %cst_11 = arith.constant dense<0.000000e+00> : vector<256x128xf32>
    %28 = tpu.matmul %26, %27, %cst_11 {dimension_numbers = #tpu.dot_dimension_numbers<[1], [0], [0], [1], [0, 0, 1, 1], [], []>} : vector<256x128xf32>, vector<128x128xf32>, vector<256x128xf32> -> vector<256x128xf32>
    %29 = vector.shape_cast %28 : vector<256x128xf32> to vector<8x32x128xf32>
    %30 = tpu.reciprocal %29 : vector<8x32x128xf32> -> vector<8x32x128xf32>
    %31 = arith.mulf %25, %30 : vector<8x32x128xf32>
    "tpu.trace_start"() <{level = 10 : i32, message = "wnj,wjc->wnc"}> : () -> ()
    %cst_12 = arith.constant dense<0.000000e+00> : vector<8x32x32xf32>
    %32 = tpu.matmul %31, %19, %cst_12 {dimension_numbers = #tpu.dot_dimension_numbers<[2], [1], [1], [2], [0, 0, 0, 1, 1, 2], [0], [0]>} : vector<8x32x128xf32>, vector<8x128x32xf32>, vector<8x32x32xf32> -> vector<8x32x32xf32>
    "tpu.trace_stop"() : () -> ()
    %33 = vector.shape_cast %32 : vector<8x32x32xf32> to vector<256x32xf32>
    %c0_13 = arith.constant 0 : index
    %c0_14 = arith.constant 0 : index
    %34 = vector.load %arg6[%c0_13, %c0_14] : memref<256x32xf32, #tpu.memory_space<vmem>>, vector<256x32xf32>
    tpu.vector_store %arg6[%c0_13, %c0_14], %33 {strides = array<i32>} : memref<256x32xf32, #tpu.memory_space<vmem>>, vector<256x32xf32>,
    return
  }
  func.func @transform_0(%arg0: i32) -> (i32, i32) {
    %c0_i32 = arith.constant 0 : i32
    %c0_i32_0 = arith.constant 0 : i32
    return %arg0, %c0_i32 : i32, i32
  }
  func.func @transform_1(%arg0: i32) -> (i32, i32) {
    %c0_i32 = arith.constant 0 : i32
    %c0_i32_0 = arith.constant 0 : i32
    %c0_i32_1 = arith.constant 0 : i32
    return %c0_i32, %c0_i32_0 : i32, i32
  }
  func.func @transform_2(%arg0: i32) -> (i32, i32) {
    %c0_i32 = arith.constant 0 : i32
    %c0_i32_0 = arith.constant 0 : i32
    %c0_i32_1 = arith.constant 0 : i32
    return %c0_i32, %c0_i32_0 : i32, i32
  }
  func.func @transform_3(%arg0: i32) -> (i32, i32) {
    %c0_i32 = arith.constant 0 : i32
    %c0_i32_0 = arith.constant 0 : i32
    %c0_i32_1 = arith.constant 0 : i32
    return %c0_i32, %c0_i32_0 : i32, i32
  }
  func.func @transform_4(%arg0: i32) -> (i32, i32) {
    %c0_i32 = arith.constant 0 : i32
    %c0_i32_0 = arith.constant 0 : i32
    %c0_i32_1 = arith.constant 0 : i32
    return %c0_i32, %c0_i32_0 : i32, i32
  }
  func.func @transform_5(%arg0: i32) -> (i32, i32) {
    %c0_i32 = arith.constant 0 : i32
    %c0_i32_0 = arith.constant 0 : i32
    return %arg0, %c0_i32 : i32, i32
  }
}

</mosaic_0001>

<llo_original>
// kernel: tpu_custom_call.1
$region0: #{tpu_custom_call.1}
  #allocation0 [shape = 'u32[]', space=smem, size = 0x4, offset = 0x4, fixed_abs, tag = 'smem constant byte address 0x4 - core index']
  #allocation1 [shape = 'u32[144,128]{1,0:T(1,128)}', space=vmem, size = 0x12000, scoped, tag = 'internal scratch']
  %s0 = inlined_call_operand.vmem [shape: f32[512,32], index: 0, kind: input, shape index: {}]
  %s1 = inlined_call_operand.vmem [shape: f32[32,96], index: 1, kind: input, shape index: {}]
  %s2 = inlined_call_operand.vmem [shape: f32[1,96], index: 2, kind: input, shape index: {}]
  %s3 = inlined_call_operand.vmem [shape: f32[128,32], index: 3, kind: input, shape index: {}]
  %s4 = inlined_call_operand.vmem [shape: f32[128,128], index: 4, kind: input, shape index: {}]
  %s5 = inlined_call_operand.vmem [shape: f32[512,32], index: 5, kind: output, shape index: {}]
  %s6 = sld [smem:[#allocation0]]
  $region53: #{tpu_custom_call.1} parent=0
    _
  %s8 = ssub.s32 1, %s6
  %s9 = scalar_select 0, %s8, %s6
  loop: start=0, step=1, limit=4
  $region2: #{tpu_custom_call.1} parent=0 // loop_pre_header
    _
  $region3: #{tpu_custom_call.1} parent=0 // loop_header
    %s11 = sphi 0, %s15
    %p12 = scmp.ge.s32.totalorder %s11, 4
    %s21 = sphi 0, %s23
    %s24 = sphi 0, %s21
    %s25 = sphi 0, %s24
    %s41 = sphi 0, %s25
    %s45 = sphi 0, %s45
    %s47 = sphi 0, %s45
    %s48 = sphi 0, %s47
    %s62 = sphi 0, %s48
    %s66 = sphi 0, %s66
    %s68 = sphi 0, %s66
    %s69 = sphi 0, %s68
    %s83 = sphi 0, %s69
    %s87 = sphi 0, %s87
    %s89 = sphi 0, %s87
    %s90 = sphi 0, %s89
    %s104 = sphi 0, %s90
    %s108 = sphi 0, %s108
    %s110 = sphi 0, %s108
    %s111 = sphi 0, %s110
    %s125 = sphi 0, %s111
    %s131 = sphi 0, %s133
    %s134 = sphi 0, %s131
    %s135 = sphi 0, %s134
    %s151 = sphi 0, %s135
  $region4: #{tpu_custom_call.1} parent=0 // loop_header_branch
    %14 = sbr.rel (%p12) target = $region8
  $region5: #{tpu_custom_call.1} parent=0 // loop_body
    %s16 = ssub.s32 %s11, 1
    %s17 = ssub.s32 %s11, 2
    %s18 = sadd.s32 %s11, 1
    %s19 = ssub.s32 %s11, %s18
    %p20 = scmp.eq.s32.totalorder %s19, 0
    %s22 = sadd.s32 %s21, 1
    %s23 = scalar_select %p20, %s21, %s22
    %p26 = pneg %p20
    %p27 = scmp.eq.s32.totalorder %s11, 1
    %p28 = por %p26, %p27
    %p29 = scmp.ne.s32.totalorder %s21, %s24
    %p30 = scmp.eq.s32.totalorder %s11, 0
    %p31 = por %p29, %p30
    %p32 = scmp.ne.s32.totalorder %s21, %s24
    %p33 = scmp.eq.s32.totalorder %s16, 1
    %p34 = por %p32, %p33
    %p35 = scmp.ne.s32.totalorder %s24, %s25
    %p36 = scmp.eq.s32.totalorder %s16, 0
    %p37 = por %p35, %p36
    %p38 = scmp.ne.s32.totalorder %s24, %s25
    %p39 = scmp.eq.s32.totalorder %s17, 1
    %p40 = por %p38, %p39
    %p42 = scmp.ne.s32.totalorder %s25, %s41
    %p43 = scmp.eq.s32.totalorder %s17, 0
    %p44 = por %p42, %p43
    %s46 = sadd.s32 %s45, 1
    %p49 = scmp.eq.s32.totalorder %s11, 1
    %p50 = scmp.ne.s32.totalorder %s45, %s47
    %p51 = scmp.eq.s32.totalorder %s11, 0
    %p52 = por %p50, %p51
    %p53 = scmp.ne.s32.totalorder %s45, %s47
    %p54 = scmp.eq.s32.totalorder %s16, 1
    %p55 = por %p53, %p54
    %p56 = scmp.ne.s32.totalorder %s47, %s48
    %p57 = scmp.eq.s32.totalorder %s16, 0
    %p58 = por %p56, %p57
    %p59 = scmp.ne.s32.totalorder %s47, %s48
    %p60 = scmp.eq.s32.totalorder %s17, 1
    %p61 = por %p59, %p60
    %p63 = scmp.ne.s32.totalorder %s48, %s62
    %p64 = scmp.eq.s32.totalorder %s17, 0
    %p65 = por %p63, %p64
    %s67 = sadd.s32 %s66, 1
    %p70 = scmp.eq.s32.totalorder %s11, 1
    %p71 = scmp.ne.s32.totalorder %s66, %s68
    %p72 = scmp.eq.s32.totalorder %s11, 0
    %p73 = por %p71, %p72
    %p74 = scmp.ne.s32.totalorder %s66, %s68
    %p75 = scmp.eq.s32.totalorder %s16, 1
    %p76 = por %p74, %p75
    %p77 = scmp.ne.s32.totalorder %s68, %s69
    %p78 = scmp.eq.s32.totalorder %s16, 0
    %p79 = por %p77, %p78
    %p80 = scmp.ne.s32.totalorder %s68, %s69
    %p81 = scmp.eq.s32.totalorder %s17, 1
    %p82 = por %p80, %p81
    %p84 = scmp.ne.s32.totalorder %s69, %s83
    %p85 = scmp.eq.s32.totalorder %s17, 0
    %p86 = por %p84, %p85
    %s88 = sadd.s32 %s87, 1
    %p91 = scmp.eq.s32.totalorder %s11, 1
    %p92 = scmp.ne.s32.totalorder %s87, %s89
    %p93 = scmp.eq.s32.totalorder %s11, 0
    %p94 = por %p92, %p93
    %p95 = scmp.ne.s32.totalorder %s87, %s89
    %p96 = scmp.eq.s32.totalorder %s16, 1
    %p97 = por %p95, %p96
    %p98 = scmp.ne.s32.totalorder %s89, %s90
    %p99 = scmp.eq.s32.totalorder %s16, 0
    %p100 = por %p98, %p99
    %p101 = scmp.ne.s32.totalorder %s89, %s90
    %p102 = scmp.eq.s32.totalorder %s17, 1
    %p103 = por %p101, %p102
    %p105 = scmp.ne.s32.totalorder %s90, %s104
    %p106 = scmp.eq.s32.totalorder %s17, 0
    %p107 = por %p105, %p106
    %s109 = sadd.s32 %s108, 1
    %p112 = scmp.eq.s32.totalorder %s11, 1
    %p113 = scmp.ne.s32.totalorder %s108, %s110
    %p114 = scmp.eq.s32.totalorder %s11, 0
    %p115 = por %p113, %p114
    %p116 = scmp.ne.s32.totalorder %s108, %s110
    %p117 = scmp.eq.s32.totalorder %s16, 1
    %p118 = por %p116, %p117
    %p119 = scmp.ne.s32.totalorder %s110, %s111
    %p120 = scmp.eq.s32.totalorder %s16, 0
    %p121 = por %p119, %p120
    %p122 = scmp.ne.s32.totalorder %s110, %s111
    %p123 = scmp.eq.s32.totalorder %s17, 1
    %p124 = por %p122, %p123
    %p126 = scmp.ne.s32.totalorder %s111, %s125
    %p127 = scmp.eq.s32.totalorder %s17, 0
    %p128 = por %p126, %p127
    %s129 = ssub.s32 %s11, %s18
    %p130 = scmp.eq.s32.totalorder %s129, 0
    %s132 = sadd.s32 %s131, 1
    %s133 = scalar_select %p130, %s131, %s132
    %p136 = pneg %p130
    %p137 = scmp.eq.s32.totalorder %s11, 1
    %p138 = por %p136, %p137
    %p139 = scmp.ne.s32.totalorder %s131, %s134
    %p140 = scmp.eq.s32.totalorder %s11, 0
    %p141 = por %p139, %p140
    %p142 = scmp.ne.s32.totalorder %s131, %s134
    %p143 = scmp.eq.s32.totalorder %s16, 1
    %p144 = por %p142, %p143
    %p145 = scmp.ne.s32.totalorder %s134, %s135
    %p146 = scmp.eq.s32.totalorder %s16, 0
    %p147 = por %p145, %p146
    %p148 = scmp.ne.s32.totalorder %s134, %s135
    %p149 = scmp.eq.s32.totalorder %s17, 1
    %p150 = por %p148, %p149
    %p152 = scmp.ne.s32.totalorder %s135, %s151
    %p153 = scmp.eq.s32.totalorder %s17, 0
    %p154 = por %p152, %p153
    %p155 = scmp.le.s32.totalorder 1, %s11
    %p156 = scmp.lt.s32.totalorder %s11, 3
    %p157 = pnand %p155, %p156
    %p158 = pneg %p157
    // Predicated region
    $region9: #{tpu_custom_call.1} parent=5 // pred_check
      _
    $region10: #{tpu_custom_call.1} parent=5 // pred_check_branch
      %160 = sbr.rel (%p157) target = $region12
    $region11: #{tpu_custom_call.1} parent=5 // pred_region
      %s161 = ssub.s32 %s11, 1
      // Predicated region
      $region13: #{tpu_custom_call.1} parent=11 // pred_check
        %p162 = pneg %p58
      $region14: #{tpu_custom_call.1} parent=11 // pred_check_branch
        %164 = sbr.rel (%p162) target = $region16
      $region15: #{tpu_custom_call.1} parent=11 // pred_region
        _
      $region16: #{tpu_custom_call.1} parent=11 // pred_fallthru
        _
      // Predicated region
      $region17: #{tpu_custom_call.1} parent=11 // pred_check
        %p165 = pneg %p79
      $region18: #{tpu_custom_call.1} parent=11 // pred_check_branch
        %167 = sbr.rel (%p165) target = $region20
      $region19: #{tpu_custom_call.1} parent=11 // pred_region
        _
      $region20: #{tpu_custom_call.1} parent=11 // pred_fallthru
        _
      // Predicated region
      $region21: #{tpu_custom_call.1} parent=11 // pred_check
        %p168 = pneg %p100
      $region22: #{tpu_custom_call.1} parent=11 // pred_check_branch
        %170 = sbr.rel (%p168) target = $region24
      $region23: #{tpu_custom_call.1} parent=11 // pred_region
        _
      $region24: #{tpu_custom_call.1} parent=11 // pred_fallthru
        _
      // Predicated region
      $region25: #{tpu_custom_call.1} parent=11 // pred_check
        %p171 = pneg %p121
      $region26: #{tpu_custom_call.1} parent=11 // pred_check_branch
        %173 = sbr.rel (%p171) target = $region28
      $region27: #{tpu_custom_call.1} parent=11 // pred_region
        _
      $region28: #{tpu_custom_call.1} parent=11 // pred_fallthru
        _
    $region12: #{tpu_custom_call.1} parent=5 // pred_fallthru
      _
    %p174 = scmp.lt.s32.totalorder %s11, 2
    // Predicated region
    $region29: #{tpu_custom_call.1} parent=5 // pred_check
      %p175 = pneg %p174
    $region30: #{tpu_custom_call.1} parent=5 // pred_check_branch
      %177 = sbr.rel (%p175) target = $region32
    $region31: #{tpu_custom_call.1} parent=5 // pred_region
      // Predicated region
      $region33: #{tpu_custom_call.1} parent=31 // pred_check
        %p178 = pneg %p31
      $region34: #{tpu_custom_call.1} parent=31 // pred_check_branch
        %180 = sbr.rel (%p178) target = $region36
      $region35: #{tpu_custom_call.1} parent=31 // pred_region
        %s181 = smul.u32 32, %s11
        %p182 = scmp.lt.s32.totalorder %s181, 63
        %s183 = scalar_select %p182, %s181, 63
        %s184 = smul.addr %s183, 8
        %s185 = scalar_lea.vmem %s0, %s184
        %s186 = smul.u32 32, %s11
      $region36: #{tpu_custom_call.1} parent=31 // pred_fallthru
        _
    $region32: #{tpu_custom_call.1} parent=5 // pred_fallthru
      _
    %p187 = scmp.le.s32.totalorder 1, %s11
    %p188 = scmp.lt.s32.totalorder %s11, 3
    %p189 = pnand %p187, %p188
    %p190 = pneg %p189
    // Predicated region
    $region37: #{tpu_custom_call.1} parent=5 // pred_check
      _
    $region38: #{tpu_custom_call.1} parent=5 // pred_check_branch
      %192 = sbr.rel (%p189) target = $region40
    $region39: #{tpu_custom_call.1} parent=5 // pred_region
      %s193 = ssub.s32 %s11, 1
      %s194 = smul.u32 32, %s16
      %p195 = scmp.lt.s32.totalorder %s194, 63
      %s196 = scalar_select %p195, %s194, 63
      %s197 = smul.addr %s196, 8
      %s198 = scalar_lea.vmem %s0, %s197
      %p199 = pneg %p37
      %p200 = pneg %p34
      %p201 = pneg %p58
      %p202 = pneg %p55
      %p203 = pneg %p79
      %p204 = pneg %p76
      %p205 = pneg %p100
      %p206 = pneg %p97
      %p207 = pneg %p121
      %p208 = pneg %p118
      %p209 = pneg %p147
      %p210 = pneg %p144
      %s211 = smul.u32 32, %s16
      %p212 = scmp.lt.s32.totalorder %s211, 63
      %s213 = scalar_select %p212, %s211, 63
      %s214 = smul.addr %s213, 8
      %s215 = scalar_lea.vmem %s5, %s214
      %s216 = smul.u32 32, %s16
      %p217 = scmp.lt.s32.totalorder %s216, 63
      %s218 = scalar_select %p217, %s216, 63
      %s219 = smul.addr %s218, 8
      %s220 = scalar_lea.vmem %s0, %s219
      %s221 = smul.u32 32, %s16
      %s222 = smul.u32 32, %s16
      %p223 = scmp.lt.s32.totalorder %s222, 63
      %s224 = scalar_select %p223, %s222, 63
      %s225 = smul.addr %s224, 8
      %s226 = scalar_lea.vmem %s5, %s225
      %s227 = smul.u32 32, %s16
      %v228 = vld [vmem:[%s220] sm:$0xff]
      %v229 = vld [vmem:[%s220 + $0x8] sm:$0xff]
      %v230 = vld [vmem:[%s220 + $0x10] sm:$0xff]
      %v231 = vld [vmem:[%s220 + $0x18] sm:$0xff]
      %v232 = vld [vmem:[%s220 + $0x20] sm:$0xff]
      %v233 = vld [vmem:[%s220 + $0x28] sm:$0xff]
      %v234 = vld [vmem:[%s220 + $0x30] sm:$0xff]
      %v235 = vld [vmem:[%s220 + $0x38] sm:$0xff]
      %v236 = vld [vmem:[%s220 + $0x40] sm:$0xff]
      %v237 = vld [vmem:[%s220 + $0x48] sm:$0xff]
      %v238 = vld [vmem:[%s220 + $0x50] sm:$0xff]
      %v239 = vld [vmem:[%s220 + $0x58] sm:$0xff]
      %v240 = vld [vmem:[%s220 + $0x60] sm:$0xff]
      %v241 = vld [vmem:[%s220 + $0x68] sm:$0xff]
      %v242 = vld [vmem:[%s220 + $0x70] sm:$0xff]
      %v243 = vld [vmem:[%s220 + $0x78] sm:$0xff]
      %v244 = vld [vmem:[%s220 + $0x80] sm:$0xff]
      %v245 = vld [vmem:[%s220 + $0x88] sm:$0xff]
      %v246 = vld [vmem:[%s220 + $0x90] sm:$0xff]
      %v247 = vld [vmem:[%s220 + $0x98] sm:$0xff]
      %v248 = vld [vmem:[%s220 + $0xa0] sm:$0xff]
      %v249 = vld [vmem:[%s220 + $0xa8] sm:$0xff]
      %v250 = vld [vmem:[%s220 + $0xb0] sm:$0xff]
      %v251 = vld [vmem:[%s220 + $0xb8] sm:$0xff]
      %v252 = vld [vmem:[%s220 + $0xc0] sm:$0xff]
      %v253 = vld [vmem:[%s220 + $0xc8] sm:$0xff]
      %v254 = vld [vmem:[%s220 + $0xd0] sm:$0xff]
      %v255 = vld [vmem:[%s220 + $0xd8] sm:$0xff]
      %v256 = vld [vmem:[%s220 + $0xe0] sm:$0xff]
      %v257 = vld [vmem:[%s220 + $0xe8] sm:$0xff]
      %v258 = vld [vmem:[%s220 + $0xf0] sm:$0xff]
      %v259 = vld [vmem:[%s220 + $0xf8] sm:$0xff]
      %v260 = vld [vmem:[%s1] sm:$0xff]
      %v261 = vld [vmem:[%s1 + $0x8] sm:$0xff]
      %v262 = vld [vmem:[%s1 + $0x10] sm:$0xff]
      %v263 = vld [vmem:[%s1 + $0x18] sm:$0xff]
      %v264 = vld [vmem:[%s2] sm:$0x1]
      %v266 = vlaneseq
      %v267 = vshrl.u32 %v266, 7
      %v268 = vsub.s32 0, %v267
      %v269 = vrot.slane %v264, %v268
      %vm271 = vcmask 261120
      %v273 = vsel %vm271, %v228, 0
      %v276 = vsel %vm271, %v229, 0
      %v279 = vsel %vm271, %v230, 0
      %v282 = vsel %vm271, %v231, 0
      %v285 = vsel %vm271, %v232, 0
      %v288 = vsel %vm271, %v233, 0
      %v291 = vsel %vm271, %v234, 0
      %v294 = vsel %vm271, %v235, 0
      %v297 = vsel %vm271, %v236, 0
      %v300 = vsel %vm271, %v237, 0
      %v303 = vsel %vm271, %v238, 0
      %v306 = vsel %vm271, %v239, 0
      %v309 = vsel %vm271, %v240, 0
      %v312 = vsel %vm271, %v241, 0
      %v315 = vsel %vm271, %v242, 0
      %v318 = vsel %vm271, %v243, 0
      %v321 = vsel %vm271, %v244, 0
      %v324 = vsel %vm271, %v245, 0
      %v327 = vsel %vm271, %v246, 0
      %v330 = vsel %vm271, %v247, 0
      %v333 = vsel %vm271, %v248, 0
      %v336 = vsel %vm271, %v249, 0
      %v339 = vsel %vm271, %v250, 0
      %v342 = vsel %vm271, %v251, 0
      %v345 = vsel %vm271, %v252, 0
      %v348 = vsel %vm271, %v253, 0
      %v351 = vsel %vm271, %v254, 0
      %v354 = vsel %vm271, %v255, 0
      %v357 = vsel %vm271, %v256, 0
      %v360 = vsel %vm271, %v257, 0
      %v363 = vsel %vm271, %v258, 0
      %v366 = vsel %vm271, %v259, 0
      %368 = vmatprep.subr.mxu0 0.0
      %369 = vmatpush1.msra.mxu0 0.0
      %370 = vmatprep.subr.mxu0 0.0
      %371 = vmatpush1.msra.mxu0 0.0
      %372 = vmatprep.subr.mxu0 0.0
      %373 = vmatpush1.msra.mxu0 0.0
      %374 = vmatprep.subr.mxu0 0.0
      %375 = vmatpush1.msra.mxu0 0.0
      %376 = vmatprep.subr.mxu0 0.0
      %377 = vmatpush1.msra.mxu0 0.0
      %378 = vmatprep.subr.mxu0 0.0
      %379 = vmatpush1.msra.mxu0 0.0
      %380 = vmatprep.subr.mxu0 0.0
      %381 = vmatpush1.msra.mxu0 0.0
      %382 = vmatprep.subr.mxu0 0.0
      %383 = vmatpush1.msra.mxu0 0.0
      %384 = vmatprep.subr.mxu0 0.0
      %385 = vmatpush1.msra.mxu0 0.0
      %386 = vmatprep.subr.mxu0 0.0
      %387 = vmatpush1.msra.mxu0 0.0
      %388 = vmatprep.subr.mxu0 0.0
      %389 = vmatpush1.msra.mxu0 0.0
      %390 = vmatprep.subr.mxu0 0.0
      %391 = vmatpush1.msra.mxu0 0.0
      %392 = vmatprep.subr.mxu0 0.0
      %393 = vmatpush1.msra.mxu0 %v263
      %394 = vmatprep.subr.mxu0 0.0
      %395 = vmatpush1.msra.mxu0 %v262
      %396 = vmatprep.subr.mxu0 0.0
      %397 = vmatpush1.msra.mxu0 %v261
      %398 = vmatprep.subr.mxu0 0.0
      %399 = vmatpush1.msra.mxu0 %v260
      %400 = vmatprep.subr.mxu0 0.0
      %401 = vmatpush2.msra.mxu0 0.0
      %402 = vmatprep.subr.mxu0 0.0
      %403 = vmatpush2.msra.mxu0 0.0
      %404 = vmatprep.subr.mxu0 0.0
      %405 = vmatpush2.msra.mxu0 0.0
      %406 = vmatprep.subr.mxu0 0.0
      %407 = vmatpush2.msra.mxu0 0.0
      %408 = vmatprep.subr.mxu0 0.0
      %409 = vmatpush2.msra.mxu0 0.0
      %410 = vmatprep.subr.mxu0 0.0
      %411 = vmatpush2.msra.mxu0 0.0
      %412 = vmatprep.subr.mxu0 0.0
      %413 = vmatpush2.msra.mxu0 0.0
      %414 = vmatprep.subr.mxu0 0.0
      %415 = vmatpush2.msra.mxu0 0.0
      %416 = vmatprep.subr.mxu0 0.0
      %417 = vmatpush2.msra.mxu0 0.0
      %418 = vmatprep.subr.mxu0 0.0
      %419 = vmatpush2.msra.mxu0 0.0
      %420 = vmatprep.subr.mxu0 0.0
      %421 = vmatpush2.msra.mxu0 0.0
      %422 = vmatprep.subr.mxu0 0.0
      %423 = vmatpush2.msra.mxu0 0.0
      %424 = vmatprep.subr.mxu0 0.0
      %425 = vmatpush2.msra.mxu0 0.0
      %426 = vmatprep.subr.mxu0 0.0
      %427 = vmatpush2.msra.mxu0 0.0
      %428 = vmatprep.subr.mxu0 0.0
      %429 = vmatpush2.msra.mxu0 0.0
      %430 = vmatprep.subr.mxu0 0.0
      %431 = vmatpush2.msra.mxu0 0.0
      %432 = vmatprep.mubr.f32.mxu0 0.0
      %433 = vmatmul.mubr.f32.gmra.mxu0 %v273
      %v434 = vpop.f32.mrf.mxu0
      %v435 = vadd.f32 %v269, %v434
      %v436 = vpop.f32.mrf.mxu0
      %437 = vmatprep.mubr.f32.mxu0 0.0
      %438 = vmatmul.mubr.f32.gmra.mxu0 %v276
      %v439 = vpop.f32.mrf.mxu0
      %v440 = vadd.f32 %v269, %v439
      %v441 = vpop.f32.mrf.mxu0
      %442 = vmatprep.mubr.f32.mxu0 0.0
      %443 = vmatmul.mubr.f32.gmra.mxu0 %v279
      %v444 = vpop.f32.mrf.mxu0
      %v445 = vadd.f32 %v269, %v444
      %v446 = vpop.f32.mrf.mxu0
      %447 = vmatprep.mubr.f32.mxu0 0.0
      %448 = vmatmul.mubr.f32.gmra.mxu0 %v282
      %v449 = vpop.f32.mrf.mxu0
      %v450 = vadd.f32 %v269, %v449
      %v451 = vpop.f32.mrf.mxu0
      %452 = vmatprep.mubr.f32.mxu0 0.0
      %453 = vmatmul.mubr.f32.gmra.mxu0 %v285
      %v454 = vpop.f32.mrf.mxu0
      %v455 = vadd.f32 %v269, %v454
      %v456 = vpop.f32.mrf.mxu0
      %457 = vmatprep.mubr.f32.mxu0 0.0
      %458 = vmatmul.mubr.f32.gmra.mxu0 %v288
      %v459 = vpop.f32.mrf.mxu0
      %v460 = vadd.f32 %v269, %v459
      %v461 = vpop.f32.mrf.mxu0
      %462 = vmatprep.mubr.f32.mxu0 0.0
      %463 = vmatmul.mubr.f32.gmra.mxu0 %v291
      %v464 = vpop.f32.mrf.mxu0
      %v465 = vadd.f32 %v269, %v464
      %v466 = vpop.f32.mrf.mxu0
      %467 = vmatprep.mubr.f32.mxu0 0.0
      %468 = vmatmul.mubr.f32.gmra.mxu0 %v294
      %v469 = vpop.f32.mrf.mxu0
      %v470 = vadd.f32 %v269, %v469
      %v471 = vpop.f32.mrf.mxu0
      %472 = vmatprep.mubr.f32.mxu0 0.0
      %473 = vmatmul.mubr.f32.gmra.mxu0 %v297
      %v474 = vpop.f32.mrf.mxu0
      %v475 = vadd.f32 %v269, %v474
      %v476 = vpop.f32.mrf.mxu0
      %477 = vmatprep.mubr.f32.mxu0 0.0
      %478 = vmatmul.mubr.f32.gmra.mxu0 %v300
      %v479 = vpop.f32.mrf.mxu0
      %v480 = vadd.f32 %v269, %v479
      %v481 = vpop.f32.mrf.mxu0
      %482 = vmatprep.mubr.f32.mxu0 0.0
      %483 = vmatmul.mubr.f32.gmra.mxu0 %v303
      %v484 = vpop.f32.mrf.mxu0
      %v485 = vadd.f32 %v269, %v484
      %v486 = vpop.f32.mrf.mxu0
      %487 = vmatprep.mubr.f32.mxu0 0.0
      %488 = vmatmul.mubr.f32.gmra.mxu0 %v306
      %v489 = vpop.f32.mrf.mxu0
      %v490 = vadd.f32 %v269, %v489
      %v491 = vpop.f32.mrf.mxu0
      %492 = vmatprep.mubr.f32.mxu0 0.0
      %493 = vmatmul.mubr.f32.gmra.mxu0 %v309
      %v494 = vpop.f32.mrf.mxu0
      %v495 = vadd.f32 %v269, %v494
      %v496 = vpop.f32.mrf.mxu0
      %497 = vmatprep.mubr.f32.mxu0 0.0
      %498 = vmatmul.mubr.f32.gmra.mxu0 %v312
      %v499 = vpop.f32.mrf.mxu0
      %v500 = vadd.f32 %v269, %v499
      %v501 = vpop.f32.mrf.mxu0
      %502 = vmatprep.mubr.f32.mxu0 0.0
      %503 = vmatmul.mubr.f32.gmra.mxu0 %v315
      %v504 = vpop.f32.mrf.mxu0
      %v505 = vadd.f32 %v269, %v504
      %v506 = vpop.f32.mrf.mxu0
      %507 = vmatprep.mubr.f32.mxu0 0.0
      %508 = vmatmul.mubr.f32.gmra.mxu0 %v318
      %v509 = vpop.f32.mrf.mxu0
      %v510 = vadd.f32 %v269, %v509
      %v511 = vpop.f32.mrf.mxu0
      %512 = vmatprep.mubr.f32.mxu0 0.0
      %513 = vmatmul.mubr.f32.gmra.mxu0 %v321
      %v514 = vpop.f32.mrf.mxu0
      %v515 = vadd.f32 %v269, %v514
      %v516 = vpop.f32.mrf.mxu0
      %517 = vmatprep.mubr.f32.mxu0 0.0
      %518 = vmatmul.mubr.f32.gmra.mxu0 %v324
      %v519 = vpop.f32.mrf.mxu0
      %v520 = vadd.f32 %v269, %v519
      %v521 = vpop.f32.mrf.mxu0
      %522 = vmatprep.mubr.f32.mxu0 0.0
      %523 = vmatmul.mubr.f32.gmra.mxu0 %v327
      %v524 = vpop.f32.mrf.mxu0
      %v525 = vadd.f32 %v269, %v524
      %v526 = vpop.f32.mrf.mxu0
      %527 = vmatprep.mubr.f32.mxu0 0.0
      %528 = vmatmul.mubr.f32.gmra.mxu0 %v330
      %v529 = vpop.f32.mrf.mxu0
      %v530 = vadd.f32 %v269, %v529
      %v531 = vpop.f32.mrf.mxu0
      %532 = vmatprep.mubr.f32.mxu0 0.0
      %533 = vmatmul.mubr.f32.gmra.mxu0 %v333
      %v534 = vpop.f32.mrf.mxu0
      %v535 = vadd.f32 %v269, %v534
      %v536 = vpop.f32.mrf.mxu0
      %537 = vmatprep.mubr.f32.mxu0 0.0
      %538 = vmatmul.mubr.f32.gmra.mxu0 %v336
      %v539 = vpop.f32.mrf.mxu0
      %v540 = vadd.f32 %v269, %v539
      %v541 = vpop.f32.mrf.mxu0
      %542 = vmatprep.mubr.f32.mxu0 0.0
      %543 = vmatmul.mubr.f32.gmra.mxu0 %v339
      %v544 = vpop.f32.mrf.mxu0
      %v545 = vadd.f32 %v269, %v544
      %v546 = vpop.f32.mrf.mxu0
      %547 = vmatprep.mubr.f32.mxu0 0.0
      %548 = vmatmul.mubr.f32.gmra.mxu0 %v342
      %v549 = vpop.f32.mrf.mxu0
      %v550 = vadd.f32 %v269, %v549
      %v551 = vpop.f32.mrf.mxu0
      %552 = vmatprep.mubr.f32.mxu0 0.0
      %553 = vmatmul.mubr.f32.gmra.mxu0 %v345
      %v554 = vpop.f32.mrf.mxu0
      %v555 = vadd.f32 %v269, %v554
      %v556 = vpop.f32.mrf.mxu0
      %557 = vmatprep.mubr.f32.mxu0 0.0
      %558 = vmatmul.mubr.f32.gmra.mxu0 %v348
      %v559 = vpop.f32.mrf.mxu0
      %v560 = vadd.f32 %v269, %v559
      %v561 = vpop.f32.mrf.mxu0
      %562 = vmatprep.mubr.f32.mxu0 0.0
      %563 = vmatmul.mubr.f32.gmra.mxu0 %v351
      %v564 = vpop.f32.mrf.mxu0
      %v565 = vadd.f32 %v269, %v564
      %v566 = vpop.f32.mrf.mxu0
      %567 = vmatprep.mubr.f32.mxu0 0.0
      %568 = vmatmul.mubr.f32.gmra.mxu0 %v354
      %v569 = vpop.f32.mrf.mxu0
      %v570 = vadd.f32 %v269, %v569
      %v571 = vpop.f32.mrf.mxu0
      %572 = vmatprep.mubr.f32.mxu0 0.0
      %573 = vmatmul.mubr.f32.gmra.mxu0 %v357
      %v574 = vpop.f32.mrf.mxu0
      %v575 = vadd.f32 %v269, %v574
      %v576 = vpop.f32.mrf.mxu0
      %577 = vmatprep.mubr.f32.mxu0 0.0
      %578 = vmatmul.mubr.f32.gmra.mxu0 %v360
      %v579 = vpop.f32.mrf.mxu0
      %v580 = vadd.f32 %v269, %v579
      %v581 = vpop.f32.mrf.mxu0
      %582 = vmatprep.mubr.f32.mxu0 0.0
      %583 = vmatmul.mubr.f32.gmra.mxu0 %v363
      %v584 = vpop.f32.mrf.mxu0
      %v585 = vadd.f32 %v269, %v584
      %v586 = vpop.f32.mrf.mxu0
      %587 = vmatprep.mubr.f32.mxu0 0.0
      %588 = vmatmul.mubr.f32.gmra.mxu0 %v366
      %v589 = vpop.f32.mrf.mxu0
      %v590 = vadd.f32 %v269, %v589
      %v591 = vpop.f32.mrf.mxu0
      %592 = vdwg.mxu0
      %v593 = vld [vmem:[%s3] sm:$0xff]
      %v594 = vld [vmem:[%s3 + $0x8] sm:$0xff]
      %v595 = vld [vmem:[%s3 + $0x10] sm:$0xff]
      %v596 = vld [vmem:[%s3 + $0x18] sm:$0xff]
      %v597 = vld [vmem:[%s3 + $0x20] sm:$0xff]
      %v598 = vld [vmem:[%s3 + $0x28] sm:$0xff]
      %v599 = vld [vmem:[%s3 + $0x30] sm:$0xff]
      %v600 = vld [vmem:[%s3 + $0x38] sm:$0xff]
      %v601 = vld [vmem:[%s3 + $0x40] sm:$0xff]
      %v602 = vld [vmem:[%s3 + $0x48] sm:$0xff]
      %v603 = vld [vmem:[%s3 + $0x50] sm:$0xff]
      %v604 = vld [vmem:[%s3 + $0x58] sm:$0xff]
      %v605 = vld [vmem:[%s3 + $0x60] sm:$0xff]
      %v606 = vld [vmem:[%s3 + $0x68] sm:$0xff]
      %v607 = vld [vmem:[%s3 + $0x70] sm:$0xff]
      %v608 = vld [vmem:[%s3 + $0x78] sm:$0xff]
      %625 = vrot.lane.b32.xlu0 %v593, 32
      %v626 = vpop.permute.xlu0 %625
      %627 = vrot.lane.b32.xlu0 %v594, 32
      %v628 = vpop.permute.xlu0 %627
      %629 = vrot.lane.b32.xlu0 %v595, 32
      %v630 = vpop.permute.xlu0 %629
      %631 = vrot.lane.b32.xlu0 %v596, 32
      %v632 = vpop.permute.xlu0 %631
      %633 = vrot.lane.b32.xlu0 %v597, 32
      %v634 = vpop.permute.xlu0 %633
      %635 = vrot.lane.b32.xlu0 %v598, 32
      %v636 = vpop.permute.xlu0 %635
      %637 = vrot.lane.b32.xlu0 %v599, 32
      %v638 = vpop.permute.xlu0 %637
      %639 = vrot.lane.b32.xlu0 %v600, 32
      %v640 = vpop.permute.xlu0 %639
      %641 = vrot.lane.b32.xlu0 %v601, 32
      %v642 = vpop.permute.xlu0 %641
      %643 = vrot.lane.b32.xlu0 %v602, 32
      %v644 = vpop.permute.xlu0 %643
      %645 = vrot.lane.b32.xlu0 %v603, 32
      %v646 = vpop.permute.xlu0 %645
      %647 = vrot.lane.b32.xlu0 %v604, 32
      %v648 = vpop.permute.xlu0 %647
      %649 = vrot.lane.b32.xlu0 %v605, 32
      %v650 = vpop.permute.xlu0 %649
      %651 = vrot.lane.b32.xlu0 %v606, 32
      %v652 = vpop.permute.xlu0 %651
      %653 = vrot.lane.b32.xlu0 %v607, 32
      %v654 = vpop.permute.xlu0 %653
      %655 = vrot.lane.b32.xlu0 %v608, 32
      %v656 = vpop.permute.xlu0 %655
      %v673 = vmul.f32 %v435, %v626
      %v674 = vmul.f32 %v440, %v628
      %v675 = vmul.f32 %v445, %v630
      %v676 = vmul.f32 %v450, %v632
      %v677 = vmul.f32 %v435, %v634
      %v678 = vmul.f32 %v440, %v636
      %v679 = vmul.f32 %v445, %v638
      %v680 = vmul.f32 %v450, %v640
      %v681 = vmul.f32 %v435, %v642
      %v682 = vmul.f32 %v440, %v644
      %v683 = vmul.f32 %v445, %v646
      %v684 = vmul.f32 %v450, %v648
      %v685 = vmul.f32 %v435, %v650
      %v686 = vmul.f32 %v440, %v652
      %v687 = vmul.f32 %v445, %v654
      %v688 = vmul.f32 %v450, %v656
      %v689 = vmul.f32 %v455, %v626
      %v690 = vmul.f32 %v460, %v628
      %v691 = vmul.f32 %v465, %v630
      %v692 = vmul.f32 %v470, %v632
      %v693 = vmul.f32 %v455, %v634
      %v694 = vmul.f32 %v460, %v636
      %v695 = vmul.f32 %v465, %v638
      %v696 = vmul.f32 %v470, %v640
      %v697 = vmul.f32 %v455, %v642
      %v698 = vmul.f32 %v460, %v644
      %v699 = vmul.f32 %v465, %v646
      %v700 = vmul.f32 %v470, %v648
      %v701 = vmul.f32 %v455, %v650
      %v702 = vmul.f32 %v460, %v652
      %v703 = vmul.f32 %v465, %v654
      %v704 = vmul.f32 %v470, %v656
      %v705 = vmul.f32 %v475, %v626
      %v706 = vmul.f32 %v480, %v628
      %v707 = vmul.f32 %v485, %v630
      %v708 = vmul.f32 %v490, %v632
      %v709 = vmul.f32 %v475, %v634
      %v710 = vmul.f32 %v480, %v636
      %v711 = vmul.f32 %v485, %v638
      %v712 = vmul.f32 %v490, %v640
      %v713 = vmul.f32 %v475, %v642
      %v714 = vmul.f32 %v480, %v644
      %v715 = vmul.f32 %v485, %v646
      %v716 = vmul.f32 %v490, %v648
      %v717 = vmul.f32 %v475, %v650
      %v718 = vmul.f32 %v480, %v652
      %v719 = vmul.f32 %v485, %v654
      %v720 = vmul.f32 %v490, %v656
      %v721 = vmul.f32 %v495, %v626
      %v722 = vmul.f32 %v500, %v628
      %v723 = vmul.f32 %v505, %v630
      %v724 = vmul.f32 %v510, %v632
      %v725 = vmul.f32 %v495, %v634
      %v726 = vmul.f32 %v500, %v636
      %v727 = vmul.f32 %v505, %v638
      %v728 = vmul.f32 %v510, %v640
      %v729 = vmul.f32 %v495, %v642
      %v730 = vmul.f32 %v500, %v644
      %v731 = vmul.f32 %v505, %v646
      %v732 = vmul.f32 %v510, %v648
      %v733 = vmul.f32 %v495, %v650
      %v734 = vmul.f32 %v500, %v652
      %v735 = vmul.f32 %v505, %v654
      %v736 = vmul.f32 %v510, %v656
      %v737 = vmul.f32 %v515, %v626
      %v738 = vmul.f32 %v520, %v628
      %v739 = vmul.f32 %v525, %v630
      %v740 = vmul.f32 %v530, %v632
      %v741 = vmul.f32 %v515, %v634
      %v742 = vmul.f32 %v520, %v636
      %v743 = vmul.f32 %v525, %v638
      %v744 = vmul.f32 %v530, %v640
      %v745 = vmul.f32 %v515, %v642
      %v746 = vmul.f32 %v520, %v644
      %v747 = vmul.f32 %v525, %v646
      %v748 = vmul.f32 %v530, %v648
      %v749 = vmul.f32 %v515, %v650
      %v750 = vmul.f32 %v520, %v652
      %v751 = vmul.f32 %v525, %v654
      %v752 = vmul.f32 %v530, %v656
      %v753 = vmul.f32 %v535, %v626
      %v754 = vmul.f32 %v540, %v628
      %v755 = vmul.f32 %v545, %v630
      %v756 = vmul.f32 %v550, %v632
      %v757 = vmul.f32 %v535, %v634
      %v758 = vmul.f32 %v540, %v636
      %v759 = vmul.f32 %v545, %v638
      %v760 = vmul.f32 %v550, %v640
      %v761 = vmul.f32 %v535, %v642
      %v762 = vmul.f32 %v540, %v644
      %v763 = vmul.f32 %v545, %v646
      %v764 = vmul.f32 %v550, %v648
      %v765 = vmul.f32 %v535, %v650
      %v766 = vmul.f32 %v540, %v652
      %v767 = vmul.f32 %v545, %v654
      %v768 = vmul.f32 %v550, %v656
      %v769 = vmul.f32 %v555, %v626
      %v770 = vmul.f32 %v560, %v628
      %v771 = vmul.f32 %v565, %v630
      %v772 = vmul.f32 %v570, %v632
      %v773 = vmul.f32 %v555, %v634
      %v774 = vmul.f32 %v560, %v636
      %v775 = vmul.f32 %v565, %v638
      %v776 = vmul.f32 %v570, %v640
      %v777 = vmul.f32 %v555, %v642
      %v778 = vmul.f32 %v560, %v644
      %v779 = vmul.f32 %v565, %v646
      %v780 = vmul.f32 %v570, %v648
      %v781 = vmul.f32 %v555, %v650
      %v782 = vmul.f32 %v560, %v652
      %v783 = vmul.f32 %v565, %v654
      %v784 = vmul.f32 %v570, %v656
      %v785 = vmul.f32 %v575, %v626
      %v786 = vmul.f32 %v580, %v628
      %v787 = vmul.f32 %v585, %v630
      %v788 = vmul.f32 %v590, %v632
      %v789 = vmul.f32 %v575, %v634
      %v790 = vmul.f32 %v580, %v636
      %v791 = vmul.f32 %v585, %v638
      %v792 = vmul.f32 %v590, %v640
      %v793 = vmul.f32 %v575, %v642
      %v794 = vmul.f32 %v580, %v644
      %v795 = vmul.f32 %v585, %v646
      %v796 = vmul.f32 %v590, %v648
      %v797 = vmul.f32 %v575, %v650
      %v798 = vmul.f32 %v580, %v652
      %v799 = vmul.f32 %v585, %v654
      %v800 = vmul.f32 %v590, %v656
      %801 = vrot.lane.b32.xlu0 %v593, 64
      %v802 = vpop.permute.xlu0 %801
      %803 = vrot.lane.b32.xlu0 %v594, 64
      %v804 = vpop.permute.xlu0 %803
      %805 = vrot.lane.b32.xlu0 %v595, 64
      %v806 = vpop.permute.xlu0 %805
      %807 = vrot.lane.b32.xlu0 %v596, 64
      %v808 = vpop.permute.xlu0 %807
      %809 = vrot.lane.b32.xlu0 %v597, 64
      %v810 = vpop.permute.xlu0 %809
      %811 = vrot.lane.b32.xlu0 %v598, 64
      %v812 = vpop.permute.xlu0 %811
      %813 = vrot.lane.b32.xlu0 %v599, 64
      %v814 = vpop.permute.xlu0 %813
      %815 = vrot.lane.b32.xlu0 %v600, 64
      %v816 = vpop.permute.xlu0 %815
      %817 = vrot.lane.b32.xlu0 %v601, 64
      %v818 = vpop.permute.xlu0 %817
      %819 = vrot.lane.b32.xlu0 %v602, 64
      %v820 = vpop.permute.xlu0 %819
      %821 = vrot.lane.b32.xlu0 %v603, 64
      %v822 = vpop.permute.xlu0 %821
      %823 = vrot.lane.b32.xlu0 %v604, 64
      %v824 = vpop.permute.xlu0 %823
      %825 = vrot.lane.b32.xlu0 %v605, 64
      %v826 = vpop.permute.xlu0 %825
      %827 = vrot.lane.b32.xlu0 %v606, 64
      %v828 = vpop.permute.xlu0 %827
      %829 = vrot.lane.b32.xlu0 %v607, 64
      %v830 = vpop.permute.xlu0 %829
      %831 = vrot.lane.b32.xlu0 %v608, 64
      %v832 = vpop.permute.xlu0 %831
      %v849 = vmul.f32 %v435, %v802
      %v850 = vmul.f32 %v440, %v804
      %v851 = vmul.f32 %v445, %v806
      %v852 = vmul.f32 %v450, %v808
      %v853 = vmul.f32 %v435, %v810
      %v854 = vmul.f32 %v440, %v812
      %v855 = vmul.f32 %v445, %v814
      %v856 = vmul.f32 %v450, %v816
      %v857 = vmul.f32 %v435, %v818
      %v858 = vmul.f32 %v440, %v820
      %v859 = vmul.f32 %v445, %v822
      %v860 = vmul.f32 %v450, %v824
      %v861 = vmul.f32 %v435, %v826
      %v862 = vmul.f32 %v440, %v828
      %v863 = vmul.f32 %v445, %v830
      %v864 = vmul.f32 %v450, %v832
      %v865 = vmul.f32 %v455, %v802
      %v866 = vmul.f32 %v460, %v804
      %v867 = vmul.f32 %v465, %v806
      %v868 = vmul.f32 %v470, %v808
      %v869 = vmul.f32 %v455, %v810
      %v870 = vmul.f32 %v460, %v812
      %v871 = vmul.f32 %v465, %v814
      %v872 = vmul.f32 %v470, %v816
      %v873 = vmul.f32 %v455, %v818
      %v874 = vmul.f32 %v460, %v820
      %v875 = vmul.f32 %v465, %v822
      %v876 = vmul.f32 %v470, %v824
      %v877 = vmul.f32 %v455, %v826
      %v878 = vmul.f32 %v460, %v828
      %v879 = vmul.f32 %v465, %v830
      %v880 = vmul.f32 %v470, %v832
      %v881 = vmul.f32 %v475, %v802
      %v882 = vmul.f32 %v480, %v804
      %v883 = vmul.f32 %v485, %v806
      %v884 = vmul.f32 %v490, %v808
      %v885 = vmul.f32 %v475, %v810
      %v886 = vmul.f32 %v480, %v812
      %v887 = vmul.f32 %v485, %v814
      %v888 = vmul.f32 %v490, %v816
      %v889 = vmul.f32 %v475, %v818
      %v890 = vmul.f32 %v480, %v820
      %v891 = vmul.f32 %v485, %v822
      %v892 = vmul.f32 %v490, %v824
      %v893 = vmul.f32 %v475, %v826
      %v894 = vmul.f32 %v480, %v828
      %v895 = vmul.f32 %v485, %v830
      %v896 = vmul.f32 %v490, %v832
      %v897 = vmul.f32 %v495, %v802
      %v898 = vmul.f32 %v500, %v804
      %v899 = vmul.f32 %v505, %v806
      %v900 = vmul.f32 %v510, %v808
      %v901 = vmul.f32 %v495, %v810
      %v902 = vmul.f32 %v500, %v812
      %v903 = vmul.f32 %v505, %v814
      %v904 = vmul.f32 %v510, %v816
      %v905 = vmul.f32 %v495, %v818
      %v906 = vmul.f32 %v500, %v820
      %v907 = vmul.f32 %v505, %v822
      %v908 = vmul.f32 %v510, %v824
      %v909 = vmul.f32 %v495, %v826
      %v910 = vmul.f32 %v500, %v828
      %v911 = vmul.f32 %v505, %v830
      %v912 = vmul.f32 %v510, %v832
      %v913 = vmul.f32 %v515, %v802
      %v914 = vmul.f32 %v520, %v804
      %v915 = vmul.f32 %v525, %v806
      %v916 = vmul.f32 %v530, %v808
      %v917 = vmul.f32 %v515, %v810
      %v918 = vmul.f32 %v520, %v812
      %v919 = vmul.f32 %v525, %v814
      %v920 = vmul.f32 %v530, %v816
      %v921 = vmul.f32 %v515, %v818
      %v922 = vmul.f32 %v520, %v820
      %v923 = vmul.f32 %v525, %v822
      %v924 = vmul.f32 %v530, %v824
      %v925 = vmul.f32 %v515, %v826
      %v926 = vmul.f32 %v520, %v828
      %v927 = vmul.f32 %v525, %v830
      %v928 = vmul.f32 %v530, %v832
      %v929 = vmul.f32 %v535, %v802
      %v930 = vmul.f32 %v540, %v804
      %v931 = vmul.f32 %v545, %v806
      %v932 = vmul.f32 %v550, %v808
      %v933 = vmul.f32 %v535, %v810
      %v934 = vmul.f32 %v540, %v812
      %v935 = vmul.f32 %v545, %v814
      %v936 = vmul.f32 %v550, %v816
      %v937 = vmul.f32 %v535, %v818
      %v938 = vmul.f32 %v540, %v820
      %v939 = vmul.f32 %v545, %v822
      %v940 = vmul.f32 %v550, %v824
      %v941 = vmul.f32 %v535, %v826
      %v942 = vmul.f32 %v540, %v828
      %v943 = vmul.f32 %v545, %v830
      %v944 = vmul.f32 %v550, %v832
      %v945 = vmul.f32 %v555, %v802
      %v946 = vmul.f32 %v560, %v804
      %v947 = vmul.f32 %v565, %v806
      %v948 = vmul.f32 %v570, %v808
      %v949 = vmul.f32 %v555, %v810
      %v950 = vmul.f32 %v560, %v812
      %v951 = vmul.f32 %v565, %v814
      %v952 = vmul.f32 %v570, %v816
      %v953 = vmul.f32 %v555, %v818
      %v954 = vmul.f32 %v560, %v820
      %v955 = vmul.f32 %v565, %v822
      %v956 = vmul.f32 %v570, %v824
      %v957 = vmul.f32 %v555, %v826
      %v958 = vmul.f32 %v560, %v828
      %v959 = vmul.f32 %v565, %v830
      %v960 = vmul.f32 %v570, %v832
      %v961 = vmul.f32 %v575, %v802
      %v962 = vmul.f32 %v580, %v804
      %v963 = vmul.f32 %v585, %v806
      %v964 = vmul.f32 %v590, %v808
      %v965 = vmul.f32 %v575, %v810
      %v966 = vmul.f32 %v580, %v812
      %v967 = vmul.f32 %v585, %v814
      %v968 = vmul.f32 %v590, %v816
      %v969 = vmul.f32 %v575, %v818
      %v970 = vmul.f32 %v580, %v820
      %v971 = vmul.f32 %v585, %v822
      %v972 = vmul.f32 %v590, %v824
      %v973 = vmul.f32 %v575, %v826
      %v974 = vmul.f32 %v580, %v828
      %v975 = vmul.f32 %v585, %v830
      %v976 = vmul.f32 %v590, %v832
      %993 = vrot.lane.b32.xlu0 %v673, 96
      %v994 = vpop.permute.xlu0 %993
      %995 = vrot.lane.b32.xlu0 %v674, 96
      %v996 = vpop.permute.xlu0 %995
      %997 = vrot.lane.b32.xlu0 %v675, 96
      %v998 = vpop.permute.xlu0 %997
      %999 = vrot.lane.b32.xlu0 %v676, 96
      %v1000 = vpop.permute.xlu0 %999
      %1001 = vrot.lane.b32.xlu0 %v677, 96
      %v1002 = vpop.permute.xlu0 %1001
      %1003 = vrot.lane.b32.xlu0 %v678, 96
      %v1004 = vpop.permute.xlu0 %1003
      %1005 = vrot.lane.b32.xlu0 %v679, 96
      %v1006 = vpop.permute.xlu0 %1005
      %1007 = vrot.lane.b32.xlu0 %v680, 96
      %v1008 = vpop.permute.xlu0 %1007
      %1009 = vrot.lane.b32.xlu0 %v681, 96
      %v1010 = vpop.permute.xlu0 %1009
      %1011 = vrot.lane.b32.xlu0 %v682, 96
      %v1012 = vpop.permute.xlu0 %1011
      %1013 = vrot.lane.b32.xlu0 %v683, 96
      %v1014 = vpop.permute.xlu0 %1013
      %1015 = vrot.lane.b32.xlu0 %v684, 96
      %v1016 = vpop.permute.xlu0 %1015
      %1017 = vrot.lane.b32.xlu0 %v685, 96
      %v1018 = vpop.permute.xlu0 %1017
      %1019 = vrot.lane.b32.xlu0 %v686, 96
      %v1020 = vpop.permute.xlu0 %1019
      %1021 = vrot.lane.b32.xlu0 %v687, 96
      %v1022 = vpop.permute.xlu0 %1021
      %1023 = vrot.lane.b32.xlu0 %v688, 96
      %v1024 = vpop.permute.xlu0 %1023
      %v1026 = vsel %vm271, %v435, 0
      %v1029 = vsel %vm271, %v440, 0
      %v1032 = vsel %vm271, %v445, 0
      %v1035 = vsel %vm271, %v450, 0
      %v1037 = vsel %vm271, %v994, 0
      %v1039 = vsel %vm271, %v996, 0
      %v1041 = vsel %vm271, %v998, 0
      %v1043 = vsel %vm271, %v1000, 0
      %v1045 = vsel %vm271, %v1002, 0
      %v1047 = vsel %vm271, %v1004, 0
      %v1049 = vsel %vm271, %v1006, 0
      %v1051 = vsel %vm271, %v1008, 0
      %v1053 = vsel %vm271, %v1010, 0
      %v1055 = vsel %vm271, %v1012, 0
      %v1057 = vsel %vm271, %v1014, 0
      %v1059 = vsel %vm271, %v1016, 0
      %v1061 = vsel %vm271, %v1018, 0
      %v1063 = vsel %vm271, %v1020, 0
      %v1065 = vsel %vm271, %v1022, 0
      %v1067 = vsel %vm271, %v1024, 0
      %1069 = vmatprep.subr.mxu0 0.0
      %1070 = vmatpush1.xpose.msra.mxu0 %v1067
      %1071 = vmatprep.subr.mxu0 0.0
      %1072 = vmatpush1.xpose.msra.mxu0 %v1065
      %1073 = vmatprep.subr.mxu0 0.0
      %1074 = vmatpush1.xpose.msra.mxu0 %v1063
      %1075 = vmatprep.subr.mxu0 0.0
      %1076 = vmatpush1.xpose.msra.mxu0 %v1061
      %1077 = vmatprep.subr.mxu0 0.0
      %1078 = vmatpush1.xpose.msra.mxu0 %v1059
      %1079 = vmatprep.subr.mxu0 0.0
      %1080 = vmatpush1.xpose.msra.mxu0 %v1057
      %1081 = vmatprep.subr.mxu0 0.0
      %1082 = vmatpush1.xpose.msra.mxu0 %v1055
      %1083 = vmatprep.subr.mxu0 0.0
      %1084 = vmatpush1.xpose.msra.mxu0 %v1053
      %1085 = vmatprep.subr.mxu0 0.0
      %1086 = vmatpush1.xpose.msra.mxu0 %v1051
      %1087 = vmatprep.subr.mxu0 0.0
      %1088 = vmatpush1.xpose.msra.mxu0 %v1049
      %1089 = vmatprep.subr.mxu0 0.0
      %1090 = vmatpush1.xpose.msra.mxu0 %v1047
      %1091 = vmatprep.subr.mxu0 0.0
      %1092 = vmatpush1.xpose.msra.mxu0 %v1045
      %1093 = vmatprep.subr.mxu0 0.0
      %1094 = vmatpush1.xpose.msra.mxu0 %v1043
      %1095 = vmatprep.subr.mxu0 0.0
      %1096 = vmatpush1.xpose.msra.mxu0 %v1041
      %1097 = vmatprep.subr.mxu0 0.0
      %1098 = vmatpush1.xpose.msra.mxu0 %v1039
      %1099 = vmatprep.subr.mxu0 0.0
      %1100 = vmatpush1.xpose.msra.mxu0 %v1037
      %1101 = vmatprep.subr.mxu0 0.0
      %1102 = vmatpush2.xpose.msra.mxu0 0.0
      %1103 = vmatprep.subr.mxu0 0.0
      %1104 = vmatpush2.xpose.msra.mxu0 0.0
      %1105 = vmatprep.subr.mxu0 0.0
      %1106 = vmatpush2.xpose.msra.mxu0 0.0
      %1107 = vmatprep.subr.mxu0 0.0
      %1108 = vmatpush2.xpose.msra.mxu0 0.0
      %1109 = vmatprep.subr.mxu0 0.0
      %1110 = vmatpush2.xpose.msra.mxu0 0.0
      %1111 = vmatprep.subr.mxu0 0.0
      %1112 = vmatpush2.xpose.msra.mxu0 0.0
      %1113 = vmatprep.subr.mxu0 0.0
      %1114 = vmatpush2.xpose.msra.mxu0 0.0
      %1115 = vmatprep.subr.mxu0 0.0
      %1116 = vmatpush2.xpose.msra.mxu0 0.0
      %1117 = vmatprep.subr.mxu0 0.0
      %1118 = vmatpush2.xpose.msra.mxu0 0.0
      %1119 = vmatprep.subr.mxu0 0.0
      %1120 = vmatpush2.xpose.msra.mxu0 0.0
      %1121 = vmatprep.subr.mxu0 0.0
      %1122 = vmatpush2.xpose.msra.mxu0 0.0
      %1123 = vmatprep.subr.mxu0 0.0
      %1124 = vmatpush2.xpose.msra.mxu0 0.0
      %1125 = vmatprep.subr.mxu0 0.0
      %1126 = vmatpush2.xpose.msra.mxu0 0.0
      %1127 = vmatprep.subr.mxu0 0.0
      %1128 = vmatpush2.xpose.msra.mxu0 0.0
      %1129 = vmatprep.subr.mxu0 0.0
      %1130 = vmatpush2.xpose.msra.mxu0 0.0
      %1131 = vmatprep.subr.mxu0 0.0
      %1132 = vmatpush2.xpose.msra.mxu0 0.0
      %1133 = vmatprep.mubr.f32.mxu0 0.0
      %1134 = vmatmul.mubr.f32.gmra.mxu0 %v1026
      %v1135 = vpop.f32.mrf.mxu0
      %v1136 = vadd.f32 0.0, %v1135
      %v1137 = vpop.f32.mrf.mxu0
      %1138 = vmatprep.mubr.f32.mxu0 0.0
      %1139 = vmatmul.mubr.f32.gmra.mxu0 %v1029
      %v1140 = vpop.f32.mrf.mxu0
      %v1141 = vadd.f32 0.0, %v1140
      %v1142 = vpop.f32.mrf.mxu0
      %1143 = vmatprep.mubr.f32.mxu0 0.0
      %1144 = vmatmul.mubr.f32.gmra.mxu0 %v1032
      %v1145 = vpop.f32.mrf.mxu0
      %v1146 = vadd.f32 0.0, %v1145
      %v1147 = vpop.f32.mrf.mxu0
      %1148 = vmatprep.mubr.f32.mxu0 0.0
      %1149 = vmatmul.mubr.f32.gmra.mxu0 %v1035
      %v1150 = vpop.f32.mrf.mxu0
      %v1151 = vadd.f32 0.0, %v1150
      %v1152 = vpop.f32.mrf.mxu0
      %1153 = vdwg.mxu0
      %1170 = vrot.lane.b32.xlu0 %v689, 96
      %v1171 = vpop.permute.xlu0 %1170
      %1172 = vrot.lane.b32.xlu0 %v690, 96
      %v1173 = vpop.permute.xlu0 %1172
      %1174 = vrot.lane.b32.xlu0 %v691, 96
      %v1175 = vpop.permute.xlu0 %1174
      %1176 = vrot.lane.b32.xlu0 %v692, 96
      %v1177 = vpop.permute.xlu0 %1176
      %1178 = vrot.lane.b32.xlu0 %v693, 96
      %v1179 = vpop.permute.xlu0 %1178
      %1180 = vrot.lane.b32.xlu0 %v694, 96
      %v1181 = vpop.permute.xlu0 %1180
      %1182 = vrot.lane.b32.xlu0 %v695, 96
      %v1183 = vpop.permute.xlu0 %1182
      %1184 = vrot.lane.b32.xlu0 %v696, 96
      %v1185 = vpop.permute.xlu0 %1184
      %1186 = vrot.lane.b32.xlu0 %v697, 96
      %v1187 = vpop.permute.xlu0 %1186
      %1188 = vrot.lane.b32.xlu0 %v698, 96
      %v1189 = vpop.permute.xlu0 %1188
      %1190 = vrot.lane.b32.xlu0 %v699, 96
      %v1191 = vpop.permute.xlu0 %1190
      %1192 = vrot.lane.b32.xlu0 %v700, 96
      %v1193 = vpop.permute.xlu0 %1192
      %1194 = vrot.lane.b32.xlu0 %v701, 96
      %v1195 = vpop.permute.xlu0 %1194
      %1196 = vrot.lane.b32.xlu0 %v702, 96
      %v1197 = vpop.permute.xlu0 %1196
      %1198 = vrot.lane.b32.xlu0 %v703, 96
      %v1199 = vpop.permute.xlu0 %1198
      %1200 = vrot.lane.b32.xlu0 %v704, 96
      %v1201 = vpop.permute.xlu0 %1200
      %v1203 = vsel %vm271, %v455, 0
      %v1206 = vsel %vm271, %v460, 0
      %v1209 = vsel %vm271, %v465, 0
      %v1212 = vsel %vm271, %v470, 0
      %v1214 = vsel %vm271, %v1171, 0
      %v1216 = vsel %vm271, %v1173, 0
      %v1218 = vsel %vm271, %v1175, 0
      %v1220 = vsel %vm271, %v1177, 0
      %v1222 = vsel %vm271, %v1179, 0
      %v1224 = vsel %vm271, %v1181, 0
      %v1226 = vsel %vm271, %v1183, 0
      %v1228 = vsel %vm271, %v1185, 0
      %v1230 = vsel %vm271, %v1187, 0
      %v1232 = vsel %vm271, %v1189, 0
      %v1234 = vsel %vm271, %v1191, 0
      %v1236 = vsel %vm271, %v1193, 0
      %v1238 = vsel %vm271, %v1195, 0
      %v1240 = vsel %vm271, %v1197, 0
      %v1242 = vsel %vm271, %v1199, 0
      %v1244 = vsel %vm271, %v1201, 0
      %1246 = vmatprep.subr.mxu0 0.0
      %1247 = vmatpush1.xpose.msra.mxu0 %v1244
      %1248 = vmatprep.subr.mxu0 0.0
      %1249 = vmatpush1.xpose.msra.mxu0 %v1242
      %1250 = vmatprep.subr.mxu0 0.0
      %1251 = vmatpush1.xpose.msra.mxu0 %v1240
      %1252 = vmatprep.subr.mxu0 0.0
      %1253 = vmatpush1.xpose.msra.mxu0 %v1238
      %1254 = vmatprep.subr.mxu0 0.0
      %1255 = vmatpush1.xpose.msra.mxu0 %v1236
      %1256 = vmatprep.subr.mxu0 0.0
      %1257 = vmatpush1.xpose.msra.mxu0 %v1234
      %1258 = vmatprep.subr.mxu0 0.0
      %1259 = vmatpush1.xpose.msra.mxu0 %v1232
      %1260 = vmatprep.subr.mxu0 0.0
      %1261 = vmatpush1.xpose.msra.mxu0 %v1230
      %1262 = vmatprep.subr.mxu0 0.0
      %1263 = vmatpush1.xpose.msra.mxu0 %v1228
      %1264 = vmatprep.subr.mxu0 0.0
      %1265 = vmatpush1.xpose.msra.mxu0 %v1226
      %1266 = vmatprep.subr.mxu0 0.0
      %1267 = vmatpush1.xpose.msra.mxu0 %v1224
      %1268 = vmatprep.subr.mxu0 0.0
      %1269 = vmatpush1.xpose.msra.mxu0 %v1222
      %1270 = vmatprep.subr.mxu0 0.0
      %1271 = vmatpush1.xpose.msra.mxu0 %v1220
      %1272 = vmatprep.subr.mxu0 0.0
      %1273 = vmatpush1.xpose.msra.mxu0 %v1218
      %1274 = vmatprep.subr.mxu0 0.0
      %1275 = vmatpush1.xpose.msra.mxu0 %v1216
      %1276 = vmatprep.subr.mxu0 0.0
      %1277 = vmatpush1.xpose.msra.mxu0 %v1214
      %1278 = vmatprep.subr.mxu0 0.0
      %1279 = vmatpush2.xpose.msra.mxu0 0.0
      %1280 = vmatprep.subr.mxu0 0.0
      %1281 = vmatpush2.xpose.msra.mxu0 0.0
      %1282 = vmatprep.subr.mxu0 0.0
      %1283 = vmatpush2.xpose.msra.mxu0 0.0
      %1284 = vmatprep.subr.mxu0 0.0
      %1285 = vmatpush2.xpose.msra.mxu0 0.0
      %1286 = vmatprep.subr.mxu0 0.0
      %1287 = vmatpush2.xpose.msra.mxu0 0.0
      %1288 = vmatprep.subr.mxu0 0.0
      %1289 = vmatpush2.xpose.msra.mxu0 0.0
      %1290 = vmatprep.subr.mxu0 0.0
      %1291 = vmatpush2.xpose.msra.mxu0 0.0
      %1292 = vmatprep.subr.mxu0 0.0
      %1293 = vmatpush2.xpose.msra.mxu0 0.0
      %1294 = vmatprep.subr.mxu0 0.0
      %1295 = vmatpush2.xpose.msra.mxu0 0.0
      %1296 = vmatprep.subr.mxu0 0.0
      %1297 = vmatpush2.xpose.msra.mxu0 0.0
      %1298 = vmatprep.subr.mxu0 0.0
      %1299 = vmatpush2.xpose.msra.mxu0 0.0
      %1300 = vmatprep.subr.mxu0 0.0
      %1301 = vmatpush2.xpose.msra.mxu0 0.0
      %1302 = vmatprep.subr.mxu0 0.0
      %1303 = vmatpush2.xpose.msra.mxu0 0.0
      %1304 = vmatprep.subr.mxu0 0.0
      %1305 = vmatpush2.xpose.msra.mxu0 0.0
      %1306 = vmatprep.subr.mxu0 0.0
      %1307 = vmatpush2.xpose.msra.mxu0 0.0
      %1308 = vmatprep.subr.mxu0 0.0
      %1309 = vmatpush2.xpose.msra.mxu0 0.0
      %1310 = vmatprep.mubr.f32.mxu0 0.0
      %1311 = vmatmul.mubr.f32.gmra.mxu0 %v1203
      %v1312 = vpop.f32.mrf.mxu0
      %v1313 = vadd.f32 0.0, %v1312
      %v1314 = vpop.f32.mrf.mxu0
      %1315 = vmatprep.mubr.f32.mxu0 0.0
      %1316 = vmatmul.mubr.f32.gmra.mxu0 %v1206
      %v1317 = vpop.f32.mrf.mxu0
      %v1318 = vadd.f32 0.0, %v1317
      %v1319 = vpop.f32.mrf.mxu0
      %1320 = vmatprep.mubr.f32.mxu0 0.0
      %1321 = vmatmul.mubr.f32.gmra.mxu0 %v1209
      %v1322 = vpop.f32.mrf.mxu0
      %v1323 = vadd.f32 0.0, %v1322
      %v1324 = vpop.f32.mrf.mxu0
      %1325 = vmatprep.mubr.f32.mxu0 0.0
      %1326 = vmatmul.mubr.f32.gmra.mxu0 %v1212
      %v1327 = vpop.f32.mrf.mxu0
      %v1328 = vadd.f32 0.0, %v1327
      %v1329 = vpop.f32.mrf.mxu0
      %1330 = vdwg.mxu0
      %1347 = vrot.lane.b32.xlu0 %v705, 96
      %v1348 = vpop.permute.xlu0 %1347
      %1349 = vrot.lane.b32.xlu0 %v706, 96
      %v1350 = vpop.permute.xlu0 %1349
      %1351 = vrot.lane.b32.xlu0 %v707, 96
      %v1352 = vpop.permute.xlu0 %1351
      %1353 = vrot.lane.b32.xlu0 %v708, 96
      %v1354 = vpop.permute.xlu0 %1353
      %1355 = vrot.lane.b32.xlu0 %v709, 96
      %v1356 = vpop.permute.xlu0 %1355
      %1357 = vrot.lane.b32.xlu0 %v710, 96
      %v1358 = vpop.permute.xlu0 %1357
      %1359 = vrot.lane.b32.xlu0 %v711, 96
      %v1360 = vpop.permute.xlu0 %1359
      %1361 = vrot.lane.b32.xlu0 %v712, 96
      %v1362 = vpop.permute.xlu0 %1361
      %1363 = vrot.lane.b32.xlu0 %v713, 96
      %v1364 = vpop.permute.xlu0 %1363
      %1365 = vrot.lane.b32.xlu0 %v714, 96
      %v1366 = vpop.permute.xlu0 %1365
      %1367 = vrot.lane.b32.xlu0 %v715, 96
      %v1368 = vpop.permute.xlu0 %1367
      %1369 = vrot.lane.b32.xlu0 %v716, 96
      %v1370 = vpop.permute.xlu0 %1369
      %1371 = vrot.lane.b32.xlu0 %v717, 96
      %v1372 = vpop.permute.xlu0 %1371
      %1373 = vrot.lane.b32.xlu0 %v718, 96
      %v1374 = vpop.permute.xlu0 %1373
      %1375 = vrot.lane.b32.xlu0 %v719, 96
      %v1376 = vpop.permute.xlu0 %1375
      %1377 = vrot.lane.b32.xlu0 %v720, 96
      %v1378 = vpop.permute.xlu0 %1377
      %v1380 = vsel %vm271, %v475, 0
      %v1383 = vsel %vm271, %v480, 0
      %v1386 = vsel %vm271, %v485, 0
      %v1389 = vsel %vm271, %v490, 0
      %v1391 = vsel %vm271, %v1348, 0
      %v1393 = vsel %vm271, %v1350, 0
      %v1395 = vsel %vm271, %v1352, 0
      %v1397 = vsel %vm271, %v1354, 0
      %v1399 = vsel %vm271, %v1356, 0
      %v1401 = vsel %vm271, %v1358, 0
      %v1403 = vsel %vm271, %v1360, 0
      %v1405 = vsel %vm271, %v1362, 0
      %v1407 = vsel %vm271, %v1364, 0
      %v1409 = vsel %vm271, %v1366, 0
      %v1411 = vsel %vm271, %v1368, 0
      %v1413 = vsel %vm271, %v1370, 0
      %v1415 = vsel %vm271, %v1372, 0
      %v1417 = vsel %vm271, %v1374, 0
      %v1419 = vsel %vm271, %v1376, 0
      %v1421 = vsel %vm271, %v1378, 0
      %1423 = vmatprep.subr.mxu0 0.0
      %1424 = vmatpush1.xpose.msra.mxu0 %v1421
      %1425 = vmatprep.subr.mxu0 0.0
      %1426 = vmatpush1.xpose.msra.mxu0 %v1419
      %1427 = vmatprep.subr.mxu0 0.0
      %1428 = vmatpush1.xpose.msra.mxu0 %v1417
      %1429 = vmatprep.subr.mxu0 0.0
      %1430 = vmatpush1.xpose.msra.mxu0 %v1415
      %1431 = vmatprep.subr.mxu0 0.0
      %1432 = vmatpush1.xpose.msra.mxu0 %v1413
      %1433 = vmatprep.subr.mxu0 0.0
      %1434 = vmatpush1.xpose.msra.mxu0 %v1411
      %1435 = vmatprep.subr.mxu0 0.0
      %1436 = vmatpush1.xpose.msra.mxu0 %v1409
      %1437 = vmatprep.subr.mxu0 0.0
      %1438 = vmatpush1.xpose.msra.mxu0 %v1407
      %1439 = vmatprep.subr.mxu0 0.0
      %1440 = vmatpush1.xpose.msra.mxu0 %v1405
      %1441 = vmatprep.subr.mxu0 0.0
      %1442 = vmatpush1.xpose.msra.mxu0 %v1403
      %1443 = vmatprep.subr.mxu0 0.0
      %1444 = vmatpush1.xpose.msra.mxu0 %v1401
      %1445 = vmatprep.subr.mxu0 0.0
      %1446 = vmatpush1.xpose.msra.mxu0 %v1399
      %1447 = vmatprep.subr.mxu0 0.0
      %1448 = vmatpush1.xpose.msra.mxu0 %v1397
      %1449 = vmatprep.subr.mxu0 0.0
      %1450 = vmatpush1.xpose.msra.mxu0 %v1395
      %1451 = vmatprep.subr.mxu0 0.0
      %1452 = vmatpush1.xpose.msra.mxu0 %v1393
      %1453 = vmatprep.subr.mxu0 0.0
      %1454 = vmatpush1.xpose.msra.mxu0 %v1391
      %1455 = vmatprep.subr.mxu0 0.0
      %1456 = vmatpush2.xpose.msra.mxu0 0.0
      %1457 = vmatprep.subr.mxu0 0.0
      %1458 = vmatpush2.xpose.msra.mxu0 0.0
      %1459 = vmatprep.subr.mxu0 0.0
      %1460 = vmatpush2.xpose.msra.mxu0 0.0
      %1461 = vmatprep.subr.mxu0 0.0
      %1462 = vmatpush2.xpose.msra.mxu0 0.0
      %1463 = vmatprep.subr.mxu0 0.0
      %1464 = vmatpush2.xpose.msra.mxu0 0.0
      %1465 = vmatprep.subr.mxu0 0.0
      %1466 = vmatpush2.xpose.msra.mxu0 0.0
      %1467 = vmatprep.subr.mxu0 0.0
      %1468 = vmatpush2.xpose.msra.mxu0 0.0
      %1469 = vmatprep.subr.mxu0 0.0
      %1470 = vmatpush2.xpose.msra.mxu0 0.0
      %1471 = vmatprep.subr.mxu0 0.0
      %1472 = vmatpush2.xpose.msra.mxu0 0.0
      %1473 = vmatprep.subr.mxu0 0.0
      %1474 = vmatpush2.xpose.msra.mxu0 0.0
      %1475 = vmatprep.subr.mxu0 0.0
      %1476 = vmatpush2.xpose.msra.mxu0 0.0
      %1477 = vmatprep.subr.mxu0 0.0
      %1478 = vmatpush2.xpose.msra.mxu0 0.0
      %1479 = vmatprep.subr.mxu0 0.0
      %1480 = vmatpush2.xpose.msra.mxu0 0.0
      %1481 = vmatprep.subr.mxu0 0.0
      %1482 = vmatpush2.xpose.msra.mxu0 0.0
      %1483 = vmatprep.subr.mxu0 0.0
      %1484 = vmatpush2.xpose.msra.mxu0 0.0
      %1485 = vmatprep.subr.mxu0 0.0
      %1486 = vmatpush2.xpose.msra.mxu0 0.0
      %1487 = vmatprep.mubr.f32.mxu0 0.0
      %1488 = vmatmul.mubr.f32.gmra.mxu0 %v1380
      %v1489 = vpop.f32.mrf.mxu0
      %v1490 = vadd.f32 0.0, %v1489
      %v1491 = vpop.f32.mrf.mxu0
      %1492 = vmatprep.mubr.f32.mxu0 0.0
      %1493 = vmatmul.mubr.f32.gmra.mxu0 %v1383
      %v1494 = vpop.f32.mrf.mxu0
      %v1495 = vadd.f32 0.0, %v1494
      %v1496 = vpop.f32.mrf.mxu0
      %1497 = vmatprep.mubr.f32.mxu0 0.0
      %1498 = vmatmul.mubr.f32.gmra.mxu0 %v1386
      %v1499 = vpop.f32.mrf.mxu0
      %v1500 = vadd.f32 0.0, %v1499
      %v1501 = vpop.f32.mrf.mxu0
      %1502 = vmatprep.mubr.f32.mxu0 0.0
      %1503 = vmatmul.mubr.f32.gmra.mxu0 %v1389
      %v1504 = vpop.f32.mrf.mxu0
      %v1505 = vadd.f32 0.0, %v1504
      %v1506 = vpop.f32.mrf.mxu0
      %1507 = vdwg.mxu0
      %1524 = vrot.lane.b32.xlu0 %v721, 96
      %v1525 = vpop.permute.xlu0 %1524
      %1526 = vrot.lane.b32.xlu0 %v722, 96
      %v1527 = vpop.permute.xlu0 %1526
      %1528 = vrot.lane.b32.xlu0 %v723, 96
      %v1529 = vpop.permute.xlu0 %1528
      %1530 = vrot.lane.b32.xlu0 %v724, 96
      %v1531 = vpop.permute.xlu0 %1530
      %1532 = vrot.lane.b32.xlu0 %v725, 96
      %v1533 = vpop.permute.xlu0 %1532
      %1534 = vrot.lane.b32.xlu0 %v726, 96
      %v1535 = vpop.permute.xlu0 %1534
      %1536 = vrot.lane.b32.xlu0 %v727, 96
      %v1537 = vpop.permute.xlu0 %1536
      %1538 = vrot.lane.b32.xlu0 %v728, 96
      %v1539 = vpop.permute.xlu0 %1538
      %1540 = vrot.lane.b32.xlu0 %v729, 96
      %v1541 = vpop.permute.xlu0 %1540
      %1542 = vrot.lane.b32.xlu0 %v730, 96
      %v1543 = vpop.permute.xlu0 %1542
      %1544 = vrot.lane.b32.xlu0 %v731, 96
      %v1545 = vpop.permute.xlu0 %1544
      %1546 = vrot.lane.b32.xlu0 %v732, 96
      %v1547 = vpop.permute.xlu0 %1546
      %1548 = vrot.lane.b32.xlu0 %v733, 96
      %v1549 = vpop.permute.xlu0 %1548
      %1550 = vrot.lane.b32.xlu0 %v734, 96
      %v1551 = vpop.permute.xlu0 %1550
      %1552 = vrot.lane.b32.xlu0 %v735, 96
      %v1553 = vpop.permute.xlu0 %1552
      %1554 = vrot.lane.b32.xlu0 %v736, 96
      %v1555 = vpop.permute.xlu0 %1554
      %v1557 = vsel %vm271, %v495, 0
      %v1560 = vsel %vm271, %v500, 0
      %v1563 = vsel %vm271, %v505, 0
      %v1566 = vsel %vm271, %v510, 0
      %v1568 = vsel %vm271, %v1525, 0
      %v1570 = vsel %vm271, %v1527, 0
      %v1572 = vsel %vm271, %v1529, 0
      %v1574 = vsel %vm271, %v1531, 0
      %v1576 = vsel %vm271, %v1533, 0
      %v1578 = vsel %vm271, %v1535, 0
      %v1580 = vsel %vm271, %v1537, 0
      %v1582 = vsel %vm271, %v1539, 0
      %v1584 = vsel %vm271, %v1541, 0
      %v1586 = vsel %vm271, %v1543, 0
      %v1588 = vsel %vm271, %v1545, 0
      %v1590 = vsel %vm271, %v1547, 0
      %v1592 = vsel %vm271, %v1549, 0
      %v1594 = vsel %vm271, %v1551, 0
      %v1596 = vsel %vm271, %v1553, 0
      %v1598 = vsel %vm271, %v1555, 0
      %1600 = vmatprep.subr.mxu0 0.0
      %1601 = vmatpush1.xpose.msra.mxu0 %v1598
      %1602 = vmatprep.subr.mxu0 0.0
      %1603 = vmatpush1.xpose.msra.mxu0 %v1596
      %1604 = vmatprep.subr.mxu0 0.0
      %1605 = vmatpush1.xpose.msra.mxu0 %v1594
      %1606 = vmatprep.subr.mxu0 0.0
      %1607 = vmatpush1.xpose.msra.mxu0 %v1592
      %1608 = vmatprep.subr.mxu0 0.0
      %1609 = vmatpush1.xpose.msra.mxu0 %v1590
      %1610 = vmatprep.subr.mxu0 0.0
      %1611 = vmatpush1.xpose.msra.mxu0 %v1588
      %1612 = vmatprep.subr.mxu0 0.0
      %1613 = vmatpush1.xpose.msra.mxu0 %v1586
      %1614 = vmatprep.subr.mxu0 0.0
      %1615 = vmatpush1.xpose.msra.mxu0 %v1584
      %1616 = vmatprep.subr.mxu0 0.0
      %1617 = vmatpush1.xpose.msra.mxu0 %v1582
      %1618 = vmatprep.subr.mxu0 0.0
      %1619 = vmatpush1.xpose.msra.mxu0 %v1580
      %1620 = vmatprep.subr.mxu0 0.0
      %1621 = vmatpush1.xpose.msra.mxu0 %v1578
      %1622 = vmatprep.subr.mxu0 0.0
      %1623 = vmatpush1.xpose.msra.mxu0 %v1576
      %1624 = vmatprep.subr.mxu0 0.0
      %1625 = vmatpush1.xpose.msra.mxu0 %v1574
      %1626 = vmatprep.subr.mxu0 0.0
      %1627 = vmatpush1.xpose.msra.mxu0 %v1572
      %1628 = vmatprep.subr.mxu0 0.0
      %1629 = vmatpush1.xpose.msra.mxu0 %v1570
      %1630 = vmatprep.subr.mxu0 0.0
      %1631 = vmatpush1.xpose.msra.mxu0 %v1568
      %1632 = vmatprep.subr.mxu0 0.0
      %1633 = vmatpush2.xpose.msra.mxu0 0.0
      %1634 = vmatprep.subr.mxu0 0.0
      %1635 = vmatpush2.xpose.msra.mxu0 0.0
      %1636 = vmatprep.subr.mxu0 0.0
      %1637 = vmatpush2.xpose.msra.mxu0 0.0
      %1638 = vmatprep.subr.mxu0 0.0
      %1639 = vmatpush2.xpose.msra.mxu0 0.0
      %1640 = vmatprep.subr.mxu0 0.0
      %1641 = vmatpush2.xpose.msra.mxu0 0.0
      %1642 = vmatprep.subr.mxu0 0.0
      %1643 = vmatpush2.xpose.msra.mxu0 0.0
      %1644 = vmatprep.subr.mxu0 0.0
      %1645 = vmatpush2.xpose.msra.mxu0 0.0
      %1646 = vmatprep.subr.mxu0 0.0
      %1647 = vmatpush2.xpose.msra.mxu0 0.0
      %1648 = vmatprep.subr.mxu0 0.0
      %1649 = vmatpush2.xpose.msra.mxu0 0.0
      %1650 = vmatprep.subr.mxu0 0.0
      %1651 = vmatpush2.xpose.msra.mxu0 0.0
      %1652 = vmatprep.subr.mxu0 0.0
      %1653 = vmatpush2.xpose.msra.mxu0 0.0
      %1654 = vmatprep.subr.mxu0 0.0
      %1655 = vmatpush2.xpose.msra.mxu0 0.0
      %1656 = vmatprep.subr.mxu0 0.0
      %1657 = vmatpush2.xpose.msra.mxu0 0.0
      %1658 = vmatprep.subr.mxu0 0.0
      %1659 = vmatpush2.xpose.msra.mxu0 0.0
      %1660 = vmatprep.subr.mxu0 0.0
      %1661 = vmatpush2.xpose.msra.mxu0 0.0
      %1662 = vmatprep.subr.mxu0 0.0
      %1663 = vmatpush2.xpose.msra.mxu0 0.0
      %1664 = vmatprep.mubr.f32.mxu0 0.0
      %1665 = vmatmul.mubr.f32.gmra.mxu0 %v1557
      %v1666 = vpop.f32.mrf.mxu0
      %v1667 = vadd.f32 0.0, %v1666
      %v1668 = vpop.f32.mrf.mxu0
      %1669 = vmatprep.mubr.f32.mxu0 0.0
      %1670 = vmatmul.mubr.f32.gmra.mxu0 %v1560
      %v1671 = vpop.f32.mrf.mxu0
      %v1672 = vadd.f32 0.0, %v1671
      %v1673 = vpop.f32.mrf.mxu0
      %1674 = vmatprep.mubr.f32.mxu0 0.0
      %1675 = vmatmul.mubr.f32.gmra.mxu0 %v1563
      %v1676 = vpop.f32.mrf.mxu0
      %v1677 = vadd.f32 0.0, %v1676
      %v1678 = vpop.f32.mrf.mxu0
      %1679 = vmatprep.mubr.f32.mxu0 0.0
      %1680 = vmatmul.mubr.f32.gmra.mxu0 %v1566
      %v1681 = vpop.f32.mrf.mxu0
      %v1682 = vadd.f32 0.0, %v1681
      %v1683 = vpop.f32.mrf.mxu0
      %1684 = vdwg.mxu0
      %1701 = vrot.lane.b32.xlu0 %v737, 96
      %v1702 = vpop.permute.xlu0 %1701
      %1703 = vrot.lane.b32.xlu0 %v738, 96
      %v1704 = vpop.permute.xlu0 %1703
      %1705 = vrot.lane.b32.xlu0 %v739, 96
      %v1706 = vpop.permute.xlu0 %1705
      %1707 = vrot.lane.b32.xlu0 %v740, 96
      %v1708 = vpop.permute.xlu0 %1707
      %1709 = vrot.lane.b32.xlu0 %v741, 96
      %v1710 = vpop.permute.xlu0 %1709
      %1711 = vrot.lane.b32.xlu0 %v742, 96
      %v1712 = vpop.permute.xlu0 %1711
      %1713 = vrot.lane.b32.xlu0 %v743, 96
      %v1714 = vpop.permute.xlu0 %1713
      %1715 = vrot.lane.b32.xlu0 %v744, 96
      %v1716 = vpop.permute.xlu0 %1715
      %1717 = vrot.lane.b32.xlu0 %v745, 96
      %v1718 = vpop.permute.xlu0 %1717
      %1719 = vrot.lane.b32.xlu0 %v746, 96
      %v1720 = vpop.permute.xlu0 %1719
      %1721 = vrot.lane.b32.xlu0 %v747, 96
      %v1722 = vpop.permute.xlu0 %1721
      %1723 = vrot.lane.b32.xlu0 %v748, 96
      %v1724 = vpop.permute.xlu0 %1723
      %1725 = vrot.lane.b32.xlu0 %v749, 96
      %v1726 = vpop.permute.xlu0 %1725
      %1727 = vrot.lane.b32.xlu0 %v750, 96
      %v1728 = vpop.permute.xlu0 %1727
      %1729 = vrot.lane.b32.xlu0 %v751, 96
      %v1730 = vpop.permute.xlu0 %1729
      %1731 = vrot.lane.b32.xlu0 %v752, 96
      %v1732 = vpop.permute.xlu0 %1731
      %v1734 = vsel %vm271, %v515, 0
      %v1737 = vsel %vm271, %v520, 0
      %v1740 = vsel %vm271, %v525, 0
      %v1743 = vsel %vm271, %v530, 0
      %v1745 = vsel %vm271, %v1702, 0
      %v1747 = vsel %vm271, %v1704, 0
      %v1749 = vsel %vm271, %v1706, 0
      %v1751 = vsel %vm271, %v1708, 0
      %v1753 = vsel %vm271, %v1710, 0
      %v1755 = vsel %vm271, %v1712, 0
      %v1757 = vsel %vm271, %v1714, 0
      %v1759 = vsel %vm271, %v1716, 0
      %v1761 = vsel %vm271, %v1718, 0
      %v1763 = vsel %vm271, %v1720, 0
      %v1765 = vsel %vm271, %v1722, 0
      %v1767 = vsel %vm271, %v1724, 0
      %v1769 = vsel %vm271, %v1726, 0
      %v1771 = vsel %vm271, %v1728, 0
      %v1773 = vsel %vm271, %v1730, 0
      %v1775 = vsel %vm271, %v1732, 0
      %1777 = vmatprep.subr.mxu0 0.0
      %1778 = vmatpush1.xpose.msra.mxu0 %v1775
      %1779 = vmatprep.subr.mxu0 0.0
      %1780 = vmatpush1.xpose.msra.mxu0 %v1773
      %1781 = vmatprep.subr.mxu0 0.0
      %1782 = vmatpush1.xpose.msra.mxu0 %v1771
      %1783 = vmatprep.subr.mxu0 0.0
      %1784 = vmatpush1.xpose.msra.mxu0 %v1769
      %1785 = vmatprep.subr.mxu0 0.0
      %1786 = vmatpush1.xpose.msra.mxu0 %v1767
      %1787 = vmatprep.subr.mxu0 0.0
      %1788 = vmatpush1.xpose.msra.mxu0 %v1765
      %1789 = vmatprep.subr.mxu0 0.0
      %1790 = vmatpush1.xpose.msra.mxu0 %v1763
      %1791 = vmatprep.subr.mxu0 0.0
      %1792 = vmatpush1.xpose.msra.mxu0 %v1761
      %1793 = vmatprep.subr.mxu0 0.0
      %1794 = vmatpush1.xpose.msra.mxu0 %v1759
      %1795 = vmatprep.subr.mxu0 0.0
      %1796 = vmatpush1.xpose.msra.mxu0 %v1757
      %1797 = vmatprep.subr.mxu0 0.0
      %1798 = vmatpush1.xpose.msra.mxu0 %v1755
      %1799 = vmatprep.subr.mxu0 0.0
      %1800 = vmatpush1.xpose.msra.mxu0 %v1753
      %1801 = vmatprep.subr.mxu0 0.0
      %1802 = vmatpush1.xpose.msra.mxu0 %v1751
      %1803 = vmatprep.subr.mxu0 0.0
      %1804 = vmatpush1.xpose.msra.mxu0 %v1749
      %1805 = vmatprep.subr.mxu0 0.0
      %1806 = vmatpush1.xpose.msra.mxu0 %v1747
      %1807 = vmatprep.subr.mxu0 0.0
      %1808 = vmatpush1.xpose.msra.mxu0 %v1745
      %1809 = vmatprep.subr.mxu0 0.0
      %1810 = vmatpush2.xpose.msra.mxu0 0.0
      %1811 = vmatprep.subr.mxu0 0.0
      %1812 = vmatpush2.xpose.msra.mxu0 0.0
      %1813 = vmatprep.subr.mxu0 0.0
      %1814 = vmatpush2.xpose.msra.mxu0 0.0
      %1815 = vmatprep.subr.mxu0 0.0
      %1816 = vmatpush2.xpose.msra.mxu0 0.0
      %1817 = vmatprep.subr.mxu0 0.0
      %1818 = vmatpush2.xpose.msra.mxu0 0.0
      %1819 = vmatprep.subr.mxu0 0.0
      %1820 = vmatpush2.xpose.msra.mxu0 0.0
      %1821 = vmatprep.subr.mxu0 0.0
      %1822 = vmatpush2.xpose.msra.mxu0 0.0
      %1823 = vmatprep.subr.mxu0 0.0
      %1824 = vmatpush2.xpose.msra.mxu0 0.0
      %1825 = vmatprep.subr.mxu0 0.0
      %1826 = vmatpush2.xpose.msra.mxu0 0.0
      %1827 = vmatprep.subr.mxu0 0.0
      %1828 = vmatpush2.xpose.msra.mxu0 0.0
      %1829 = vmatprep.subr.mxu0 0.0
      %1830 = vmatpush2.xpose.msra.mxu0 0.0
      %1831 = vmatprep.subr.mxu0 0.0
      %1832 = vmatpush2.xpose.msra.mxu0 0.0
      %1833 = vmatprep.subr.mxu0 0.0
      %1834 = vmatpush2.xpose.msra.mxu0 0.0
      %1835 = vmatprep.subr.mxu0 0.0
      %1836 = vmatpush2.xpose.msra.mxu0 0.0
      %1837 = vmatprep.subr.mxu0 0.0
      %1838 = vmatpush2.xpose.msra.mxu0 0.0
      %1839 = vmatprep.subr.mxu0 0.0
      %1840 = vmatpush2.xpose.msra.mxu0 0.0
      %1841 = vmatprep.mubr.f32.mxu0 0.0
      %1842 = vmatmul.mubr.f32.gmra.mxu0 %v1734
      %v1843 = vpop.f32.mrf.mxu0
      %v1844 = vadd.f32 0.0, %v1843
      %v1845 = vpop.f32.mrf.mxu0
      %1846 = vmatprep.mubr.f32.mxu0 0.0
      %1847 = vmatmul.mubr.f32.gmra.mxu0 %v1737
      %v1848 = vpop.f32.mrf.mxu0
      %v1849 = vadd.f32 0.0, %v1848
      %v1850 = vpop.f32.mrf.mxu0
      %1851 = vmatprep.mubr.f32.mxu0 0.0
      %1852 = vmatmul.mubr.f32.gmra.mxu0 %v1740
      %v1853 = vpop.f32.mrf.mxu0
      %v1854 = vadd.f32 0.0, %v1853
      %v1855 = vpop.f32.mrf.mxu0
      %1856 = vmatprep.mubr.f32.mxu0 0.0
      %1857 = vmatmul.mubr.f32.gmra.mxu0 %v1743
      %v1858 = vpop.f32.mrf.mxu0
      %v1859 = vadd.f32 0.0, %v1858
      %v1860 = vpop.f32.mrf.mxu0
      %1861 = vdwg.mxu0
      %1878 = vrot.lane.b32.xlu0 %v753, 96
      %v1879 = vpop.permute.xlu0 %1878
      %1880 = vrot.lane.b32.xlu0 %v754, 96
      %v1881 = vpop.permute.xlu0 %1880
      %1882 = vrot.lane.b32.xlu0 %v755, 96
      %v1883 = vpop.permute.xlu0 %1882
      %1884 = vrot.lane.b32.xlu0 %v756, 96
      %v1885 = vpop.permute.xlu0 %1884
      %1886 = vrot.lane.b32.xlu0 %v757, 96
      %v1887 = vpop.permute.xlu0 %1886
      %1888 = vrot.lane.b32.xlu0 %v758, 96
      %v1889 = vpop.permute.xlu0 %1888
      %1890 = vrot.lane.b32.xlu0 %v759, 96
      %v1891 = vpop.permute.xlu0 %1890
      %1892 = vrot.lane.b32.xlu0 %v760, 96
      %v1893 = vpop.permute.xlu0 %1892
      %1894 = vrot.lane.b32.xlu0 %v761, 96
      %v1895 = vpop.permute.xlu0 %1894
      %1896 = vrot.lane.b32.xlu0 %v762, 96
      %v1897 = vpop.permute.xlu0 %1896
      %1898 = vrot.lane.b32.xlu0 %v763, 96
      %v1899 = vpop.permute.xlu0 %1898
      %1900 = vrot.lane.b32.xlu0 %v764, 96
      %v1901 = vpop.permute.xlu0 %1900
      %1902 = vrot.lane.b32.xlu0 %v765, 96
      %v1903 = vpop.permute.xlu0 %1902
      %1904 = vrot.lane.b32.xlu0 %v766, 96
      %v1905 = vpop.permute.xlu0 %1904
      %1906 = vrot.lane.b32.xlu0 %v767, 96
      %v1907 = vpop.permute.xlu0 %1906
      %1908 = vrot.lane.b32.xlu0 %v768, 96
      %v1909 = vpop.permute.xlu0 %1908
      %v1911 = vsel %vm271, %v535, 0
      %v1914 = vsel %vm271, %v540, 0
      %v1917 = vsel %vm271, %v545, 0
      %v1920 = vsel %vm271, %v550, 0
      %v1922 = vsel %vm271, %v1879, 0
      %v1924 = vsel %vm271, %v1881, 0
      %v1926 = vsel %vm271, %v1883, 0
      %v1928 = vsel %vm271, %v1885, 0
      %v1930 = vsel %vm271, %v1887, 0
      %v1932 = vsel %vm271, %v1889, 0
      %v1934 = vsel %vm271, %v1891, 0
      %v1936 = vsel %vm271, %v1893, 0
      %v1938 = vsel %vm271, %v1895, 0
      %v1940 = vsel %vm271, %v1897, 0
      %v1942 = vsel %vm271, %v1899, 0
      %v1944 = vsel %vm271, %v1901, 0
      %v1946 = vsel %vm271, %v1903, 0
      %v1948 = vsel %vm271, %v1905, 0
      %v1950 = vsel %vm271, %v1907, 0
      %v1952 = vsel %vm271, %v1909, 0
      %1954 = vmatprep.subr.mxu0 0.0
      %1955 = vmatpush1.xpose.msra.mxu0 %v1952
      %1956 = vmatprep.subr.mxu0 0.0
      %1957 = vmatpush1.xpose.msra.mxu0 %v1950
      %1958 = vmatprep.subr.mxu0 0.0
      %1959 = vmatpush1.xpose.msra.mxu0 %v1948
      %1960 = vmatprep.subr.mxu0 0.0
      %1961 = vmatpush1.xpose.msra.mxu0 %v1946
      %1962 = vmatprep.subr.mxu0 0.0
      %1963 = vmatpush1.xpose.msra.mxu0 %v1944
      %1964 = vmatprep.subr.mxu0 0.0
      %1965 = vmatpush1.xpose.msra.mxu0 %v1942
      %1966 = vmatprep.subr.mxu0 0.0
      %1967 = vmatpush1.xpose.msra.mxu0 %v1940
      %1968 = vmatprep.subr.mxu0 0.0
      %1969 = vmatpush1.xpose.msra.mxu0 %v1938
      %1970 = vmatprep.subr.mxu0 0.0
      %1971 = vmatpush1.xpose.msra.mxu0 %v1936
      %1972 = vmatprep.subr.mxu0 0.0
      %1973 = vmatpush1.xpose.msra.mxu0 %v1934
      %1974 = vmatprep.subr.mxu0 0.0
      %1975 = vmatpush1.xpose.msra.mxu0 %v1932
      %1976 = vmatprep.subr.mxu0 0.0
      %1977 = vmatpush1.xpose.msra.mxu0 %v1930
      %1978 = vmatprep.subr.mxu0 0.0
      %1979 = vmatpush1.xpose.msra.mxu0 %v1928
      %1980 = vmatprep.subr.mxu0 0.0
      %1981 = vmatpush1.xpose.msra.mxu0 %v1926
      %1982 = vmatprep.subr.mxu0 0.0
      %1983 = vmatpush1.xpose.msra.mxu0 %v1924
      %1984 = vmatprep.subr.mxu0 0.0
      %1985 = vmatpush1.xpose.msra.mxu0 %v1922
      %1986 = vmatprep.subr.mxu0 0.0
      %1987 = vmatpush2.xpose.msra.mxu0 0.0
      %1988 = vmatprep.subr.mxu0 0.0
      %1989 = vmatpush2.xpose.msra.mxu0 0.0
      %1990 = vmatprep.subr.mxu0 0.0
      %1991 = vmatpush2.xpose.msra.mxu0 0.0
      %1992 = vmatprep.subr.mxu0 0.0
      %1993 = vmatpush2.xpose.msra.mxu0 0.0
      %1994 = vmatprep.subr.mxu0 0.0
      %1995 = vmatpush2.xpose.msra.mxu0 0.0
      %1996 = vmatprep.subr.mxu0 0.0
      %1997 = vmatpush2.xpose.msra.mxu0 0.0
      %1998 = vmatprep.subr.mxu0 0.0
      %1999 = vmatpush2.xpose.msra.mxu0 0.0
      %2000 = vmatprep.subr.mxu0 0.0
      %2001 = vmatpush2.xpose.msra.mxu0 0.0
      %2002 = vmatprep.subr.mxu0 0.0
      %2003 = vmatpush2.xpose.msra.mxu0 0.0
      %2004 = vmatprep.subr.mxu0 0.0
      %2005 = vmatpush2.xpose.msra.mxu0 0.0
      %2006 = vmatprep.subr.mxu0 0.0
      %2007 = vmatpush2.xpose.msra.mxu0 0.0
      %2008 = vmatprep.subr.mxu0 0.0
      %2009 = vmatpush2.xpose.msra.mxu0 0.0
      %2010 = vmatprep.subr.mxu0 0.0
      %2011 = vmatpush2.xpose.msra.mxu0 0.0
      %2012 = vmatprep.subr.mxu0 0.0
      %2013 = vmatpush2.xpose.msra.mxu0 0.0
      %2014 = vmatprep.subr.mxu0 0.0
      %2015 = vmatpush2.xpose.msra.mxu0 0.0
      %2016 = vmatprep.subr.mxu0 0.0
      %2017 = vmatpush2.xpose.msra.mxu0 0.0
      %2018 = vmatprep.mubr.f32.mxu0 0.0
      %2019 = vmatmul.mubr.f32.gmra.mxu0 %v1911
      %v2020 = vpop.f32.mrf.mxu0
      %v2021 = vadd.f32 0.0, %v2020
      %v2022 = vpop.f32.mrf.mxu0
      %2023 = vmatprep.mubr.f32.mxu0 0.0
      %2024 = vmatmul.mubr.f32.gmra.mxu0 %v1914
      %v2025 = vpop.f32.mrf.mxu0
      %v2026 = vadd.f32 0.0, %v2025
      %v2027 = vpop.f32.mrf.mxu0
      %2028 = vmatprep.mubr.f32.mxu0 0.0
      %2029 = vmatmul.mubr.f32.gmra.mxu0 %v1917
      %v2030 = vpop.f32.mrf.mxu0
      %v2031 = vadd.f32 0.0, %v2030
      %v2032 = vpop.f32.mrf.mxu0
      %2033 = vmatprep.mubr.f32.mxu0 0.0
      %2034 = vmatmul.mubr.f32.gmra.mxu0 %v1920
      %v2035 = vpop.f32.mrf.mxu0
      %v2036 = vadd.f32 0.0, %v2035
      %v2037 = vpop.f32.mrf.mxu0
      %2038 = vdwg.mxu0
      %2055 = vrot.lane.b32.xlu0 %v769, 96
      %v2056 = vpop.permute.xlu0 %2055
      %2057 = vrot.lane.b32.xlu0 %v770, 96
      %v2058 = vpop.permute.xlu0 %2057
      %2059 = vrot.lane.b32.xlu0 %v771, 96
      %v2060 = vpop.permute.xlu0 %2059
      %2061 = vrot.lane.b32.xlu0 %v772, 96
      %v2062 = vpop.permute.xlu0 %2061
      %2063 = vrot.lane.b32.xlu0 %v773, 96
      %v2064 = vpop.permute.xlu0 %2063
      %2065 = vrot.lane.b32.xlu0 %v774, 96
      %v2066 = vpop.permute.xlu0 %2065
      %2067 = vrot.lane.b32.xlu0 %v775, 96
      %v2068 = vpop.permute.xlu0 %2067
      %2069 = vrot.lane.b32.xlu0 %v776, 96
      %v2070 = vpop.permute.xlu0 %2069
      %2071 = vrot.lane.b32.xlu0 %v777, 96
      %v2072 = vpop.permute.xlu0 %2071
      %2073 = vrot.lane.b32.xlu0 %v778, 96
      %v2074 = vpop.permute.xlu0 %2073
      %2075 = vrot.lane.b32.xlu0 %v779, 96
      %v2076 = vpop.permute.xlu0 %2075
      %2077 = vrot.lane.b32.xlu0 %v780, 96
      %v2078 = vpop.permute.xlu0 %2077
      %2079 = vrot.lane.b32.xlu0 %v781, 96
      %v2080 = vpop.permute.xlu0 %2079
      %2081 = vrot.lane.b32.xlu0 %v782, 96
      %v2082 = vpop.permute.xlu0 %2081
      %2083 = vrot.lane.b32.xlu0 %v783, 96
      %v2084 = vpop.permute.xlu0 %2083
      %2085 = vrot.lane.b32.xlu0 %v784, 96
      %v2086 = vpop.permute.xlu0 %2085
      %v2088 = vsel %vm271, %v555, 0
      %v2091 = vsel %vm271, %v560, 0
      %v2094 = vsel %vm271, %v565, 0
      %v2097 = vsel %vm271, %v570, 0
      %v2099 = vsel %vm271, %v2056, 0
      %v2101 = vsel %vm271, %v2058, 0
      %v2103 = vsel %vm271, %v2060, 0
      %v2105 = vsel %vm271, %v2062, 0
      %v2107 = vsel %vm271, %v2064, 0
      %v2109 = vsel %vm271, %v2066, 0
      %v2111 = vsel %vm271, %v2068, 0
      %v2113 = vsel %vm271, %v2070, 0
      %v2115 = vsel %vm271, %v2072, 0
      %v2117 = vsel %vm271, %v2074, 0
      %v2119 = vsel %vm271, %v2076, 0
      %v2121 = vsel %vm271, %v2078, 0
      %v2123 = vsel %vm271, %v2080, 0
      %v2125 = vsel %vm271, %v2082, 0
      %v2127 = vsel %vm271, %v2084, 0
      %v2129 = vsel %vm271, %v2086, 0
      %2131 = vmatprep.subr.mxu0 0.0
      %2132 = vmatpush1.xpose.msra.mxu0 %v2129
      %2133 = vmatprep.subr.mxu0 0.0
      %2134 = vmatpush1.xpose.msra.mxu0 %v2127
      %2135 = vmatprep.subr.mxu0 0.0
      %2136 = vmatpush1.xpose.msra.mxu0 %v2125
      %2137 = vmatprep.subr.mxu0 0.0
      %2138 = vmatpush1.xpose.msra.mxu0 %v2123
      %2139 = vmatprep.subr.mxu0 0.0
      %2140 = vmatpush1.xpose.msra.mxu0 %v2121
      %2141 = vmatprep.subr.mxu0 0.0
      %2142 = vmatpush1.xpose.msra.mxu0 %v2119
      %2143 = vmatprep.subr.mxu0 0.0
      %2144 = vmatpush1.xpose.msra.mxu0 %v2117
      %2145 = vmatprep.subr.mxu0 0.0
      %2146 = vmatpush1.xpose.msra.mxu0 %v2115
      %2147 = vmatprep.subr.mxu0 0.0
      %2148 = vmatpush1.xpose.msra.mxu0 %v2113
      %2149 = vmatprep.subr.mxu0 0.0
      %2150 = vmatpush1.xpose.msra.mxu0 %v2111
      %2151 = vmatprep.subr.mxu0 0.0
      %2152 = vmatpush1.xpose.msra.mxu0 %v2109
      %2153 = vmatprep.subr.mxu0 0.0
      %2154 = vmatpush1.xpose.msra.mxu0 %v2107
      %2155 = vmatprep.subr.mxu0 0.0
      %2156 = vmatpush1.xpose.msra.mxu0 %v2105
      %2157 = vmatprep.subr.mxu0 0.0
      %2158 = vmatpush1.xpose.msra.mxu0 %v2103
      %2159 = vmatprep.subr.mxu0 0.0
      %2160 = vmatpush1.xpose.msra.mxu0 %v2101
      %2161 = vmatprep.subr.mxu0 0.0
      %2162 = vmatpush1.xpose.msra.mxu0 %v2099
      %2163 = vmatprep.subr.mxu0 0.0
      %2164 = vmatpush2.xpose.msra.mxu0 0.0
      %2165 = vmatprep.subr.mxu0 0.0
      %2166 = vmatpush2.xpose.msra.mxu0 0.0
      %2167 = vmatprep.subr.mxu0 0.0
      %2168 = vmatpush2.xpose.msra.mxu0 0.0
      %2169 = vmatprep.subr.mxu0 0.0
      %2170 = vmatpush2.xpose.msra.mxu0 0.0
      %2171 = vmatprep.subr.mxu0 0.0
      %2172 = vmatpush2.xpose.msra.mxu0 0.0
      %2173 = vmatprep.subr.mxu0 0.0
      %2174 = vmatpush2.xpose.msra.mxu0 0.0
      %2175 = vmatprep.subr.mxu0 0.0
      %2176 = vmatpush2.xpose.msra.mxu0 0.0
      %2177 = vmatprep.subr.mxu0 0.0
      %2178 = vmatpush2.xpose.msra.mxu0 0.0
      %2179 = vmatprep.subr.mxu0 0.0
      %2180 = vmatpush2.xpose.msra.mxu0 0.0
      %2181 = vmatprep.subr.mxu0 0.0
      %2182 = vmatpush2.xpose.msra.mxu0 0.0
      %2183 = vmatprep.subr.mxu0 0.0
      %2184 = vmatpush2.xpose.msra.mxu0 0.0
      %2185 = vmatprep.subr.mxu0 0.0
      %2186 = vmatpush2.xpose.msra.mxu0 0.0
      %2187 = vmatprep.subr.mxu0 0.0
      %2188 = vmatpush2.xpose.msra.mxu0 0.0
      %2189 = vmatprep.subr.mxu0 0.0
      %2190 = vmatpush2.xpose.msra.mxu0 0.0
      %2191 = vmatprep.subr.mxu0 0.0
      %2192 = vmatpush2.xpose.msra.mxu0 0.0
      %2193 = vmatprep.subr.mxu0 0.0
      %2194 = vmatpush2.xpose.msra.mxu0 0.0
      %2195 = vmatprep.mubr.f32.mxu0 0.0
      %2196 = vmatmul.mubr.f32.gmra.mxu0 %v2088
      %v2197 = vpop.f32.mrf.mxu0
      %v2198 = vadd.f32 0.0, %v2197
      %v2199 = vpop.f32.mrf.mxu0
      %2200 = vmatprep.mubr.f32.mxu0 0.0
      %2201 = vmatmul.mubr.f32.gmra.mxu0 %v2091
      %v2202 = vpop.f32.mrf.mxu0
      %v2203 = vadd.f32 0.0, %v2202
      %v2204 = vpop.f32.mrf.mxu0
      %2205 = vmatprep.mubr.f32.mxu0 0.0
      %2206 = vmatmul.mubr.f32.gmra.mxu0 %v2094
      %v2207 = vpop.f32.mrf.mxu0
      %v2208 = vadd.f32 0.0, %v2207
      %v2209 = vpop.f32.mrf.mxu0
      %2210 = vmatprep.mubr.f32.mxu0 0.0
      %2211 = vmatmul.mubr.f32.gmra.mxu0 %v2097
      %v2212 = vpop.f32.mrf.mxu0
      %v2213 = vadd.f32 0.0, %v2212
      %v2214 = vpop.f32.mrf.mxu0
      %2215 = vdwg.mxu0
      %2232 = vrot.lane.b32.xlu0 %v785, 96
      %v2233 = vpop.permute.xlu0 %2232
      %2234 = vrot.lane.b32.xlu0 %v786, 96
      %v2235 = vpop.permute.xlu0 %2234
      %2236 = vrot.lane.b32.xlu0 %v787, 96
      %v2237 = vpop.permute.xlu0 %2236
      %2238 = vrot.lane.b32.xlu0 %v788, 96
      %v2239 = vpop.permute.xlu0 %2238
      %2240 = vrot.lane.b32.xlu0 %v789, 96
      %v2241 = vpop.permute.xlu0 %2240
      %2242 = vrot.lane.b32.xlu0 %v790, 96
      %v2243 = vpop.permute.xlu0 %2242
      %2244 = vrot.lane.b32.xlu0 %v791, 96
      %v2245 = vpop.permute.xlu0 %2244
      %2246 = vrot.lane.b32.xlu0 %v792, 96
      %v2247 = vpop.permute.xlu0 %2246
      %2248 = vrot.lane.b32.xlu0 %v793, 96
      %v2249 = vpop.permute.xlu0 %2248
      %2250 = vrot.lane.b32.xlu0 %v794, 96
      %v2251 = vpop.permute.xlu0 %2250
      %2252 = vrot.lane.b32.xlu0 %v795, 96
      %v2253 = vpop.permute.xlu0 %2252
      %2254 = vrot.lane.b32.xlu0 %v796, 96
      %v2255 = vpop.permute.xlu0 %2254
      %2256 = vrot.lane.b32.xlu0 %v797, 96
      %v2257 = vpop.permute.xlu0 %2256
      %2258 = vrot.lane.b32.xlu0 %v798, 96
      %v2259 = vpop.permute.xlu0 %2258
      %2260 = vrot.lane.b32.xlu0 %v799, 96
      %v2261 = vpop.permute.xlu0 %2260
      %2262 = vrot.lane.b32.xlu0 %v800, 96
      %v2263 = vpop.permute.xlu0 %2262
      %v2265 = vsel %vm271, %v575, 0
      %v2268 = vsel %vm271, %v580, 0
      %v2271 = vsel %vm271, %v585, 0
      %v2274 = vsel %vm271, %v590, 0
      %v2276 = vsel %vm271, %v2233, 0
      %v2278 = vsel %vm271, %v2235, 0
      %v2280 = vsel %vm271, %v2237, 0
      %v2282 = vsel %vm271, %v2239, 0
      %v2284 = vsel %vm271, %v2241, 0
      %v2286 = vsel %vm271, %v2243, 0
      %v2288 = vsel %vm271, %v2245, 0
      %v2290 = vsel %vm271, %v2247, 0
      %v2292 = vsel %vm271, %v2249, 0
      %v2294 = vsel %vm271, %v2251, 0
      %v2296 = vsel %vm271, %v2253, 0
      %v2298 = vsel %vm271, %v2255, 0
      %v2300 = vsel %vm271, %v2257, 0
      %v2302 = vsel %vm271, %v2259, 0
      %v2304 = vsel %vm271, %v2261, 0
      %v2306 = vsel %vm271, %v2263, 0
      %2308 = vmatprep.subr.mxu0 0.0
      %2309 = vmatpush1.xpose.msra.mxu0 %v2306
      %2310 = vmatprep.subr.mxu0 0.0
      %2311 = vmatpush1.xpose.msra.mxu0 %v2304
      %2312 = vmatprep.subr.mxu0 0.0
      %2313 = vmatpush1.xpose.msra.mxu0 %v2302
      %2314 = vmatprep.subr.mxu0 0.0
      %2315 = vmatpush1.xpose.msra.mxu0 %v2300
      %2316 = vmatprep.subr.mxu0 0.0
      %2317 = vmatpush1.xpose.msra.mxu0 %v2298
      %2318 = vmatprep.subr.mxu0 0.0
      %2319 = vmatpush1.xpose.msra.mxu0 %v2296
      %2320 = vmatprep.subr.mxu0 0.0
      %2321 = vmatpush1.xpose.msra.mxu0 %v2294
      %2322 = vmatprep.subr.mxu0 0.0
      %2323 = vmatpush1.xpose.msra.mxu0 %v2292
      %2324 = vmatprep.subr.mxu0 0.0
      %2325 = vmatpush1.xpose.msra.mxu0 %v2290
      %2326 = vmatprep.subr.mxu0 0.0
      %2327 = vmatpush1.xpose.msra.mxu0 %v2288
      %2328 = vmatprep.subr.mxu0 0.0
      %2329 = vmatpush1.xpose.msra.mxu0 %v2286
      %2330 = vmatprep.subr.mxu0 0.0
      %2331 = vmatpush1.xpose.msra.mxu0 %v2284
      %2332 = vmatprep.subr.mxu0 0.0
      %2333 = vmatpush1.xpose.msra.mxu0 %v2282
      %2334 = vmatprep.subr.mxu0 0.0
      %2335 = vmatpush1.xpose.msra.mxu0 %v2280
      %2336 = vmatprep.subr.mxu0 0.0
      %2337 = vmatpush1.xpose.msra.mxu0 %v2278
      %2338 = vmatprep.subr.mxu0 0.0
      %2339 = vmatpush1.xpose.msra.mxu0 %v2276
      %2340 = vmatprep.subr.mxu0 0.0
      %2341 = vmatpush2.xpose.msra.mxu0 0.0
      %2342 = vmatprep.subr.mxu0 0.0
      %2343 = vmatpush2.xpose.msra.mxu0 0.0
      %2344 = vmatprep.subr.mxu0 0.0
      %2345 = vmatpush2.xpose.msra.mxu0 0.0
      %2346 = vmatprep.subr.mxu0 0.0
      %2347 = vmatpush2.xpose.msra.mxu0 0.0
      %2348 = vmatprep.subr.mxu0 0.0
      %2349 = vmatpush2.xpose.msra.mxu0 0.0
      %2350 = vmatprep.subr.mxu0 0.0
      %2351 = vmatpush2.xpose.msra.mxu0 0.0
      %2352 = vmatprep.subr.mxu0 0.0
      %2353 = vmatpush2.xpose.msra.mxu0 0.0
      %2354 = vmatprep.subr.mxu0 0.0
      %2355 = vmatpush2.xpose.msra.mxu0 0.0
      %2356 = vmatprep.subr.mxu0 0.0
      %2357 = vmatpush2.xpose.msra.mxu0 0.0
      %2358 = vmatprep.subr.mxu0 0.0
      %2359 = vmatpush2.xpose.msra.mxu0 0.0
      %2360 = vmatprep.subr.mxu0 0.0
      %2361 = vmatpush2.xpose.msra.mxu0 0.0
      %2362 = vmatprep.subr.mxu0 0.0
      %2363 = vmatpush2.xpose.msra.mxu0 0.0
      %2364 = vmatprep.subr.mxu0 0.0
      %2365 = vmatpush2.xpose.msra.mxu0 0.0
      %2366 = vmatprep.subr.mxu0 0.0
      %2367 = vmatpush2.xpose.msra.mxu0 0.0
      %2368 = vmatprep.subr.mxu0 0.0
      %2369 = vmatpush2.xpose.msra.mxu0 0.0
      %2370 = vmatprep.subr.mxu0 0.0
      %2371 = vmatpush2.xpose.msra.mxu0 0.0
      %2372 = vmatprep.mubr.f32.mxu0 0.0
      %2373 = vmatmul.mubr.f32.gmra.mxu0 %v2265
      %v2374 = vpop.f32.mrf.mxu0
      %v2375 = vadd.f32 0.0, %v2374
      %v2376 = vpop.f32.mrf.mxu0
      %2377 = vmatprep.mubr.f32.mxu0 0.0
      %2378 = vmatmul.mubr.f32.gmra.mxu0 %v2268
      %v2379 = vpop.f32.mrf.mxu0
      %v2380 = vadd.f32 0.0, %v2379
      %v2381 = vpop.f32.mrf.mxu0
      %2382 = vmatprep.mubr.f32.mxu0 0.0
      %2383 = vmatmul.mubr.f32.gmra.mxu0 %v2271
      %v2384 = vpop.f32.mrf.mxu0
      %v2385 = vadd.f32 0.0, %v2384
      %v2386 = vpop.f32.mrf.mxu0
      %2387 = vmatprep.mubr.f32.mxu0 0.0
      %2388 = vmatmul.mubr.f32.gmra.mxu0 %v2274
      %v2389 = vpop.f32.mrf.mxu0
      %v2390 = vadd.f32 0.0, %v2389
      %v2391 = vpop.f32.mrf.mxu0
      %2392 = vdwg.mxu0
      %2393 = vmax.xlane.f32.xlu0 %v1136
      %v2394 = vpop.xlane.xlu0 %2393
      %2395 = vmax.xlane.f32.xlu0 %v1141
      %v2396 = vpop.xlane.xlu0 %2395
      %2397 = vmax.xlane.f32.xlu0 %v1146
      %v2398 = vpop.xlane.xlu0 %2397
      %2399 = vmax.xlane.f32.xlu0 %v1151
      %v2400 = vpop.xlane.xlu0 %2399
      %2401 = vmax.xlane.f32.xlu0 %v1313
      %v2402 = vpop.xlane.xlu0 %2401
      %2403 = vmax.xlane.f32.xlu0 %v1318
      %v2404 = vpop.xlane.xlu0 %2403
      %2405 = vmax.xlane.f32.xlu0 %v1323
      %v2406 = vpop.xlane.xlu0 %2405
      %2407 = vmax.xlane.f32.xlu0 %v1328
      %v2408 = vpop.xlane.xlu0 %2407
      %2409 = vmax.xlane.f32.xlu0 %v1490
      %v2410 = vpop.xlane.xlu0 %2409
      %2411 = vmax.xlane.f32.xlu0 %v1495
      %v2412 = vpop.xlane.xlu0 %2411
      %2413 = vmax.xlane.f32.xlu0 %v1500
      %v2414 = vpop.xlane.xlu0 %2413
      %2415 = vmax.xlane.f32.xlu0 %v1505
      %v2416 = vpop.xlane.xlu0 %2415
      %2417 = vmax.xlane.f32.xlu0 %v1667
      %v2418 = vpop.xlane.xlu0 %2417
      %2419 = vmax.xlane.f32.xlu0 %v1672
      %v2420 = vpop.xlane.xlu0 %2419
      %2421 = vmax.xlane.f32.xlu0 %v1677
      %v2422 = vpop.xlane.xlu0 %2421
      %2423 = vmax.xlane.f32.xlu0 %v1682
      %v2424 = vpop.xlane.xlu0 %2423
      %2425 = vmax.xlane.f32.xlu0 %v1844
      %v2426 = vpop.xlane.xlu0 %2425
      %2427 = vmax.xlane.f32.xlu0 %v1849
      %v2428 = vpop.xlane.xlu0 %2427
      %2429 = vmax.xlane.f32.xlu0 %v1854
      %v2430 = vpop.xlane.xlu0 %2429
      %2431 = vmax.xlane.f32.xlu0 %v1859
      %v2432 = vpop.xlane.xlu0 %2431
      %2433 = vmax.xlane.f32.xlu0 %v2021
      %v2434 = vpop.xlane.xlu0 %2433
      %2435 = vmax.xlane.f32.xlu0 %v2026
      %v2436 = vpop.xlane.xlu0 %2435
      %2437 = vmax.xlane.f32.xlu0 %v2031
      %v2438 = vpop.xlane.xlu0 %2437
      %2439 = vmax.xlane.f32.xlu0 %v2036
      %v2440 = vpop.xlane.xlu0 %2439
      %2441 = vmax.xlane.f32.xlu0 %v2198
      %v2442 = vpop.xlane.xlu0 %2441
      %2443 = vmax.xlane.f32.xlu0 %v2203
      %v2444 = vpop.xlane.xlu0 %2443
      %2445 = vmax.xlane.f32.xlu0 %v2208
      %v2446 = vpop.xlane.xlu0 %2445
      %2447 = vmax.xlane.f32.xlu0 %v2213
      %v2448 = vpop.xlane.xlu0 %2447
      %2449 = vmax.xlane.f32.xlu0 %v2375
      %v2450 = vpop.xlane.xlu0 %2449
      %2451 = vmax.xlane.f32.xlu0 %v2380
      %v2452 = vpop.xlane.xlu0 %2451
      %2453 = vmax.xlane.f32.xlu0 %v2385
      %v2454 = vpop.xlane.xlu0 %2453
      %2455 = vmax.xlane.f32.xlu0 %v2390
      %v2456 = vpop.xlane.xlu0 %2455
      %v2457 = vsub.f32 %v1136, %v2394
      %v2458 = vsub.f32 %v1141, %v2396
      %v2459 = vsub.f32 %v1146, %v2398
      %v2460 = vsub.f32 %v1151, %v2400
      %v2461 = vsub.f32 %v1313, %v2402
      %v2462 = vsub.f32 %v1318, %v2404
      %v2463 = vsub.f32 %v1323, %v2406
      %v2464 = vsub.f32 %v1328, %v2408
      %v2465 = vsub.f32 %v1490, %v2410
      %v2466 = vsub.f32 %v1495, %v2412
      %v2467 = vsub.f32 %v1500, %v2414
      %v2468 = vsub.f32 %v1505, %v2416
      %v2469 = vsub.f32 %v1667, %v2418
      %v2470 = vsub.f32 %v1672, %v2420
      %v2471 = vsub.f32 %v1677, %v2422
      %v2472 = vsub.f32 %v1682, %v2424
      %v2473 = vsub.f32 %v1844, %v2426
      %v2474 = vsub.f32 %v1849, %v2428
      %v2475 = vsub.f32 %v1854, %v2430
      %v2476 = vsub.f32 %v1859, %v2432
      %v2477 = vsub.f32 %v2021, %v2434
      %v2478 = vsub.f32 %v2026, %v2436
      %v2479 = vsub.f32 %v2031, %v2438
      %v2480 = vsub.f32 %v2036, %v2440
      %v2481 = vsub.f32 %v2198, %v2442
      %v2482 = vsub.f32 %v2203, %v2444
      %v2483 = vsub.f32 %v2208, %v2446
      %v2484 = vsub.f32 %v2213, %v2448
      %v2485 = vsub.f32 %v2375, %v2450
      %v2486 = vsub.f32 %v2380, %v2452
      %v2487 = vsub.f32 %v2385, %v2454
      %v2488 = vsub.f32 %v2390, %v2456
      %v2489 = vmul.f32 %v2457, 1.442695
      %v2490 = vpow.pop %v2489
      %v2491 = vmul.f32 %v2458, 1.442695
      %v2492 = vpow.pop %v2491
      %v2493 = vmul.f32 %v2459, 1.442695
      %v2494 = vpow.pop %v2493
      %v2495 = vmul.f32 %v2460, 1.442695
      %v2496 = vpow.pop %v2495
      %v2497 = vmul.f32 %v2461, 1.442695
      %v2498 = vpow.pop %v2497
      %v2499 = vmul.f32 %v2462, 1.442695
      %v2500 = vpow.pop %v2499
      %v2501 = vmul.f32 %v2463, 1.442695
      %v2502 = vpow.pop %v2501
      %v2503 = vmul.f32 %v2464, 1.442695
      %v2504 = vpow.pop %v2503
      %v2505 = vmul.f32 %v2465, 1.442695
      %v2506 = vpow.pop %v2505
      %v2507 = vmul.f32 %v2466, 1.442695
      %v2508 = vpow.pop %v2507
      %v2509 = vmul.f32 %v2467, 1.442695
      %v2510 = vpow.pop %v2509
      %v2511 = vmul.f32 %v2468, 1.442695
      %v2512 = vpow.pop %v2511
      %v2513 = vmul.f32 %v2469, 1.442695
      %v2514 = vpow.pop %v2513
      %v2515 = vmul.f32 %v2470, 1.442695
      %v2516 = vpow.pop %v2515
      %v2517 = vmul.f32 %v2471, 1.442695
      %v2518 = vpow.pop %v2517
      %v2519 = vmul.f32 %v2472, 1.442695
      %v2520 = vpow.pop %v2519
      %v2521 = vmul.f32 %v2473, 1.442695
      %v2522 = vpow.pop %v2521
      %v2523 = vmul.f32 %v2474, 1.442695
      %v2524 = vpow.pop %v2523
      %v2525 = vmul.f32 %v2475, 1.442695
      %v2526 = vpow.pop %v2525
      %v2527 = vmul.f32 %v2476, 1.442695
      %v2528 = vpow.pop %v2527
      %v2529 = vmul.f32 %v2477, 1.442695
      %v2530 = vpow.pop %v2529
      %v2531 = vmul.f32 %v2478, 1.442695
      %v2532 = vpow.pop %v2531
      %v2533 = vmul.f32 %v2479, 1.442695
      %v2534 = vpow.pop %v2533
      %v2535 = vmul.f32 %v2480, 1.442695
      %v2536 = vpow.pop %v2535
      %v2537 = vmul.f32 %v2481, 1.442695
      %v2538 = vpow.pop %v2537
      %v2539 = vmul.f32 %v2482, 1.442695
      %v2540 = vpow.pop %v2539
      %v2541 = vmul.f32 %v2483, 1.442695
      %v2542 = vpow.pop %v2541
      %v2543 = vmul.f32 %v2484, 1.442695
      %v2544 = vpow.pop %v2543
      %v2545 = vmul.f32 %v2485, 1.442695
      %v2546 = vpow.pop %v2545
      %v2547 = vmul.f32 %v2486, 1.442695
      %v2548 = vpow.pop %v2547
      %v2549 = vmul.f32 %v2487, 1.442695
      %v2550 = vpow.pop %v2549
      %v2551 = vmul.f32 %v2488, 1.442695
      %v2552 = vpow.pop %v2551
      %v2553 = vld [vmem:[%s4] sm:$0xff]
      %v2554 = vld [vmem:[%s4 + $0x8] sm:$0xff]
      %v2555 = vld [vmem:[%s4 + $0x10] sm:$0xff]
      %v2556 = vld [vmem:[%s4 + $0x18] sm:$0xff]
      %v2557 = vld [vmem:[%s4 + $0x20] sm:$0xff]
      %v2558 = vld [vmem:[%s4 + $0x28] sm:$0xff]
      %v2559 = vld [vmem:[%s4 + $0x30] sm:$0xff]
      %v2560 = vld [vmem:[%s4 + $0x38] sm:$0xff]
      %v2561 = vld [vmem:[%s4 + $0x40] sm:$0xff]
      %v2562 = vld [vmem:[%s4 + $0x48] sm:$0xff]
      %v2563 = vld [vmem:[%s4 + $0x50] sm:$0xff]
      %v2564 = vld [vmem:[%s4 + $0x58] sm:$0xff]
      %v2565 = vld [vmem:[%s4 + $0x60] sm:$0xff]
      %v2566 = vld [vmem:[%s4 + $0x68] sm:$0xff]
      %v2567 = vld [vmem:[%s4 + $0x70] sm:$0xff]
      %v2568 = vld [vmem:[%s4 + $0x78] sm:$0xff]
      %2569 = vmatprep.subr.mxu0 0.0
      %2570 = vmatpush1.msra.mxu0 %v2568
      %2571 = vmatprep.subr.mxu0 0.0
      %2572 = vmatpush1.msra.mxu0 %v2567
      %2573 = vmatprep.subr.mxu0 0.0
      %2574 = vmatpush1.msra.mxu0 %v2566
      %2575 = vmatprep.subr.mxu0 0.0
      %2576 = vmatpush1.msra.mxu0 %v2565
      %2577 = vmatprep.subr.mxu0 0.0
      %2578 = vmatpush1.msra.mxu0 %v2564
      %2579 = vmatprep.subr.mxu0 0.0
      %2580 = vmatpush1.msra.mxu0 %v2563
      %2581 = vmatprep.subr.mxu0 0.0
      %2582 = vmatpush1.msra.mxu0 %v2562
      %2583 = vmatprep.subr.mxu0 0.0
      %2584 = vmatpush1.msra.mxu0 %v2561
      %2585 = vmatprep.subr.mxu0 0.0
      %2586 = vmatpush1.msra.mxu0 %v2560
      %2587 = vmatprep.subr.mxu0 0.0
      %2588 = vmatpush1.msra.mxu0 %v2559
      %2589 = vmatprep.subr.mxu0 0.0
      %2590 = vmatpush1.msra.mxu0 %v2558
      %2591 = vmatprep.subr.mxu0 0.0
      %2592 = vmatpush1.msra.mxu0 %v2557
      %2593 = vmatprep.subr.mxu0 0.0
      %2594 = vmatpush1.msra.mxu0 %v2556
      %2595 = vmatprep.subr.mxu0 0.0
      %2596 = vmatpush1.msra.mxu0 %v2555
      %2597 = vmatprep.subr.mxu0 0.0
      %2598 = vmatpush1.msra.mxu0 %v2554
      %2599 = vmatprep.subr.mxu0 0.0
      %2600 = vmatpush1.msra.mxu0 %v2553
      %2601 = vmatprep.subr.mxu0 0.0
      %2602 = vmatpush2.msra.mxu0 0.0
      %2603 = vmatprep.subr.mxu0 0.0
      %2604 = vmatpush2.msra.mxu0 0.0
      %2605 = vmatprep.subr.mxu0 0.0
      %2606 = vmatpush2.msra.mxu0 0.0
      %2607 = vmatprep.subr.mxu0 0.0
      %2608 = vmatpush2.msra.mxu0 0.0
      %2609 = vmatprep.subr.mxu0 0.0
      %2610 = vmatpush2.msra.mxu0 0.0
      %2611 = vmatprep.subr.mxu0 0.0
      %2612 = vmatpush2.msra.mxu0 0.0
      %2613 = vmatprep.subr.mxu0 0.0
      %2614 = vmatpush2.msra.mxu0 0.0
      %2615 = vmatprep.subr.mxu0 0.0
      %2616 = vmatpush2.msra.mxu0 0.0
      %2617 = vmatprep.subr.mxu0 0.0
      %2618 = vmatpush2.msra.mxu0 0.0
      %2619 = vmatprep.subr.mxu0 0.0
      %2620 = vmatpush2.msra.mxu0 0.0
      %2621 = vmatprep.subr.mxu0 0.0
      %2622 = vmatpush2.msra.mxu0 0.0
      %2623 = vmatprep.subr.mxu0 0.0
      %2624 = vmatpush2.msra.mxu0 0.0
      %2625 = vmatprep.subr.mxu0 0.0
      %2626 = vmatpush2.msra.mxu0 0.0
      %2627 = vmatprep.subr.mxu0 0.0
      %2628 = vmatpush2.msra.mxu0 0.0
      %2629 = vmatprep.subr.mxu0 0.0
      %2630 = vmatpush2.msra.mxu0 0.0
      %2631 = vmatprep.subr.mxu0 0.0
      %2632 = vmatpush2.msra.mxu0 0.0
      %2633 = vmatprep.mubr.f32.mxu0 0.0
      %2634 = vmatmul.mubr.f32.gmra.mxu0 %v2490
      %v2635 = vpop.f32.mrf.mxu0
      %v2636 = vadd.f32 0.0, %v2635
      %v2637 = vpop.f32.mrf.mxu0
      %2638 = vmatprep.mubr.f32.mxu0 0.0
      %2639 = vmatmul.mubr.f32.gmra.mxu0 %v2492
      %v2640 = vpop.f32.mrf.mxu0
      %v2641 = vadd.f32 0.0, %v2640
      %v2642 = vpop.f32.mrf.mxu0
      %2643 = vmatprep.mubr.f32.mxu0 0.0
      %2644 = vmatmul.mubr.f32.gmra.mxu0 %v2494
      %v2645 = vpop.f32.mrf.mxu0
      %v2646 = vadd.f32 0.0, %v2645
      %v2647 = vpop.f32.mrf.mxu0
      %2648 = vmatprep.mubr.f32.mxu0 0.0
      %2649 = vmatmul.mubr.f32.gmra.mxu0 %v2496
      %v2650 = vpop.f32.mrf.mxu0
      %v2651 = vadd.f32 0.0, %v2650
      %v2652 = vpop.f32.mrf.mxu0
      %2653 = vmatprep.mubr.f32.mxu0 0.0
      %2654 = vmatmul.mubr.f32.gmra.mxu0 %v2498
      %v2655 = vpop.f32.mrf.mxu0
      %v2656 = vadd.f32 0.0, %v2655
      %v2657 = vpop.f32.mrf.mxu0
      %2658 = vmatprep.mubr.f32.mxu0 0.0
      %2659 = vmatmul.mubr.f32.gmra.mxu0 %v2500
      %v2660 = vpop.f32.mrf.mxu0
      %v2661 = vadd.f32 0.0, %v2660
      %v2662 = vpop.f32.mrf.mxu0
      %2663 = vmatprep.mubr.f32.mxu0 0.0
      %2664 = vmatmul.mubr.f32.gmra.mxu0 %v2502
      %v2665 = vpop.f32.mrf.mxu0
      %v2666 = vadd.f32 0.0, %v2665
      %v2667 = vpop.f32.mrf.mxu0
      %2668 = vmatprep.mubr.f32.mxu0 0.0
      %2669 = vmatmul.mubr.f32.gmra.mxu0 %v2504
      %v2670 = vpop.f32.mrf.mxu0
      %v2671 = vadd.f32 0.0, %v2670
      %v2672 = vpop.f32.mrf.mxu0
      %2673 = vmatprep.mubr.f32.mxu0 0.0
      %2674 = vmatmul.mubr.f32.gmra.mxu0 %v2506
      %v2675 = vpop.f32.mrf.mxu0
      %v2676 = vadd.f32 0.0, %v2675
      %v2677 = vpop.f32.mrf.mxu0
      %2678 = vmatprep.mubr.f32.mxu0 0.0
      %2679 = vmatmul.mubr.f32.gmra.mxu0 %v2508
      %v2680 = vpop.f32.mrf.mxu0
      %v2681 = vadd.f32 0.0, %v2680
      %v2682 = vpop.f32.mrf.mxu0
      %2683 = vmatprep.mubr.f32.mxu0 0.0
      %2684 = vmatmul.mubr.f32.gmra.mxu0 %v2510
      %v2685 = vpop.f32.mrf.mxu0
      %v2686 = vadd.f32 0.0, %v2685
      %v2687 = vpop.f32.mrf.mxu0
      %2688 = vmatprep.mubr.f32.mxu0 0.0
      %2689 = vmatmul.mubr.f32.gmra.mxu0 %v2512
      %v2690 = vpop.f32.mrf.mxu0
      %v2691 = vadd.f32 0.0, %v2690
      %v2692 = vpop.f32.mrf.mxu0
      %2693 = vmatprep.mubr.f32.mxu0 0.0
      %2694 = vmatmul.mubr.f32.gmra.mxu0 %v2514
      %v2695 = vpop.f32.mrf.mxu0
      %v2696 = vadd.f32 0.0, %v2695
      %v2697 = vpop.f32.mrf.mxu0
      %2698 = vmatprep.mubr.f32.mxu0 0.0
      %2699 = vmatmul.mubr.f32.gmra.mxu0 %v2516
      %v2700 = vpop.f32.mrf.mxu0
      %v2701 = vadd.f32 0.0, %v2700
      %v2702 = vpop.f32.mrf.mxu0
      %2703 = vmatprep.mubr.f32.mxu0 0.0
      %2704 = vmatmul.mubr.f32.gmra.mxu0 %v2518
      %v2705 = vpop.f32.mrf.mxu0
      %v2706 = vadd.f32 0.0, %v2705
      %v2707 = vpop.f32.mrf.mxu0
      %2708 = vmatprep.mubr.f32.mxu0 0.0
      %2709 = vmatmul.mubr.f32.gmra.mxu0 %v2520
      %v2710 = vpop.f32.mrf.mxu0
      %v2711 = vadd.f32 0.0, %v2710
      %v2712 = vpop.f32.mrf.mxu0
      %2713 = vmatprep.mubr.f32.mxu0 0.0
      %2714 = vmatmul.mubr.f32.gmra.mxu0 %v2522
      %v2715 = vpop.f32.mrf.mxu0
      %v2716 = vadd.f32 0.0, %v2715
      %v2717 = vpop.f32.mrf.mxu0
      %2718 = vmatprep.mubr.f32.mxu0 0.0
      %2719 = vmatmul.mubr.f32.gmra.mxu0 %v2524
      %v2720 = vpop.f32.mrf.mxu0
      %v2721 = vadd.f32 0.0, %v2720
      %v2722 = vpop.f32.mrf.mxu0
      %2723 = vmatprep.mubr.f32.mxu0 0.0
      %2724 = vmatmul.mubr.f32.gmra.mxu0 %v2526
      %v2725 = vpop.f32.mrf.mxu0
      %v2726 = vadd.f32 0.0, %v2725
      %v2727 = vpop.f32.mrf.mxu0
      %2728 = vmatprep.mubr.f32.mxu0 0.0
      %2729 = vmatmul.mubr.f32.gmra.mxu0 %v2528
      %v2730 = vpop.f32.mrf.mxu0
      %v2731 = vadd.f32 0.0, %v2730
      %v2732 = vpop.f32.mrf.mxu0
      %2733 = vmatprep.mubr.f32.mxu0 0.0
      %2734 = vmatmul.mubr.f32.gmra.mxu0 %v2530
      %v2735 = vpop.f32.mrf.mxu0
      %v2736 = vadd.f32 0.0, %v2735
      %v2737 = vpop.f32.mrf.mxu0
      %2738 = vmatprep.mubr.f32.mxu0 0.0
      %2739 = vmatmul.mubr.f32.gmra.mxu0 %v2532
      %v2740 = vpop.f32.mrf.mxu0
      %v2741 = vadd.f32 0.0, %v2740
      %v2742 = vpop.f32.mrf.mxu0
      %2743 = vmatprep.mubr.f32.mxu0 0.0
      %2744 = vmatmul.mubr.f32.gmra.mxu0 %v2534
      %v2745 = vpop.f32.mrf.mxu0
      %v2746 = vadd.f32 0.0, %v2745
      %v2747 = vpop.f32.mrf.mxu0
      %2748 = vmatprep.mubr.f32.mxu0 0.0
      %2749 = vmatmul.mubr.f32.gmra.mxu0 %v2536
      %v2750 = vpop.f32.mrf.mxu0
      %v2751 = vadd.f32 0.0, %v2750
      %v2752 = vpop.f32.mrf.mxu0
      %2753 = vmatprep.mubr.f32.mxu0 0.0
      %2754 = vmatmul.mubr.f32.gmra.mxu0 %v2538
      %v2755 = vpop.f32.mrf.mxu0
      %v2756 = vadd.f32 0.0, %v2755
      %v2757 = vpop.f32.mrf.mxu0
      %2758 = vmatprep.mubr.f32.mxu0 0.0
      %2759 = vmatmul.mubr.f32.gmra.mxu0 %v2540
      %v2760 = vpop.f32.mrf.mxu0
      %v2761 = vadd.f32 0.0, %v2760
      %v2762 = vpop.f32.mrf.mxu0
      %2763 = vmatprep.mubr.f32.mxu0 0.0
      %2764 = vmatmul.mubr.f32.gmra.mxu0 %v2542
      %v2765 = vpop.f32.mrf.mxu0
      %v2766 = vadd.f32 0.0, %v2765
      %v2767 = vpop.f32.mrf.mxu0
      %2768 = vmatprep.mubr.f32.mxu0 0.0
      %2769 = vmatmul.mubr.f32.gmra.mxu0 %v2544
      %v2770 = vpop.f32.mrf.mxu0
      %v2771 = vadd.f32 0.0, %v2770
      %v2772 = vpop.f32.mrf.mxu0
      %2773 = vmatprep.mubr.f32.mxu0 0.0
      %2774 = vmatmul.mubr.f32.gmra.mxu0 %v2546
      %v2775 = vpop.f32.mrf.mxu0
      %v2776 = vadd.f32 0.0, %v2775
      %v2777 = vpop.f32.mrf.mxu0
      %2778 = vmatprep.mubr.f32.mxu0 0.0
      %2779 = vmatmul.mubr.f32.gmra.mxu0 %v2548
      %v2780 = vpop.f32.mrf.mxu0
      %v2781 = vadd.f32 0.0, %v2780
      %v2782 = vpop.f32.mrf.mxu0
      %2783 = vmatprep.mubr.f32.mxu0 0.0
      %2784 = vmatmul.mubr.f32.gmra.mxu0 %v2550
      %v2785 = vpop.f32.mrf.mxu0
      %v2786 = vadd.f32 0.0, %v2785
      %v2787 = vpop.f32.mrf.mxu0
      %2788 = vmatprep.mubr.f32.mxu0 0.0
      %2789 = vmatmul.mubr.f32.gmra.mxu0 %v2552
      %v2790 = vpop.f32.mrf.mxu0
      %v2791 = vadd.f32 0.0, %v2790
      %v2792 = vpop.f32.mrf.mxu0
      %2793 = vdwg.mxu0
      %v2794 = vrcp.pop %v2636
      %v2795 = vrcp.pop %v2641
      %v2796 = vrcp.pop %v2646
      %v2797 = vrcp.pop %v2651
      %v2798 = vrcp.pop %v2656
      %v2799 = vrcp.pop %v2661
      %v2800 = vrcp.pop %v2666
      %v2801 = vrcp.pop %v2671
      %v2802 = vrcp.pop %v2676
      %v2803 = vrcp.pop %v2681
      %v2804 = vrcp.pop %v2686
      %v2805 = vrcp.pop %v2691
      %v2806 = vrcp.pop %v2696
      %v2807 = vrcp.pop %v2701
      %v2808 = vrcp.pop %v2706
      %v2809 = vrcp.pop %v2711
      %v2810 = vrcp.pop %v2716
      %v2811 = vrcp.pop %v2721
      %v2812 = vrcp.pop %v2726
      %v2813 = vrcp.pop %v2731
      %v2814 = vrcp.pop %v2736
      %v2815 = vrcp.pop %v2741
      %v2816 = vrcp.pop %v2746
      %v2817 = vrcp.pop %v2751
      %v2818 = vrcp.pop %v2756
      %v2819 = vrcp.pop %v2761
      %v2820 = vrcp.pop %v2766
      %v2821 = vrcp.pop %v2771
      %v2822 = vrcp.pop %v2776
      %v2823 = vrcp.pop %v2781
      %v2824 = vrcp.pop %v2786
      %v2825 = vrcp.pop %v2791
      %v2826 = vmul.f32 %v2490, %v2794
      %v2827 = vmul.f32 %v2492, %v2795
      %v2828 = vmul.f32 %v2494, %v2796
      %v2829 = vmul.f32 %v2496, %v2797
      %v2830 = vmul.f32 %v2498, %v2798
      %v2831 = vmul.f32 %v2500, %v2799
      %v2832 = vmul.f32 %v2502, %v2800
      %v2833 = vmul.f32 %v2504, %v2801
      %v2834 = vmul.f32 %v2506, %v2802
      %v2835 = vmul.f32 %v2508, %v2803
      %v2836 = vmul.f32 %v2510, %v2804
      %v2837 = vmul.f32 %v2512, %v2805
      %v2838 = vmul.f32 %v2514, %v2806
      %v2839 = vmul.f32 %v2516, %v2807
      %v2840 = vmul.f32 %v2518, %v2808
      %v2841 = vmul.f32 %v2520, %v2809
      %v2842 = vmul.f32 %v2522, %v2810
      %v2843 = vmul.f32 %v2524, %v2811
      %v2844 = vmul.f32 %v2526, %v2812
      %v2845 = vmul.f32 %v2528, %v2813
      %v2846 = vmul.f32 %v2530, %v2814
      %v2847 = vmul.f32 %v2532, %v2815
      %v2848 = vmul.f32 %v2534, %v2816
      %v2849 = vmul.f32 %v2536, %v2817
      %v2850 = vmul.f32 %v2538, %v2818
      %v2851 = vmul.f32 %v2540, %v2819
      %v2852 = vmul.f32 %v2542, %v2820
      %v2853 = vmul.f32 %v2544, %v2821
      %v2854 = vmul.f32 %v2546, %v2822
      %v2855 = vmul.f32 %v2548, %v2823
      %v2856 = vmul.f32 %v2550, %v2824
      %v2857 = vmul.f32 %v2552, %v2825
      %2874 = vrot.lane.b32.xlu0 %v849, 64
      %v2875 = vpop.permute.xlu0 %2874
      %2876 = vrot.lane.b32.xlu0 %v850, 64
      %v2877 = vpop.permute.xlu0 %2876
      %2878 = vrot.lane.b32.xlu0 %v851, 64
      %v2879 = vpop.permute.xlu0 %2878
      %2880 = vrot.lane.b32.xlu0 %v852, 64
      %v2881 = vpop.permute.xlu0 %2880
      %2882 = vrot.lane.b32.xlu0 %v853, 64
      %v2883 = vpop.permute.xlu0 %2882
      %2884 = vrot.lane.b32.xlu0 %v854, 64
      %v2885 = vpop.permute.xlu0 %2884
      %2886 = vrot.lane.b32.xlu0 %v855, 64
      %v2887 = vpop.permute.xlu0 %2886
      %2888 = vrot.lane.b32.xlu0 %v856, 64
      %v2889 = vpop.permute.xlu0 %2888
      %2890 = vrot.lane.b32.xlu0 %v857, 64
      %v2891 = vpop.permute.xlu0 %2890
      %2892 = vrot.lane.b32.xlu0 %v858, 64
      %v2893 = vpop.permute.xlu0 %2892
      %2894 = vrot.lane.b32.xlu0 %v859, 64
      %v2895 = vpop.permute.xlu0 %2894
      %2896 = vrot.lane.b32.xlu0 %v860, 64
      %v2897 = vpop.permute.xlu0 %2896
      %2898 = vrot.lane.b32.xlu0 %v861, 64
      %v2899 = vpop.permute.xlu0 %2898
      %2900 = vrot.lane.b32.xlu0 %v862, 64
      %v2901 = vpop.permute.xlu0 %2900
      %2902 = vrot.lane.b32.xlu0 %v863, 64
      %v2903 = vpop.permute.xlu0 %2902
      %2904 = vrot.lane.b32.xlu0 %v864, 64
      %v2905 = vpop.permute.xlu0 %2904
      %2922 = vmatprep.subr.mxu0 0.0
      %2923 = vmatpush1.msra.mxu0 %v2905
      %2924 = vmatprep.subr.mxu0 0.0
      %2925 = vmatpush1.msra.mxu0 %v2903
      %2926 = vmatprep.subr.mxu0 0.0
      %2927 = vmatpush1.msra.mxu0 %v2901
      %2928 = vmatprep.subr.mxu0 0.0
      %2929 = vmatpush1.msra.mxu0 %v2899
      %2930 = vmatprep.subr.mxu0 0.0
      %2931 = vmatpush1.msra.mxu0 %v2897
      %2932 = vmatprep.subr.mxu0 0.0
      %2933 = vmatpush1.msra.mxu0 %v2895
      %2934 = vmatprep.subr.mxu0 0.0
      %2935 = vmatpush1.msra.mxu0 %v2893
      %2936 = vmatprep.subr.mxu0 0.0
      %2937 = vmatpush1.msra.mxu0 %v2891
      %2938 = vmatprep.subr.mxu0 0.0
      %2939 = vmatpush1.msra.mxu0 %v2889
      %2940 = vmatprep.subr.mxu0 0.0
      %2941 = vmatpush1.msra.mxu0 %v2887
      %2942 = vmatprep.subr.mxu0 0.0
      %2943 = vmatpush1.msra.mxu0 %v2885
      %2944 = vmatprep.subr.mxu0 0.0
      %2945 = vmatpush1.msra.mxu0 %v2883
      %2946 = vmatprep.subr.mxu0 0.0
      %2947 = vmatpush1.msra.mxu0 %v2881
      %2948 = vmatprep.subr.mxu0 0.0
      %2949 = vmatpush1.msra.mxu0 %v2879
      %2950 = vmatprep.subr.mxu0 0.0
      %2951 = vmatpush1.msra.mxu0 %v2877
      %2952 = vmatprep.subr.mxu0 0.0
      %2953 = vmatpush1.msra.mxu0 %v2875
      %2954 = vmatprep.subr.mxu0 0.0
      %2955 = vmatpush2.msra.mxu0 0.0
      %2956 = vmatprep.subr.mxu0 0.0
      %2957 = vmatpush2.msra.mxu0 0.0
      %2958 = vmatprep.subr.mxu0 0.0
      %2959 = vmatpush2.msra.mxu0 0.0
      %2960 = vmatprep.subr.mxu0 0.0
      %2961 = vmatpush2.msra.mxu0 0.0
      %2962 = vmatprep.subr.mxu0 0.0
      %2963 = vmatpush2.msra.mxu0 0.0
      %2964 = vmatprep.subr.mxu0 0.0
      %2965 = vmatpush2.msra.mxu0 0.0
      %2966 = vmatprep.subr.mxu0 0.0
      %2967 = vmatpush2.msra.mxu0 0.0
      %2968 = vmatprep.subr.mxu0 0.0
      %2969 = vmatpush2.msra.mxu0 0.0
      %2970 = vmatprep.subr.mxu0 0.0
      %2971 = vmatpush2.msra.mxu0 0.0
      %2972 = vmatprep.subr.mxu0 0.0
      %2973 = vmatpush2.msra.mxu0 0.0
      %2974 = vmatprep.subr.mxu0 0.0
      %2975 = vmatpush2.msra.mxu0 0.0
      %2976 = vmatprep.subr.mxu0 0.0
      %2977 = vmatpush2.msra.mxu0 0.0
      %2978 = vmatprep.subr.mxu0 0.0
      %2979 = vmatpush2.msra.mxu0 0.0
      %2980 = vmatprep.subr.mxu0 0.0
      %2981 = vmatpush2.msra.mxu0 0.0
      %2982 = vmatprep.subr.mxu0 0.0
      %2983 = vmatpush2.msra.mxu0 0.0
      %2984 = vmatprep.subr.mxu0 0.0
      %2985 = vmatpush2.msra.mxu0 0.0
      %2986 = vmatprep.mubr.f32.mxu0 0.0
      %2987 = vmatmul.mubr.f32.gmra.mxu0 %v2826
      %v2988 = vpop.f32.mrf.mxu0
      %v2989 = vadd.f32 0.0, %v2988
      %v2990 = vpop.f32.mrf.mxu0
      %2991 = vmatprep.mubr.f32.mxu0 0.0
      %2992 = vmatmul.mubr.f32.gmra.mxu0 %v2827
      %v2993 = vpop.f32.mrf.mxu0
      %v2994 = vadd.f32 0.0, %v2993
      %v2995 = vpop.f32.mrf.mxu0
      %2996 = vmatprep.mubr.f32.mxu0 0.0
      %2997 = vmatmul.mubr.f32.gmra.mxu0 %v2828
      %v2998 = vpop.f32.mrf.mxu0
      %v2999 = vadd.f32 0.0, %v2998
      %v3000 = vpop.f32.mrf.mxu0
      %3001 = vmatprep.mubr.f32.mxu0 0.0
      %3002 = vmatmul.mubr.f32.gmra.mxu0 %v2829
      %v3003 = vpop.f32.mrf.mxu0
      %v3004 = vadd.f32 0.0, %v3003
      %v3005 = vpop.f32.mrf.mxu0
      %3006 = vdwg.mxu0
      %3023 = vrot.lane.b32.xlu0 %v865, 64
      %v3024 = vpop.permute.xlu0 %3023
      %3025 = vrot.lane.b32.xlu0 %v866, 64
      %v3026 = vpop.permute.xlu0 %3025
      %3027 = vrot.lane.b32.xlu0 %v867, 64
      %v3028 = vpop.permute.xlu0 %3027
      %3029 = vrot.lane.b32.xlu0 %v868, 64
      %v3030 = vpop.permute.xlu0 %3029
      %3031 = vrot.lane.b32.xlu0 %v869, 64
      %v3032 = vpop.permute.xlu0 %3031
      %3033 = vrot.lane.b32.xlu0 %v870, 64
      %v3034 = vpop.permute.xlu0 %3033
      %3035 = vrot.lane.b32.xlu0 %v871, 64
      %v3036 = vpop.permute.xlu0 %3035
      %3037 = vrot.lane.b32.xlu0 %v872, 64
      %v3038 = vpop.permute.xlu0 %3037
      %3039 = vrot.lane.b32.xlu0 %v873, 64
      %v3040 = vpop.permute.xlu0 %3039
      %3041 = vrot.lane.b32.xlu0 %v874, 64
      %v3042 = vpop.permute.xlu0 %3041
      %3043 = vrot.lane.b32.xlu0 %v875, 64
      %v3044 = vpop.permute.xlu0 %3043
      %3045 = vrot.lane.b32.xlu0 %v876, 64
      %v3046 = vpop.permute.xlu0 %3045
      %3047 = vrot.lane.b32.xlu0 %v877, 64
      %v3048 = vpop.permute.xlu0 %3047
      %3049 = vrot.lane.b32.xlu0 %v878, 64
      %v3050 = vpop.permute.xlu0 %3049
      %3051 = vrot.lane.b32.xlu0 %v879, 64
      %v3052 = vpop.permute.xlu0 %3051
      %3053 = vrot.lane.b32.xlu0 %v880, 64
      %v3054 = vpop.permute.xlu0 %3053
      %3071 = vmatprep.subr.mxu0 0.0
      %3072 = vmatpush1.msra.mxu0 %v3054
      %3073 = vmatprep.subr.mxu0 0.0
      %3074 = vmatpush1.msra.mxu0 %v3052
      %3075 = vmatprep.subr.mxu0 0.0
      %3076 = vmatpush1.msra.mxu0 %v3050
      %3077 = vmatprep.subr.mxu0 0.0
      %3078 = vmatpush1.msra.mxu0 %v3048
      %3079 = vmatprep.subr.mxu0 0.0
      %3080 = vmatpush1.msra.mxu0 %v3046
      %3081 = vmatprep.subr.mxu0 0.0
      %3082 = vmatpush1.msra.mxu0 %v3044
      %3083 = vmatprep.subr.mxu0 0.0
      %3084 = vmatpush1.msra.mxu0 %v3042
      %3085 = vmatprep.subr.mxu0 0.0
      %3086 = vmatpush1.msra.mxu0 %v3040
      %3087 = vmatprep.subr.mxu0 0.0
      %3088 = vmatpush1.msra.mxu0 %v3038
      %3089 = vmatprep.subr.mxu0 0.0
      %3090 = vmatpush1.msra.mxu0 %v3036
      %3091 = vmatprep.subr.mxu0 0.0
      %3092 = vmatpush1.msra.mxu0 %v3034
      %3093 = vmatprep.subr.mxu0 0.0
      %3094 = vmatpush1.msra.mxu0 %v3032
      %3095 = vmatprep.subr.mxu0 0.0
      %3096 = vmatpush1.msra.mxu0 %v3030
      %3097 = vmatprep.subr.mxu0 0.0
      %3098 = vmatpush1.msra.mxu0 %v3028
      %3099 = vmatprep.subr.mxu0 0.0
      %3100 = vmatpush1.msra.mxu0 %v3026
      %3101 = vmatprep.subr.mxu0 0.0
      %3102 = vmatpush1.msra.mxu0 %v3024
      %3103 = vmatprep.subr.mxu0 0.0
      %3104 = vmatpush2.msra.mxu0 0.0
      %3105 = vmatprep.subr.mxu0 0.0
      %3106 = vmatpush2.msra.mxu0 0.0
      %3107 = vmatprep.subr.mxu0 0.0
      %3108 = vmatpush2.msra.mxu0 0.0
      %3109 = vmatprep.subr.mxu0 0.0
      %3110 = vmatpush2.msra.mxu0 0.0
      %3111 = vmatprep.subr.mxu0 0.0
      %3112 = vmatpush2.msra.mxu0 0.0
      %3113 = vmatprep.subr.mxu0 0.0
      %3114 = vmatpush2.msra.mxu0 0.0
      %3115 = vmatprep.subr.mxu0 0.0
      %3116 = vmatpush2.msra.mxu0 0.0
      %3117 = vmatprep.subr.mxu0 0.0
      %3118 = vmatpush2.msra.mxu0 0.0
      %3119 = vmatprep.subr.mxu0 0.0
      %3120 = vmatpush2.msra.mxu0 0.0
      %3121 = vmatprep.subr.mxu0 0.0
      %3122 = vmatpush2.msra.mxu0 0.0
      %3123 = vmatprep.subr.mxu0 0.0
      %3124 = vmatpush2.msra.mxu0 0.0
      %3125 = vmatprep.subr.mxu0 0.0
      %3126 = vmatpush2.msra.mxu0 0.0
      %3127 = vmatprep.subr.mxu0 0.0
      %3128 = vmatpush2.msra.mxu0 0.0
      %3129 = vmatprep.subr.mxu0 0.0
      %3130 = vmatpush2.msra.mxu0 0.0
      %3131 = vmatprep.subr.mxu0 0.0
      %3132 = vmatpush2.msra.mxu0 0.0
      %3133 = vmatprep.subr.mxu0 0.0
      %3134 = vmatpush2.msra.mxu0 0.0
      %3135 = vmatprep.mubr.f32.mxu0 0.0
      %3136 = vmatmul.mubr.f32.gmra.mxu0 %v2830
      %v3137 = vpop.f32.mrf.mxu0
      %v3138 = vadd.f32 0.0, %v3137
      %v3139 = vpop.f32.mrf.mxu0
      %3140 = vmatprep.mubr.f32.mxu0 0.0
      %3141 = vmatmul.mubr.f32.gmra.mxu0 %v2831
      %v3142 = vpop.f32.mrf.mxu0
      %v3143 = vadd.f32 0.0, %v3142
      %v3144 = vpop.f32.mrf.mxu0
      %3145 = vmatprep.mubr.f32.mxu0 0.0
      %3146 = vmatmul.mubr.f32.gmra.mxu0 %v2832
      %v3147 = vpop.f32.mrf.mxu0
      %v3148 = vadd.f32 0.0, %v3147
      %v3149 = vpop.f32.mrf.mxu0
      %3150 = vmatprep.mubr.f32.mxu0 0.0
      %3151 = vmatmul.mubr.f32.gmra.mxu0 %v2833
      %v3152 = vpop.f32.mrf.mxu0
      %v3153 = vadd.f32 0.0, %v3152
      %v3154 = vpop.f32.mrf.mxu0
      %3155 = vdwg.mxu0
      %3172 = vrot.lane.b32.xlu0 %v881, 64
      %v3173 = vpop.permute.xlu0 %3172
      %3174 = vrot.lane.b32.xlu0 %v882, 64
      %v3175 = vpop.permute.xlu0 %3174
      %3176 = vrot.lane.b32.xlu0 %v883, 64
      %v3177 = vpop.permute.xlu0 %3176
      %3178 = vrot.lane.b32.xlu0 %v884, 64
      %v3179 = vpop.permute.xlu0 %3178
      %3180 = vrot.lane.b32.xlu0 %v885, 64
      %v3181 = vpop.permute.xlu0 %3180
      %3182 = vrot.lane.b32.xlu0 %v886, 64
      %v3183 = vpop.permute.xlu0 %3182
      %3184 = vrot.lane.b32.xlu0 %v887, 64
      %v3185 = vpop.permute.xlu0 %3184
      %3186 = vrot.lane.b32.xlu0 %v888, 64
      %v3187 = vpop.permute.xlu0 %3186
      %3188 = vrot.lane.b32.xlu0 %v889, 64
      %v3189 = vpop.permute.xlu0 %3188
      %3190 = vrot.lane.b32.xlu0 %v890, 64
      %v3191 = vpop.permute.xlu0 %3190
      %3192 = vrot.lane.b32.xlu0 %v891, 64
      %v3193 = vpop.permute.xlu0 %3192
      %3194 = vrot.lane.b32.xlu0 %v892, 64
      %v3195 = vpop.permute.xlu0 %3194
      %3196 = vrot.lane.b32.xlu0 %v893, 64
      %v3197 = vpop.permute.xlu0 %3196
      %3198 = vrot.lane.b32.xlu0 %v894, 64
      %v3199 = vpop.permute.xlu0 %3198
      %3200 = vrot.lane.b32.xlu0 %v895, 64
      %v3201 = vpop.permute.xlu0 %3200
      %3202 = vrot.lane.b32.xlu0 %v896, 64
      %v3203 = vpop.permute.xlu0 %3202
      %3220 = vmatprep.subr.mxu0 0.0
      %3221 = vmatpush1.msra.mxu0 %v3203
      %3222 = vmatprep.subr.mxu0 0.0
      %3223 = vmatpush1.msra.mxu0 %v3201
      %3224 = vmatprep.subr.mxu0 0.0
      %3225 = vmatpush1.msra.mxu0 %v3199
      %3226 = vmatprep.subr.mxu0 0.0
      %3227 = vmatpush1.msra.mxu0 %v3197
      %3228 = vmatprep.subr.mxu0 0.0
      %3229 = vmatpush1.msra.mxu0 %v3195
      %3230 = vmatprep.subr.mxu0 0.0
      %3231 = vmatpush1.msra.mxu0 %v3193
      %3232 = vmatprep.subr.mxu0 0.0
      %3233 = vmatpush1.msra.mxu0 %v3191
      %3234 = vmatprep.subr.mxu0 0.0
      %3235 = vmatpush1.msra.mxu0 %v3189
      %3236 = vmatprep.subr.mxu0 0.0
      %3237 = vmatpush1.msra.mxu0 %v3187
      %3238 = vmatprep.subr.mxu0 0.0
      %3239 = vmatpush1.msra.mxu0 %v3185
      %3240 = vmatprep.subr.mxu0 0.0
      %3241 = vmatpush1.msra.mxu0 %v3183
      %3242 = vmatprep.subr.mxu0 0.0
      %3243 = vmatpush1.msra.mxu0 %v3181
      %3244 = vmatprep.subr.mxu0 0.0
      %3245 = vmatpush1.msra.mxu0 %v3179
      %3246 = vmatprep.subr.mxu0 0.0
      %3247 = vmatpush1.msra.mxu0 %v3177
      %3248 = vmatprep.subr.mxu0 0.0
      %3249 = vmatpush1.msra.mxu0 %v3175
      %3250 = vmatprep.subr.mxu0 0.0
      %3251 = vmatpush1.msra.mxu0 %v3173
      %3252 = vmatprep.subr.mxu0 0.0
      %3253 = vmatpush2.msra.mxu0 0.0
      %3254 = vmatprep.subr.mxu0 0.0
      %3255 = vmatpush2.msra.mxu0 0.0
      %3256 = vmatprep.subr.mxu0 0.0
      %3257 = vmatpush2.msra.mxu0 0.0
      %3258 = vmatprep.subr.mxu0 0.0
      %3259 = vmatpush2.msra.mxu0 0.0
      %3260 = vmatprep.subr.mxu0 0.0
      %3261 = vmatpush2.msra.mxu0 0.0
      %3262 = vmatprep.subr.mxu0 0.0
      %3263 = vmatpush2.msra.mxu0 0.0
      %3264 = vmatprep.subr.mxu0 0.0
      %3265 = vmatpush2.msra.mxu0 0.0
      %3266 = vmatprep.subr.mxu0 0.0
      %3267 = vmatpush2.msra.mxu0 0.0
      %3268 = vmatprep.subr.mxu0 0.0
      %3269 = vmatpush2.msra.mxu0 0.0
      %3270 = vmatprep.subr.mxu0 0.0
      %3271 = vmatpush2.msra.mxu0 0.0
      %3272 = vmatprep.subr.mxu0 0.0
      %3273 = vmatpush2.msra.mxu0 0.0
      %3274 = vmatprep.subr.mxu0 0.0
      %3275 = vmatpush2.msra.mxu0 0.0
      %3276 = vmatprep.subr.mxu0 0.0
      %3277 = vmatpush2.msra.mxu0 0.0
      %3278 = vmatprep.subr.mxu0 0.0
      %3279 = vmatpush2.msra.mxu0 0.0
      %3280 = vmatprep.subr.mxu0 0.0
      %3281 = vmatpush2.msra.mxu0 0.0
      %3282 = vmatprep.subr.mxu0 0.0
      %3283 = vmatpush2.msra.mxu0 0.0
      %3284 = vmatprep.mubr.f32.mxu0 0.0
      %3285 = vmatmul.mubr.f32.gmra.mxu0 %v2834
      %v3286 = vpop.f32.mrf.mxu0
      %v3287 = vadd.f32 0.0, %v3286
      %v3288 = vpop.f32.mrf.mxu0
      %3289 = vmatprep.mubr.f32.mxu0 0.0
      %3290 = vmatmul.mubr.f32.gmra.mxu0 %v2835
      %v3291 = vpop.f32.mrf.mxu0
      %v3292 = vadd.f32 0.0, %v3291
      %v3293 = vpop.f32.mrf.mxu0
      %3294 = vmatprep.mubr.f32.mxu0 0.0
      %3295 = vmatmul.mubr.f32.gmra.mxu0 %v2836
      %v3296 = vpop.f32.mrf.mxu0
      %v3297 = vadd.f32 0.0, %v3296
      %v3298 = vpop.f32.mrf.mxu0
      %3299 = vmatprep.mubr.f32.mxu0 0.0
      %3300 = vmatmul.mubr.f32.gmra.mxu0 %v2837
      %v3301 = vpop.f32.mrf.mxu0
      %v3302 = vadd.f32 0.0, %v3301
      %v3303 = vpop.f32.mrf.mxu0
      %3304 = vdwg.mxu0
      %3321 = vrot.lane.b32.xlu0 %v897, 64
      %v3322 = vpop.permute.xlu0 %3321
      %3323 = vrot.lane.b32.xlu0 %v898, 64
      %v3324 = vpop.permute.xlu0 %3323
      %3325 = vrot.lane.b32.xlu0 %v899, 64
      %v3326 = vpop.permute.xlu0 %3325
      %3327 = vrot.lane.b32.xlu0 %v900, 64
      %v3328 = vpop.permute.xlu0 %3327
      %3329 = vrot.lane.b32.xlu0 %v901, 64
      %v3330 = vpop.permute.xlu0 %3329
      %3331 = vrot.lane.b32.xlu0 %v902, 64
      %v3332 = vpop.permute.xlu0 %3331
      %3333 = vrot.lane.b32.xlu0 %v903, 64
      %v3334 = vpop.permute.xlu0 %3333
      %3335 = vrot.lane.b32.xlu0 %v904, 64
      %v3336 = vpop.permute.xlu0 %3335
      %3337 = vrot.lane.b32.xlu0 %v905, 64
      %v3338 = vpop.permute.xlu0 %3337
      %3339 = vrot.lane.b32.xlu0 %v906, 64
      %v3340 = vpop.permute.xlu0 %3339
      %3341 = vrot.lane.b32.xlu0 %v907, 64
      %v3342 = vpop.permute.xlu0 %3341
      %3343 = vrot.lane.b32.xlu0 %v908, 64
      %v3344 = vpop.permute.xlu0 %3343
      %3345 = vrot.lane.b32.xlu0 %v909, 64
      %v3346 = vpop.permute.xlu0 %3345
      %3347 = vrot.lane.b32.xlu0 %v910, 64
      %v3348 = vpop.permute.xlu0 %3347
      %3349 = vrot.lane.b32.xlu0 %v911, 64
      %v3350 = vpop.permute.xlu0 %3349
      %3351 = vrot.lane.b32.xlu0 %v912, 64
      %v3352 = vpop.permute.xlu0 %3351
      %3369 = vmatprep.subr.mxu0 0.0
      %3370 = vmatpush1.msra.mxu0 %v3352
      %3371 = vmatprep.subr.mxu0 0.0
      %3372 = vmatpush1.msra.mxu0 %v3350
      %3373 = vmatprep.subr.mxu0 0.0
      %3374 = vmatpush1.msra.mxu0 %v3348
      %3375 = vmatprep.subr.mxu0 0.0
      %3376 = vmatpush1.msra.mxu0 %v3346
      %3377 = vmatprep.subr.mxu0 0.0
      %3378 = vmatpush1.msra.mxu0 %v3344
      %3379 = vmatprep.subr.mxu0 0.0
      %3380 = vmatpush1.msra.mxu0 %v3342
      %3381 = vmatprep.subr.mxu0 0.0
      %3382 = vmatpush1.msra.mxu0 %v3340
      %3383 = vmatprep.subr.mxu0 0.0
      %3384 = vmatpush1.msra.mxu0 %v3338
      %3385 = vmatprep.subr.mxu0 0.0
      %3386 = vmatpush1.msra.mxu0 %v3336
      %3387 = vmatprep.subr.mxu0 0.0
      %3388 = vmatpush1.msra.mxu0 %v3334
      %3389 = vmatprep.subr.mxu0 0.0
      %3390 = vmatpush1.msra.mxu0 %v3332
      %3391 = vmatprep.subr.mxu0 0.0
      %3392 = vmatpush1.msra.mxu0 %v3330
      %3393 = vmatprep.subr.mxu0 0.0
      %3394 = vmatpush1.msra.mxu0 %v3328
      %3395 = vmatprep.subr.mxu0 0.0
      %3396 = vmatpush1.msra.mxu0 %v3326
      %3397 = vmatprep.subr.mxu0 0.0
      %3398 = vmatpush1.msra.mxu0 %v3324
      %3399 = vmatprep.subr.mxu0 0.0
      %3400 = vmatpush1.msra.mxu0 %v3322
      %3401 = vmatprep.subr.mxu0 0.0
      %3402 = vmatpush2.msra.mxu0 0.0
      %3403 = vmatprep.subr.mxu0 0.0
      %3404 = vmatpush2.msra.mxu0 0.0
      %3405 = vmatprep.subr.mxu0 0.0
      %3406 = vmatpush2.msra.mxu0 0.0
      %3407 = vmatprep.subr.mxu0 0.0
      %3408 = vmatpush2.msra.mxu0 0.0
      %3409 = vmatprep.subr.mxu0 0.0
      %3410 = vmatpush2.msra.mxu0 0.0
      %3411 = vmatprep.subr.mxu0 0.0
      %3412 = vmatpush2.msra.mxu0 0.0
      %3413 = vmatprep.subr.mxu0 0.0
      %3414 = vmatpush2.msra.mxu0 0.0
      %3415 = vmatprep.subr.mxu0 0.0
      %3416 = vmatpush2.msra.mxu0 0.0
      %3417 = vmatprep.subr.mxu0 0.0
      %3418 = vmatpush2.msra.mxu0 0.0
      %3419 = vmatprep.subr.mxu0 0.0
      %3420 = vmatpush2.msra.mxu0 0.0
      %3421 = vmatprep.subr.mxu0 0.0
      %3422 = vmatpush2.msra.mxu0 0.0
      %3423 = vmatprep.subr.mxu0 0.0
      %3424 = vmatpush2.msra.mxu0 0.0
      %3425 = vmatprep.subr.mxu0 0.0
      %3426 = vmatpush2.msra.mxu0 0.0
      %3427 = vmatprep.subr.mxu0 0.0
      %3428 = vmatpush2.msra.mxu0 0.0
      %3429 = vmatprep.subr.mxu0 0.0
      %3430 = vmatpush2.msra.mxu0 0.0
      %3431 = vmatprep.subr.mxu0 0.0
      %3432 = vmatpush2.msra.mxu0 0.0
      %3433 = vmatprep.mubr.f32.mxu0 0.0
      %3434 = vmatmul.mubr.f32.gmra.mxu0 %v2838
      %v3435 = vpop.f32.mrf.mxu0
      %v3436 = vadd.f32 0.0, %v3435
      %v3437 = vpop.f32.mrf.mxu0
      %3438 = vmatprep.mubr.f32.mxu0 0.0
      %3439 = vmatmul.mubr.f32.gmra.mxu0 %v2839
      %v3440 = vpop.f32.mrf.mxu0
      %v3441 = vadd.f32 0.0, %v3440
      %v3442 = vpop.f32.mrf.mxu0
      %3443 = vmatprep.mubr.f32.mxu0 0.0
      %3444 = vmatmul.mubr.f32.gmra.mxu0 %v2840
      %v3445 = vpop.f32.mrf.mxu0
      %v3446 = vadd.f32 0.0, %v3445
      %v3447 = vpop.f32.mrf.mxu0
      %3448 = vmatprep.mubr.f32.mxu0 0.0
      %3449 = vmatmul.mubr.f32.gmra.mxu0 %v2841
      %v3450 = vpop.f32.mrf.mxu0
      %v3451 = vadd.f32 0.0, %v3450
      %v3452 = vpop.f32.mrf.mxu0
      %3453 = vdwg.mxu0
      %3470 = vrot.lane.b32.xlu0 %v913, 64
      %v3471 = vpop.permute.xlu0 %3470
      %3472 = vrot.lane.b32.xlu0 %v914, 64
      %v3473 = vpop.permute.xlu0 %3472
      %3474 = vrot.lane.b32.xlu0 %v915, 64
      %v3475 = vpop.permute.xlu0 %3474
      %3476 = vrot.lane.b32.xlu0 %v916, 64
      %v3477 = vpop.permute.xlu0 %3476
      %3478 = vrot.lane.b32.xlu0 %v917, 64
      %v3479 = vpop.permute.xlu0 %3478
      %3480 = vrot.lane.b32.xlu0 %v918, 64
      %v3481 = vpop.permute.xlu0 %3480
      %3482 = vrot.lane.b32.xlu0 %v919, 64
      %v3483 = vpop.permute.xlu0 %3482
      %3484 = vrot.lane.b32.xlu0 %v920, 64
      %v3485 = vpop.permute.xlu0 %3484
      %3486 = vrot.lane.b32.xlu0 %v921, 64
      %v3487 = vpop.permute.xlu0 %3486
      %3488 = vrot.lane.b32.xlu0 %v922, 64
      %v3489 = vpop.permute.xlu0 %3488
      %3490 = vrot.lane.b32.xlu0 %v923, 64
      %v3491 = vpop.permute.xlu0 %3490
      %3492 = vrot.lane.b32.xlu0 %v924, 64
      %v3493 = vpop.permute.xlu0 %3492
      %3494 = vrot.lane.b32.xlu0 %v925, 64
      %v3495 = vpop.permute.xlu0 %3494
      %3496 = vrot.lane.b32.xlu0 %v926, 64
      %v3497 = vpop.permute.xlu0 %3496
      %3498 = vrot.lane.b32.xlu0 %v927, 64
      %v3499 = vpop.permute.xlu0 %3498
      %3500 = vrot.lane.b32.xlu0 %v928, 64
      %v3501 = vpop.permute.xlu0 %3500
      %3518 = vmatprep.subr.mxu0 0.0
      %3519 = vmatpush1.msra.mxu0 %v3501
      %3520 = vmatprep.subr.mxu0 0.0
      %3521 = vmatpush1.msra.mxu0 %v3499
      %3522 = vmatprep.subr.mxu0 0.0
      %3523 = vmatpush1.msra.mxu0 %v3497
      %3524 = vmatprep.subr.mxu0 0.0
      %3525 = vmatpush1.msra.mxu0 %v3495
      %3526 = vmatprep.subr.mxu0 0.0
      %3527 = vmatpush1.msra.mxu0 %v3493
      %3528 = vmatprep.subr.mxu0 0.0
      %3529 = vmatpush1.msra.mxu0 %v3491
      %3530 = vmatprep.subr.mxu0 0.0
      %3531 = vmatpush1.msra.mxu0 %v3489
      %3532 = vmatprep.subr.mxu0 0.0
      %3533 = vmatpush1.msra.mxu0 %v3487
      %3534 = vmatprep.subr.mxu0 0.0
      %3535 = vmatpush1.msra.mxu0 %v3485
      %3536 = vmatprep.subr.mxu0 0.0
      %3537 = vmatpush1.msra.mxu0 %v3483
      %3538 = vmatprep.subr.mxu0 0.0
      %3539 = vmatpush1.msra.mxu0 %v3481
      %3540 = vmatprep.subr.mxu0 0.0
      %3541 = vmatpush1.msra.mxu0 %v3479
      %3542 = vmatprep.subr.mxu0 0.0
      %3543 = vmatpush1.msra.mxu0 %v3477
      %3544 = vmatprep.subr.mxu0 0.0
      %3545 = vmatpush1.msra.mxu0 %v3475
      %3546 = vmatprep.subr.mxu0 0.0
      %3547 = vmatpush1.msra.mxu0 %v3473
      %3548 = vmatprep.subr.mxu0 0.0
      %3549 = vmatpush1.msra.mxu0 %v3471
      %3550 = vmatprep.subr.mxu0 0.0
      %3551 = vmatpush2.msra.mxu0 0.0
      %3552 = vmatprep.subr.mxu0 0.0
      %3553 = vmatpush2.msra.mxu0 0.0
      %3554 = vmatprep.subr.mxu0 0.0
      %3555 = vmatpush2.msra.mxu0 0.0
      %3556 = vmatprep.subr.mxu0 0.0
      %3557 = vmatpush2.msra.mxu0 0.0
      %3558 = vmatprep.subr.mxu0 0.0
      %3559 = vmatpush2.msra.mxu0 0.0
      %3560 = vmatprep.subr.mxu0 0.0
      %3561 = vmatpush2.msra.mxu0 0.0
      %3562 = vmatprep.subr.mxu0 0.0
      %3563 = vmatpush2.msra.mxu0 0.0
      %3564 = vmatprep.subr.mxu0 0.0
      %3565 = vmatpush2.msra.mxu0 0.0
      %3566 = vmatprep.subr.mxu0 0.0
      %3567 = vmatpush2.msra.mxu0 0.0
      %3568 = vmatprep.subr.mxu0 0.0
      %3569 = vmatpush2.msra.mxu0 0.0
      %3570 = vmatprep.subr.mxu0 0.0
      %3571 = vmatpush2.msra.mxu0 0.0
      %3572 = vmatprep.subr.mxu0 0.0
      %3573 = vmatpush2.msra.mxu0 0.0
      %3574 = vmatprep.subr.mxu0 0.0
      %3575 = vmatpush2.msra.mxu0 0.0
      %3576 = vmatprep.subr.mxu0 0.0
      %3577 = vmatpush2.msra.mxu0 0.0
      %3578 = vmatprep.subr.mxu0 0.0
      %3579 = vmatpush2.msra.mxu0 0.0
      %3580 = vmatprep.subr.mxu0 0.0
      %3581 = vmatpush2.msra.mxu0 0.0
      %3582 = vmatprep.mubr.f32.mxu0 0.0
      %3583 = vmatmul.mubr.f32.gmra.mxu0 %v2842
      %v3584 = vpop.f32.mrf.mxu0
      %v3585 = vadd.f32 0.0, %v3584
      %v3586 = vpop.f32.mrf.mxu0
      %3587 = vmatprep.mubr.f32.mxu0 0.0
      %3588 = vmatmul.mubr.f32.gmra.mxu0 %v2843
      %v3589 = vpop.f32.mrf.mxu0
      %v3590 = vadd.f32 0.0, %v3589
      %v3591 = vpop.f32.mrf.mxu0
      %3592 = vmatprep.mubr.f32.mxu0 0.0
      %3593 = vmatmul.mubr.f32.gmra.mxu0 %v2844
      %v3594 = vpop.f32.mrf.mxu0
      %v3595 = vadd.f32 0.0, %v3594
      %v3596 = vpop.f32.mrf.mxu0
      %3597 = vmatprep.mubr.f32.mxu0 0.0
      %3598 = vmatmul.mubr.f32.gmra.mxu0 %v2845
      %v3599 = vpop.f32.mrf.mxu0
      %v3600 = vadd.f32 0.0, %v3599
      %v3601 = vpop.f32.mrf.mxu0
      %3602 = vdwg.mxu0
      %3619 = vrot.lane.b32.xlu0 %v929, 64
      %v3620 = vpop.permute.xlu0 %3619
      %3621 = vrot.lane.b32.xlu0 %v930, 64
      %v3622 = vpop.permute.xlu0 %3621
      %3623 = vrot.lane.b32.xlu0 %v931, 64
      %v3624 = vpop.permute.xlu0 %3623
      %3625 = vrot.lane.b32.xlu0 %v932, 64
      %v3626 = vpop.permute.xlu0 %3625
      %3627 = vrot.lane.b32.xlu0 %v933, 64
      %v3628 = vpop.permute.xlu0 %3627
      %3629 = vrot.lane.b32.xlu0 %v934, 64
      %v3630 = vpop.permute.xlu0 %3629
      %3631 = vrot.lane.b32.xlu0 %v935, 64
      %v3632 = vpop.permute.xlu0 %3631
      %3633 = vrot.lane.b32.xlu0 %v936, 64
      %v3634 = vpop.permute.xlu0 %3633
      %3635 = vrot.lane.b32.xlu0 %v937, 64
      %v3636 = vpop.permute.xlu0 %3635
      %3637 = vrot.lane.b32.xlu0 %v938, 64
      %v3638 = vpop.permute.xlu0 %3637
      %3639 = vrot.lane.b32.xlu0 %v939, 64
      %v3640 = vpop.permute.xlu0 %3639
      %3641 = vrot.lane.b32.xlu0 %v940, 64
      %v3642 = vpop.permute.xlu0 %3641
      %3643 = vrot.lane.b32.xlu0 %v941, 64
      %v3644 = vpop.permute.xlu0 %3643
      %3645 = vrot.lane.b32.xlu0 %v942, 64
      %v3646 = vpop.permute.xlu0 %3645
      %3647 = vrot.lane.b32.xlu0 %v943, 64
      %v3648 = vpop.permute.xlu0 %3647
      %3649 = vrot.lane.b32.xlu0 %v944, 64
      %v3650 = vpop.permute.xlu0 %3649
      %3667 = vmatprep.subr.mxu0 0.0
      %3668 = vmatpush1.msra.mxu0 %v3650
      %3669 = vmatprep.subr.mxu0 0.0
      %3670 = vmatpush1.msra.mxu0 %v3648
      %3671 = vmatprep.subr.mxu0 0.0
      %3672 = vmatpush1.msra.mxu0 %v3646
      %3673 = vmatprep.subr.mxu0 0.0
      %3674 = vmatpush1.msra.mxu0 %v3644
      %3675 = vmatprep.subr.mxu0 0.0
      %3676 = vmatpush1.msra.mxu0 %v3642
      %3677 = vmatprep.subr.mxu0 0.0
      %3678 = vmatpush1.msra.mxu0 %v3640
      %3679 = vmatprep.subr.mxu0 0.0
      %3680 = vmatpush1.msra.mxu0 %v3638
      %3681 = vmatprep.subr.mxu0 0.0
      %3682 = vmatpush1.msra.mxu0 %v3636
      %3683 = vmatprep.subr.mxu0 0.0
      %3684 = vmatpush1.msra.mxu0 %v3634
      %3685 = vmatprep.subr.mxu0 0.0
      %3686 = vmatpush1.msra.mxu0 %v3632
      %3687 = vmatprep.subr.mxu0 0.0
      %3688 = vmatpush1.msra.mxu0 %v3630
      %3689 = vmatprep.subr.mxu0 0.0
      %3690 = vmatpush1.msra.mxu0 %v3628
      %3691 = vmatprep.subr.mxu0 0.0
      %3692 = vmatpush1.msra.mxu0 %v3626
      %3693 = vmatprep.subr.mxu0 0.0
      %3694 = vmatpush1.msra.mxu0 %v3624
      %3695 = vmatprep.subr.mxu0 0.0
      %3696 = vmatpush1.msra.mxu0 %v3622
      %3697 = vmatprep.subr.mxu0 0.0
      %3698 = vmatpush1.msra.mxu0 %v3620
      %3699 = vmatprep.subr.mxu0 0.0
      %3700 = vmatpush2.msra.mxu0 0.0
      %3701 = vmatprep.subr.mxu0 0.0
      %3702 = vmatpush2.msra.mxu0 0.0
      %3703 = vmatprep.subr.mxu0 0.0
      %3704 = vmatpush2.msra.mxu0 0.0
      %3705 = vmatprep.subr.mxu0 0.0
      %3706 = vmatpush2.msra.mxu0 0.0
      %3707 = vmatprep.subr.mxu0 0.0
      %3708 = vmatpush2.msra.mxu0 0.0
      %3709 = vmatprep.subr.mxu0 0.0
      %3710 = vmatpush2.msra.mxu0 0.0
      %3711 = vmatprep.subr.mxu0 0.0
      %3712 = vmatpush2.msra.mxu0 0.0
      %3713 = vmatprep.subr.mxu0 0.0
      %3714 = vmatpush2.msra.mxu0 0.0
      %3715 = vmatprep.subr.mxu0 0.0
      %3716 = vmatpush2.msra.mxu0 0.0
      %3717 = vmatprep.subr.mxu0 0.0
      %3718 = vmatpush2.msra.mxu0 0.0
      %3719 = vmatprep.subr.mxu0 0.0
      %3720 = vmatpush2.msra.mxu0 0.0
      %3721 = vmatprep.subr.mxu0 0.0
      %3722 = vmatpush2.msra.mxu0 0.0
      %3723 = vmatprep.subr.mxu0 0.0
      %3724 = vmatpush2.msra.mxu0 0.0
      %3725 = vmatprep.subr.mxu0 0.0
      %3726 = vmatpush2.msra.mxu0 0.0
      %3727 = vmatprep.subr.mxu0 0.0
      %3728 = vmatpush2.msra.mxu0 0.0
      %3729 = vmatprep.subr.mxu0 0.0
      %3730 = vmatpush2.msra.mxu0 0.0
      %3731 = vmatprep.mubr.f32.mxu0 0.0
      %3732 = vmatmul.mubr.f32.gmra.mxu0 %v2846
      %v3733 = vpop.f32.mrf.mxu0
      %v3734 = vadd.f32 0.0, %v3733
      %v3735 = vpop.f32.mrf.mxu0
      %3736 = vmatprep.mubr.f32.mxu0 0.0
      %3737 = vmatmul.mubr.f32.gmra.mxu0 %v2847
      %v3738 = vpop.f32.mrf.mxu0
      %v3739 = vadd.f32 0.0, %v3738
      %v3740 = vpop.f32.mrf.mxu0
      %3741 = vmatprep.mubr.f32.mxu0 0.0
      %3742 = vmatmul.mubr.f32.gmra.mxu0 %v2848
      %v3743 = vpop.f32.mrf.mxu0
      %v3744 = vadd.f32 0.0, %v3743
      %v3745 = vpop.f32.mrf.mxu0
      %3746 = vmatprep.mubr.f32.mxu0 0.0
      %3747 = vmatmul.mubr.f32.gmra.mxu0 %v2849
      %v3748 = vpop.f32.mrf.mxu0
      %v3749 = vadd.f32 0.0, %v3748
      %v3750 = vpop.f32.mrf.mxu0
      %3751 = vdwg.mxu0
      %3768 = vrot.lane.b32.xlu0 %v945, 64
      %v3769 = vpop.permute.xlu0 %3768
      %3770 = vrot.lane.b32.xlu0 %v946, 64
      %v3771 = vpop.permute.xlu0 %3770
      %3772 = vrot.lane.b32.xlu0 %v947, 64
      %v3773 = vpop.permute.xlu0 %3772
      %3774 = vrot.lane.b32.xlu0 %v948, 64
      %v3775 = vpop.permute.xlu0 %3774
      %3776 = vrot.lane.b32.xlu0 %v949, 64
      %v3777 = vpop.permute.xlu0 %3776
      %3778 = vrot.lane.b32.xlu0 %v950, 64
      %v3779 = vpop.permute.xlu0 %3778
      %3780 = vrot.lane.b32.xlu0 %v951, 64
      %v3781 = vpop.permute.xlu0 %3780
      %3782 = vrot.lane.b32.xlu0 %v952, 64
      %v3783 = vpop.permute.xlu0 %3782
      %3784 = vrot.lane.b32.xlu0 %v953, 64
      %v3785 = vpop.permute.xlu0 %3784
      %3786 = vrot.lane.b32.xlu0 %v954, 64
      %v3787 = vpop.permute.xlu0 %3786
      %3788 = vrot.lane.b32.xlu0 %v955, 64
      %v3789 = vpop.permute.xlu0 %3788
      %3790 = vrot.lane.b32.xlu0 %v956, 64
      %v3791 = vpop.permute.xlu0 %3790
      %3792 = vrot.lane.b32.xlu0 %v957, 64
      %v3793 = vpop.permute.xlu0 %3792
      %3794 = vrot.lane.b32.xlu0 %v958, 64
      %v3795 = vpop.permute.xlu0 %3794
      %3796 = vrot.lane.b32.xlu0 %v959, 64
      %v3797 = vpop.permute.xlu0 %3796
      %3798 = vrot.lane.b32.xlu0 %v960, 64
      %v3799 = vpop.permute.xlu0 %3798
      %3816 = vmatprep.subr.mxu0 0.0
      %3817 = vmatpush1.msra.mxu0 %v3799
      %3818 = vmatprep.subr.mxu0 0.0
      %3819 = vmatpush1.msra.mxu0 %v3797
      %3820 = vmatprep.subr.mxu0 0.0
      %3821 = vmatpush1.msra.mxu0 %v3795
      %3822 = vmatprep.subr.mxu0 0.0
      %3823 = vmatpush1.msra.mxu0 %v3793
      %3824 = vmatprep.subr.mxu0 0.0
      %3825 = vmatpush1.msra.mxu0 %v3791
      %3826 = vmatprep.subr.mxu0 0.0
      %3827 = vmatpush1.msra.mxu0 %v3789
      %3828 = vmatprep.subr.mxu0 0.0
      %3829 = vmatpush1.msra.mxu0 %v3787
      %3830 = vmatprep.subr.mxu0 0.0
      %3831 = vmatpush1.msra.mxu0 %v3785
      %3832 = vmatprep.subr.mxu0 0.0
      %3833 = vmatpush1.msra.mxu0 %v3783
      %3834 = vmatprep.subr.mxu0 0.0
      %3835 = vmatpush1.msra.mxu0 %v3781
      %3836 = vmatprep.subr.mxu0 0.0
      %3837 = vmatpush1.msra.mxu0 %v3779
      %3838 = vmatprep.subr.mxu0 0.0
      %3839 = vmatpush1.msra.mxu0 %v3777
      %3840 = vmatprep.subr.mxu0 0.0
      %3841 = vmatpush1.msra.mxu0 %v3775
      %3842 = vmatprep.subr.mxu0 0.0
      %3843 = vmatpush1.msra.mxu0 %v3773
      %3844 = vmatprep.subr.mxu0 0.0
      %3845 = vmatpush1.msra.mxu0 %v3771
      %3846 = vmatprep.subr.mxu0 0.0
      %3847 = vmatpush1.msra.mxu0 %v3769
      %3848 = vmatprep.subr.mxu0 0.0
      %3849 = vmatpush2.msra.mxu0 0.0
      %3850 = vmatprep.subr.mxu0 0.0
      %3851 = vmatpush2.msra.mxu0 0.0
      %3852 = vmatprep.subr.mxu0 0.0
      %3853 = vmatpush2.msra.mxu0 0.0
      %3854 = vmatprep.subr.mxu0 0.0
      %3855 = vmatpush2.msra.mxu0 0.0
      %3856 = vmatprep.subr.mxu0 0.0
      %3857 = vmatpush2.msra.mxu0 0.0
      %3858 = vmatprep.subr.mxu0 0.0
      %3859 = vmatpush2.msra.mxu0 0.0
      %3860 = vmatprep.subr.mxu0 0.0
      %3861 = vmatpush2.msra.mxu0 0.0
      %3862 = vmatprep.subr.mxu0 0.0
      %3863 = vmatpush2.msra.mxu0 0.0
      %3864 = vmatprep.subr.mxu0 0.0
      %3865 = vmatpush2.msra.mxu0 0.0
      %3866 = vmatprep.subr.mxu0 0.0
      %3867 = vmatpush2.msra.mxu0 0.0
      %3868 = vmatprep.subr.mxu0 0.0
      %3869 = vmatpush2.msra.mxu0 0.0
      %3870 = vmatprep.subr.mxu0 0.0
      %3871 = vmatpush2.msra.mxu0 0.0
      %3872 = vmatprep.subr.mxu0 0.0
      %3873 = vmatpush2.msra.mxu0 0.0
      %3874 = vmatprep.subr.mxu0 0.0
      %3875 = vmatpush2.msra.mxu0 0.0
      %3876 = vmatprep.subr.mxu0 0.0
      %3877 = vmatpush2.msra.mxu0 0.0
      %3878 = vmatprep.subr.mxu0 0.0
      %3879 = vmatpush2.msra.mxu0 0.0
      %3880 = vmatprep.mubr.f32.mxu0 0.0
      %3881 = vmatmul.mubr.f32.gmra.mxu0 %v2850
      %v3882 = vpop.f32.mrf.mxu0
      %v3883 = vadd.f32 0.0, %v3882
      %v3884 = vpop.f32.mrf.mxu0
      %3885 = vmatprep.mubr.f32.mxu0 0.0
      %3886 = vmatmul.mubr.f32.gmra.mxu0 %v2851
      %v3887 = vpop.f32.mrf.mxu0
      %v3888 = vadd.f32 0.0, %v3887
      %v3889 = vpop.f32.mrf.mxu0
      %3890 = vmatprep.mubr.f32.mxu0 0.0
      %3891 = vmatmul.mubr.f32.gmra.mxu0 %v2852
      %v3892 = vpop.f32.mrf.mxu0
      %v3893 = vadd.f32 0.0, %v3892
      %v3894 = vpop.f32.mrf.mxu0
      %3895 = vmatprep.mubr.f32.mxu0 0.0
      %3896 = vmatmul.mubr.f32.gmra.mxu0 %v2853
      %v3897 = vpop.f32.mrf.mxu0
      %v3898 = vadd.f32 0.0, %v3897
      %v3899 = vpop.f32.mrf.mxu0
      %3900 = vdwg.mxu0
      %3917 = vrot.lane.b32.xlu0 %v961, 64
      %v3918 = vpop.permute.xlu0 %3917
      %3919 = vrot.lane.b32.xlu0 %v962, 64
      %v3920 = vpop.permute.xlu0 %3919
      %3921 = vrot.lane.b32.xlu0 %v963, 64
      %v3922 = vpop.permute.xlu0 %3921
      %3923 = vrot.lane.b32.xlu0 %v964, 64
      %v3924 = vpop.permute.xlu0 %3923
      %3925 = vrot.lane.b32.xlu0 %v965, 64
      %v3926 = vpop.permute.xlu0 %3925
      %3927 = vrot.lane.b32.xlu0 %v966, 64
      %v3928 = vpop.permute.xlu0 %3927
      %3929 = vrot.lane.b32.xlu0 %v967, 64
      %v3930 = vpop.permute.xlu0 %3929
      %3931 = vrot.lane.b32.xlu0 %v968, 64
      %v3932 = vpop.permute.xlu0 %3931
      %3933 = vrot.lane.b32.xlu0 %v969, 64
      %v3934 = vpop.permute.xlu0 %3933
      %3935 = vrot.lane.b32.xlu0 %v970, 64
      %v3936 = vpop.permute.xlu0 %3935
      %3937 = vrot.lane.b32.xlu0 %v971, 64
      %v3938 = vpop.permute.xlu0 %3937
      %3939 = vrot.lane.b32.xlu0 %v972, 64
      %v3940 = vpop.permute.xlu0 %3939
      %3941 = vrot.lane.b32.xlu0 %v973, 64
      %v3942 = vpop.permute.xlu0 %3941
      %3943 = vrot.lane.b32.xlu0 %v974, 64
      %v3944 = vpop.permute.xlu0 %3943
      %3945 = vrot.lane.b32.xlu0 %v975, 64
      %v3946 = vpop.permute.xlu0 %3945
      %3947 = vrot.lane.b32.xlu0 %v976, 64
      %v3948 = vpop.permute.xlu0 %3947
      %3965 = vmatprep.subr.mxu0 0.0
      %3966 = vmatpush1.msra.mxu0 %v3948
      %3967 = vmatprep.subr.mxu0 0.0
      %3968 = vmatpush1.msra.mxu0 %v3946
      %3969 = vmatprep.subr.mxu0 0.0
      %3970 = vmatpush1.msra.mxu0 %v3944
      %3971 = vmatprep.subr.mxu0 0.0
      %3972 = vmatpush1.msra.mxu0 %v3942
      %3973 = vmatprep.subr.mxu0 0.0
      %3974 = vmatpush1.msra.mxu0 %v3940
      %3975 = vmatprep.subr.mxu0 0.0
      %3976 = vmatpush1.msra.mxu0 %v3938
      %3977 = vmatprep.subr.mxu0 0.0
      %3978 = vmatpush1.msra.mxu0 %v3936
      %3979 = vmatprep.subr.mxu0 0.0
      %3980 = vmatpush1.msra.mxu0 %v3934
      %3981 = vmatprep.subr.mxu0 0.0
      %3982 = vmatpush1.msra.mxu0 %v3932
      %3983 = vmatprep.subr.mxu0 0.0
      %3984 = vmatpush1.msra.mxu0 %v3930
      %3985 = vmatprep.subr.mxu0 0.0
      %3986 = vmatpush1.msra.mxu0 %v3928
      %3987 = vmatprep.subr.mxu0 0.0
      %3988 = vmatpush1.msra.mxu0 %v3926
      %3989 = vmatprep.subr.mxu0 0.0
      %3990 = vmatpush1.msra.mxu0 %v3924
      %3991 = vmatprep.subr.mxu0 0.0
      %3992 = vmatpush1.msra.mxu0 %v3922
      %3993 = vmatprep.subr.mxu0 0.0
      %3994 = vmatpush1.msra.mxu0 %v3920
      %3995 = vmatprep.subr.mxu0 0.0
      %3996 = vmatpush1.msra.mxu0 %v3918
      %3997 = vmatprep.subr.mxu0 0.0
      %3998 = vmatpush2.msra.mxu0 0.0
      %3999 = vmatprep.subr.mxu0 0.0
      %4000 = vmatpush2.msra.mxu0 0.0
      %4001 = vmatprep.subr.mxu0 0.0
      %4002 = vmatpush2.msra.mxu0 0.0
      %4003 = vmatprep.subr.mxu0 0.0
      %4004 = vmatpush2.msra.mxu0 0.0
      %4005 = vmatprep.subr.mxu0 0.0
      %4006 = vmatpush2.msra.mxu0 0.0
      %4007 = vmatprep.subr.mxu0 0.0
      %4008 = vmatpush2.msra.mxu0 0.0
      %4009 = vmatprep.subr.mxu0 0.0
      %4010 = vmatpush2.msra.mxu0 0.0
      %4011 = vmatprep.subr.mxu0 0.0
      %4012 = vmatpush2.msra.mxu0 0.0
      %4013 = vmatprep.subr.mxu0 0.0
      %4014 = vmatpush2.msra.mxu0 0.0
      %4015 = vmatprep.subr.mxu0 0.0
      %4016 = vmatpush2.msra.mxu0 0.0
      %4017 = vmatprep.subr.mxu0 0.0
      %4018 = vmatpush2.msra.mxu0 0.0
      %4019 = vmatprep.subr.mxu0 0.0
      %4020 = vmatpush2.msra.mxu0 0.0
      %4021 = vmatprep.subr.mxu0 0.0
      %4022 = vmatpush2.msra.mxu0 0.0
      %4023 = vmatprep.subr.mxu0 0.0
      %4024 = vmatpush2.msra.mxu0 0.0
      %4025 = vmatprep.subr.mxu0 0.0
      %4026 = vmatpush2.msra.mxu0 0.0
      %4027 = vmatprep.subr.mxu0 0.0
      %4028 = vmatpush2.msra.mxu0 0.0
      %4029 = vmatprep.mubr.f32.mxu0 0.0
      %4030 = vmatmul.mubr.f32.gmra.mxu0 %v2854
      %v4031 = vpop.f32.mrf.mxu0
      %v4032 = vadd.f32 0.0, %v4031
      %v4033 = vpop.f32.mrf.mxu0
      %4034 = vmatprep.mubr.f32.mxu0 0.0
      %4035 = vmatmul.mubr.f32.gmra.mxu0 %v2855
      %v4036 = vpop.f32.mrf.mxu0
      %v4037 = vadd.f32 0.0, %v4036
      %v4038 = vpop.f32.mrf.mxu0
      %4039 = vmatprep.mubr.f32.mxu0 0.0
      %4040 = vmatmul.mubr.f32.gmra.mxu0 %v2856
      %v4041 = vpop.f32.mrf.mxu0
      %v4042 = vadd.f32 0.0, %v4041
      %v4043 = vpop.f32.mrf.mxu0
      %4044 = vmatprep.mubr.f32.mxu0 0.0
      %4045 = vmatmul.mubr.f32.gmra.mxu0 %v2857
      %v4046 = vpop.f32.mrf.mxu0
      %v4047 = vadd.f32 0.0, %v4046
      %v4048 = vpop.f32.mrf.mxu0
      %4049 = vdwg.mxu0
      %4050 = vst.msk [vmem:[%s226] sm:$0xff] %vm271, %v2989
      %4051 = vst.msk [vmem:[%s226 + $0x8] sm:$0xff] %vm271, %v2994
      %4052 = vst.msk [vmem:[%s226 + $0x10] sm:$0xff] %vm271, %v2999
      %4053 = vst.msk [vmem:[%s226 + $0x18] sm:$0xff] %vm271, %v3004
      %4054 = vst.msk [vmem:[%s226 + $0x20] sm:$0xff] %vm271, %v3138
      %4055 = vst.msk [vmem:[%s226 + $0x28] sm:$0xff] %vm271, %v3143
      %4056 = vst.msk [vmem:[%s226 + $0x30] sm:$0xff] %vm271, %v3148
      %4057 = vst.msk [vmem:[%s226 + $0x38] sm:$0xff] %vm271, %v3153
      %4058 = vst.msk [vmem:[%s226 + $0x40] sm:$0xff] %vm271, %v3287
      %4059 = vst.msk [vmem:[%s226 + $0x48] sm:$0xff] %vm271, %v3292
      %4060 = vst.msk [vmem:[%s226 + $0x50] sm:$0xff] %vm271, %v3297
      %4061 = vst.msk [vmem:[%s226 + $0x58] sm:$0xff] %vm271, %v3302
      %4062 = vst.msk [vmem:[%s226 + $0x60] sm:$0xff] %vm271, %v3436
      %4063 = vst.msk [vmem:[%s226 + $0x68] sm:$0xff] %vm271, %v3441
      %4064 = vst.msk [vmem:[%s226 + $0x70] sm:$0xff] %vm271, %v3446
      %4065 = vst.msk [vmem:[%s226 + $0x78] sm:$0xff] %vm271, %v3451
      %4066 = vst.msk [vmem:[%s226 + $0x80] sm:$0xff] %vm271, %v3585
      %4067 = vst.msk [vmem:[%s226 + $0x88] sm:$0xff] %vm271, %v3590
      %4068 = vst.msk [vmem:[%s226 + $0x90] sm:$0xff] %vm271, %v3595
      %4069 = vst.msk [vmem:[%s226 + $0x98] sm:$0xff] %vm271, %v3600
      %4070 = vst.msk [vmem:[%s226 + $0xa0] sm:$0xff] %vm271, %v3734
      %4071 = vst.msk [vmem:[%s226 + $0xa8] sm:$0xff] %vm271, %v3739
      %4072 = vst.msk [vmem:[%s226 + $0xb0] sm:$0xff] %vm271, %v3744
      %4073 = vst.msk [vmem:[%s226 + $0xb8] sm:$0xff] %vm271, %v3749
      %4074 = vst.msk [vmem:[%s226 + $0xc0] sm:$0xff] %vm271, %v3883
      %4075 = vst.msk [vmem:[%s226 + $0xc8] sm:$0xff] %vm271, %v3888
      %4076 = vst.msk [vmem:[%s226 + $0xd0] sm:$0xff] %vm271, %v3893
      %4077 = vst.msk [vmem:[%s226 + $0xd8] sm:$0xff] %vm271, %v3898
      %4078 = vst.msk [vmem:[%s226 + $0xe0] sm:$0xff] %vm271, %v4032
      %4079 = vst.msk [vmem:[%s226 + $0xe8] sm:$0xff] %vm271, %v4037
      %4080 = vst.msk [vmem:[%s226 + $0xf0] sm:$0xff] %vm271, %v4042
      %4081 = vst.msk [vmem:[%s226 + $0xf8] sm:$0xff] %vm271, %v4047
      %s4082 = smul.u32 32, %s16
      %p4083 = scmp.lt.s32.totalorder %s4082, 63
      %s4084 = scalar_select %p4083, %s4082, 63
      %s4085 = smul.addr %s4084, 8
      %s4086 = scalar_lea.vmem %s5, %s4085
      // Predicated region
      $region41: #{tpu_custom_call.1} parent=39 // pred_check
        %p4087 = pneg %p144
      $region42: #{tpu_custom_call.1} parent=39 // pred_check_branch
        %4089 = sbr.rel (%p4087) target = $region44
      $region43: #{tpu_custom_call.1} parent=39 // pred_region
        %s4090 = smul.u32 32, %s16
      $region44: #{tpu_custom_call.1} parent=39 // pred_fallthru
        _
    $region40: #{tpu_custom_call.1} parent=5 // pred_fallthru
      _
    %p4091 = scmp.le.s32.totalorder 2, %s11
    // Predicated region
    $region45: #{tpu_custom_call.1} parent=5 // pred_check
      %p4092 = pneg %p4091
    $region46: #{tpu_custom_call.1} parent=5 // pred_check_branch
      %4094 = sbr.rel (%p4092) target = $region48
    $region47: #{tpu_custom_call.1} parent=5 // pred_region
      %s4095 = ssub.s32 %s11, 2
      // Predicated region
      $region49: #{tpu_custom_call.1} parent=47 // pred_check
        %p4096 = pneg %p150
      $region50: #{tpu_custom_call.1} parent=47 // pred_check_branch
        %4098 = sbr.rel (%p4096) target = $region52
      $region51: #{tpu_custom_call.1} parent=47 // pred_region
        %s4099 = smul.u32 32, %s17
        %p4100 = scmp.lt.s32.totalorder %s4099, 63
        %s4101 = scalar_select %p4100, %s4099, 63
        %s4102 = smul.addr %s4101, 8
        %s4103 = scalar_lea.vmem %s5, %s4102
      $region52: #{tpu_custom_call.1} parent=47 // pred_fallthru
        _
    $region48: #{tpu_custom_call.1} parent=5 // pred_fallthru
      _
  $region6: #{tpu_custom_call.1} parent=0 // loop_footer
    %s15 = sadd.s32 1, %s11
  $region7: #{tpu_custom_call.1} parent=0 // loop_footer_branch
    %10 = sbr.rel target = $region3
  $region8: #{tpu_custom_call.1} parent=0 // loop_exit
    _

</llo_original>
